<compile_context>
chip_gen: v6e
topology: v6e:2x2x1
jax: 0.10.0
libtpu: 0.0.40
codegen_flags: <defaults>
</compile_context>

<pallas_src>
import jax
import jax.numpy as jnp
from jax.experimental import pallas as pl
from jax.experimental.pallas import tpu as pltpu

EPS = 1e-6  # timm MlpMixer uses nn.LayerNorm(eps=1e-6)

_CPARAMS = pltpu.CompilerParams(vmem_limit_bytes=48 << 20)


# ----------------------------- kernel helpers -----------------------------

def _layernorm(x, g, b):
    mu = jnp.mean(x, axis=-1, keepdims=True)
    var = jnp.mean(jnp.square(x - mu), axis=-1, keepdims=True)
    return (x - mu) * jax.lax.rsqrt(var + EPS) * g + b


def _gelu(x):
    # torch.nn.GELU default is the exact (erf) variant
    return jax.nn.gelu(x, approximate=False)


# ------------------------------- kernels ----------------------------------

def stem_kernel(x_ref, w_ref, b_ref, o_ref):
    """Patch-embedding conv-as-matmul: (M,K)@(K,N)+b, bf16 inputs, f32 accum."""
    o_ref[...] = (jnp.dot(x_ref[...].astype(jnp.bfloat16), w_ref[...],
                          preferred_element_type=jnp.float32) + b_ref[...])


def mixer_blocks_kernel(x_ref,
                        g1_ref, b1_ref, wt1t_ref, bt1_ref, wt2t_ref, bt2_ref,
                        g2_ref, b2_ref, wc1_ref, bc1_ref, wc2_ref, bc2_ref,
                        o_ref):
    """All mixer blocks in one call. grid=(num_blocks,) ('arbitrary' / sequential).

    The (B, T, D) activation lives in o_ref (constant output block index ->
    resident in VMEM across the block axis). Per-block weights are DMA'd per
    grid step and prefetched by the pipeline.
    """
    blk = pl.program_id(0)

    @pl.when(blk == 0)
    def _():
        o_ref[...] = x_ref[...]          # load activation slab once

    g1 = g1_ref[0]                        # (1, D)  f32
    b1 = b1_ref[0]                        # (1, D)  f32
    wt1t = wt1t_ref[0]                    # (Td, T) bf16  (pre-transposed)
    bt1 = bt1_ref[0]                      # (Td, 1) f32
    wt2t = wt2t_ref[0]                    # (T, Td) bf16  (pre-transposed)
    bt2 = bt2_ref[0]                      # (T, 1)  f32
    g2 = g2_ref[0]                        # (1, D)
    b2 = b2_ref[0]                        # (1, D)
    wc1 = wc1_ref[0]                      # (D, Dc) bf16
    bc1 = bc1_ref[0]                      # (1, Dc) f32
    wc2 = wc2_ref[0]                      # (Dc, D) bf16
    bc2 = bc2_ref[0]                      # (1, D)  f32

    B = o_ref.shape[0]
    for b in range(B):                    # B=2, static unroll
        x = o_ref[b]                      # (T, D) f32

        # --- token mixing: x + (mlp_tokens(norm1(x).T)).T, transpose-free ---
        y = _layernorm(x, g1, b1)                                        # (T, D) f32
        hT = _gelu(jnp.dot(wt1t, y.astype(jnp.bfloat16),
                           preferred_element_type=jnp.float32) + bt1)    # (Td, D) f32
        zT = jnp.dot(wt2t, hT.astype(jnp.bfloat16),
                     preferred_element_type=jnp.float32) + bt2           # (T, D) f32
        x = x + zT

        # --- channel mixing: x + mlp_channels(norm2(x)) ---
        y = _layernorm(x, g2, b2)                                        # (T, D) f32
        h = _gelu(jnp.dot(y.astype(jnp.bfloat16), wc1,
                          preferred_element_type=jnp.float32) + bc1)     # (T, Dc) f32
        z = jnp.dot(h.astype(jnp.bfloat16), wc2,
                    preferred_element_type=jnp.float32) + bc2            # (T, D) f32
        o_ref[b] = x + z


def head_kernel(x_ref, g_ref, b_ref, w_ref, bh_ref, o_ref):
    """Final LayerNorm -> global average pool over tokens -> classifier head (f32, tiny)."""
    x = _layernorm(x_ref[...], g_ref[...], b_ref[...])     # (B, T, D)
    pooled = jnp.mean(x, axis=1)                           # (B, D)
    o_ref[...] = (jnp.dot(pooled, w_ref[...],
                          preferred_element_type=jnp.float32) + bh_ref[...])


# ------------------------------ wrappers -----------------------------------

def pallas_stem(patches, w, b):
    M, K = patches.shape
    N = w.shape[1]
    return pl.pallas_call(
        stem_kernel,
        out_shape=jax.ShapeDtypeStruct((M, N), jnp.float32),
        grid=(1,),
        in_specs=[pl.BlockSpec((M, K), lambda i: (0, 0)),
                  pl.BlockSpec((K, N), lambda i: (0, 0)),
                  pl.BlockSpec((1, N), lambda i: (0, 0))],
        out_specs=pl.BlockSpec((M, N), lambda i: (0, 0)),
        compiler_params=_CPARAMS,
    )(patches, w.astype(jnp.bfloat16), b.reshape(1, N))


def pallas_mixer_blocks(x, bp):
    """x: (B, T, D) f32; bp: dict of stacked per-block params (leading axis = block)."""
    B, T, D = x.shape
    nb, Td = bp['wt1T'].shape[0], bp['wt1T'].shape[1]
    Dc = bp['wc1'].shape[2]

    args = [
        x,
        bp['g1'], bp['b1'],
        bp['wt1T'].astype(jnp.bfloat16), bp['bt1'],
        bp['wt2T'].astype(jnp.bfloat16), bp['bt2'],
        bp['g2'], bp['b2'],
        bp['wc1'].astype(jnp.bfloat16), bp['bc1'],
        bp['wc2'].astype(jnp.bfloat16), bp['bc2'],
    ]
    in_specs = [pl.BlockSpec((B, T, D), lambda i: (0, 0, 0))]
    for a in args[1:]:
        in_specs.append(pl.BlockSpec((1,) + a.shape[1:], lambda i: (i, 0, 0)))

    weight_bytes = sum(int(a.size) * a.dtype.itemsize for a in args[1:])
    act_bytes = 2 * int(x.size) * 4                       # read + write of the slab
    flops = 4 * nb * B * T * D * (Td + Dc)                # 2 matmuls per MLP, 2 MLPs
    transcendentals = nb * B * (Td * D + T * Dc)          # erf per GELU element

    # NOTE(v7x): the block axis is sequential, so the second TensorCore idles
    # for the mixer body; a batch-parallel leading axis would double weight DMA
    # on single-TC v5e/v6e, so we keep the single 'arbitrary' block axis.
    return pl.pallas_call(
        mixer_blocks_kernel,
        out_shape=jax.ShapeDtypeStruct((B, T, D), jnp.float32),
        grid=(nb,),
        in_specs=in_specs,
        out_specs=pl.BlockSpec((B, T, D), lambda i: (0, 0, 0)),
        compiler_params=pltpu.CompilerParams(
            dimension_semantics=("arbitrary",),
            vmem_limit_bytes=48 << 20),
        cost_estimate=pl.CostEstimate(flops=flops,
                                      transcendentals=transcendentals,
                                      bytes_accessed=weight_bytes + act_bytes),
    )(*args)


def pallas_head(x, g, b, w, bh):
    B, T, D = x.shape
    C = w.shape[1]
    return pl.pallas_call(
        head_kernel,
        out_shape=jax.ShapeDtypeStruct((B, C), jnp.float32),
        grid=(1,),
        in_specs=[pl.BlockSpec((B, T, D), lambda i: (0, 0, 0)),
                  pl.BlockSpec((1, D), lambda i: (0, 0)),
                  pl.BlockSpec((1, D), lambda i: (0, 0)),
                  pl.BlockSpec((D, C), lambda i: (0, 0)),
                  pl.BlockSpec((1, C), lambda i: (0, 0))],
        out_specs=pl.BlockSpec((B, C), lambda i: (0, 0)),
        compiler_params=_CPARAMS,
    )(x, g.reshape(1, D), b.reshape(1, D), w, bh.reshape(1, C))


# --------------------------- parameters / model -----------------------------

def init_params(key, *, in_chans=3, img=224, patch=16, dim=512, blocks=8,
                tokens_ratio=0.5, channels_ratio=4.0, num_classes=10):
    """Deterministic synthetic init matching mixer_s16_224 shapes.

    Per-block params are stacked along a leading 'block' axis; token-mixing
    weights are stored pre-transposed (wt1T: (Td,T), wt2T: (T,Td)) so the
    kernel needs no in-kernel transposes.
    """
    T = (img // patch) ** 2
    Td = int(tokens_ratio * dim)
    Dc = int(channels_ratio * dim)

    def nrm(k, shape, std=0.02):
        return (std * jax.random.normal(k, shape)).astype(jnp.float32)

    ks = jax.random.split(key, 6)
    return {
        # Conv2d(in_chans, dim, kernel=patch, stride=patch) as a matmul:
        # weight flattened in (C_in, kh, kw) order -> (C_in*patch*patch, dim)
        'stem_w': nrm(ks[0], (in_chans * patch * patch, dim)),
        'stem_b': jnp.zeros((dim,), jnp.float32),
        'norm_g': jnp.ones((dim,), jnp.float32),
        'norm_b': jnp.zeros((dim,), jnp.float32),
        'head_w': nrm(ks[1], (dim, num_classes)),
        'head_b': jnp.zeros((num_classes,), jnp.float32),
        'blocks': {
            'g1':   jnp.ones((blocks, 1, dim), jnp.float32),
            'b1':   jnp.zeros((blocks, 1, dim), jnp.float32),
            'wt1T': nrm(ks[2], (blocks, Td, T)),          # = wt1.T per block
            'bt1':  jnp.zeros((blocks, Td, 1), jnp.float32),
            'wt2T': nrm(ks[3], (blocks, T, Td)),          # = wt2.T per block
            'bt2':  jnp.zeros((blocks, T, 1), jnp.float32),
            'g2':   jnp.ones((blocks, 1, dim), jnp.float32),
            'b2':   jnp.zeros((blocks, 1, dim), jnp.float32),
            'wc1':  nrm(ks[4], (blocks, dim, Dc)),
            'bc1':  jnp.zeros((blocks, 1, Dc), jnp.float32),
            'wc2':  nrm(ks[5], (blocks, Dc, dim)),
            'bc2':  jnp.zeros((blocks, 1, dim), jnp.float32),
        },
    }


def mlp_forward(params, x, *, img=224, patch=16):
    """Equivalent of MLP.forward(x): resize -> MlpMixer.forward (eval mode)."""
    B, C, H, W = x.shape
    # transforms.Resize((224,224)) -- bilinear upsample, glue in plain JAX
    # (antialias only matters for downscaling; 32->224 is an upsample).
    x = jax.image.resize(x, (B, C, img, img), method='bilinear').astype(jnp.float32)

    # Patch embedding: unfold into (B*T, C*patch*patch) patches (glue), matmul in Pallas.
    hp = wp = img // patch
    patches = x.reshape(B, C, hp, patch, wp, patch)
    patches = patches.transpose(0, 2, 4, 1, 3, 5).reshape(B * hp * wp, C * patch * patch)
    tokens = pallas_stem(patches, params['stem_w'], params['stem_b'])
    tokens = tokens.reshape(B, hp * wp, -1)                 # (B, T, D)

    # All mixer blocks in one fused, block-pipelined pallas_call
    # (drop_path / dropout are identity at inference).
    tokens = pallas_mixer_blocks(tokens, params['blocks'])

    # Final norm + avg-pool + classifier head.
    return pallas_head(tokens, params['norm_g'], params['norm_b'],
                       params['head_w'], params['head_b'])


# --------------------------------- main -------------------------------------

if __name__ == "__main__":
    key = jax.random.PRNGKey(0)
    k_x, k_p = jax.random.split(key)

    # default_mlp_cfg: in_channels=3, im_dim=(32,32), resize->224, num_classes=10,
    # mixer_s16_224: patch_size=16, num_blocks=8, embed_dim=512.
    x = jax.random.normal(k_x, (2, 3, 32, 32), dtype=jnp.float32)
    params = init_params(k_p, in_chans=3, img=224, patch=16, dim=512,
                         blocks=8, num_classes=10)

    out = mlp_forward(params, x, img=224, patch=16)
    out = jax.block_until_ready(out)
    assert out.shape == (2, 10), out.shape
    print("KERNEL_OK")
</pallas_src>

<mosaic_0001>
module attributes {stable_mosaic.version = 11 : i64} {
  func.func @stem_kernel(%arg0: i32, %arg1: memref<392x768xf32, #tpu.memory_space<vmem>>, %arg2: memref<768x512xbf16, #tpu.memory_space<vmem>>, %arg3: memref<1x512xf32, #tpu.memory_space<vmem>>, %arg4: memref<392x512xf32, #tpu.memory_space<vmem>>) attributes {dimension_semantics = [#tpu.dimension_semantics<arbitrary>], iteration_bounds = array<i64: 1>, scalar_prefetch = 0 : i64, scratch_operands = 0 : i64, tpu.core_type = #tpu.core_type<tc>, window_params = [{pipeline_mode = #tpu.pipeline_mode<synchronous>, transform_indices = @transform_0, window_bounds = array<i64: 392, 768>}, {pipeline_mode = #tpu.pipeline_mode<synchronous>, transform_indices = @transform_1, window_bounds = array<i64: 768, 512>}, {pipeline_mode = #tpu.pipeline_mode<synchronous>, transform_indices = @transform_2, window_bounds = array<i64: 1, 512>}, {pipeline_mode = #tpu.pipeline_mode<synchronous>, transform_indices = @transform_3, window_bounds = array<i64: 392, 512>}]} {
    %c0 = arith.constant 0 : index
    %c0_0 = arith.constant 0 : index
    %0 = vector.load %arg1[%c0, %c0_0] : memref<392x768xf32, #tpu.memory_space<vmem>>, vector<392x768xf32>
    %1 = arith.truncf %0 : vector<392x768xf32> to vector<392x768xbf16>
    %c0_1 = arith.constant 0 : index
    %c0_2 = arith.constant 0 : index
    %2 = vector.load %arg2[%c0_1, %c0_2] : memref<768x512xbf16, #tpu.memory_space<vmem>>, vector<768x512xbf16>
    %cst = arith.constant dense<0.000000e+00> : vector<392x512xf32>
    %3 = tpu.matmul %1, %2, %cst {dimension_numbers = #tpu.dot_dimension_numbers<[1], [0], [0], [1], [0, 0, 1, 1], [], []>} : vector<392x768xbf16>, vector<768x512xbf16>, vector<392x512xf32> -> vector<392x512xf32>
    %c0_3 = arith.constant 0 : index
    %c0_4 = arith.constant 0 : index
    %4 = vector.load %arg3[%c0_3, %c0_4] : memref<1x512xf32, #tpu.memory_space<vmem>>, vector<1x512xf32>
    %5 = vector.broadcast %4 : vector<1x512xf32> to vector<392x512xf32>
    %6 = arith.addf %3, %5 : vector<392x512xf32>
    %c0_5 = arith.constant 0 : index
    %c0_6 = arith.constant 0 : index
    %7 = vector.load %arg4[%c0_5, %c0_6] : memref<392x512xf32, #tpu.memory_space<vmem>>, vector<392x512xf32>
    tpu.vector_store %arg4[%c0_5, %c0_6], %6 {strides = array<i32>} : memref<392x512xf32, #tpu.memory_space<vmem>>, vector<392x512xf32>,
    return
  }
  func.func @transform_0(%arg0: i32) -> (i32, i32) {
    %c0_i32 = arith.constant 0 : i32
    %c0_i32_0 = arith.constant 0 : i32
    %c0_i32_1 = arith.constant 0 : i32
    return %c0_i32, %c0_i32_0 : i32, i32
  }
  func.func @transform_1(%arg0: i32) -> (i32, i32) {
    %c0_i32 = arith.constant 0 : i32
    %c0_i32_0 = arith.constant 0 : i32
    %c0_i32_1 = arith.constant 0 : i32
    return %c0_i32, %c0_i32_0 : i32, i32
  }
  func.func @transform_2(%arg0: i32) -> (i32, i32) {
    %c0_i32 = arith.constant 0 : i32
    %c0_i32_0 = arith.constant 0 : i32
    %c0_i32_1 = arith.constant 0 : i32
    return %c0_i32, %c0_i32_0 : i32, i32
  }
  func.func @transform_3(%arg0: i32) -> (i32, i32) {
    %c0_i32 = arith.constant 0 : i32
    %c0_i32_0 = arith.constant 0 : i32
    %c0_i32_1 = arith.constant 0 : i32
    return %c0_i32, %c0_i32_0 : i32, i32
  }
}

</mosaic_0001>

<llo_original>
// kernel: tpu_custom_call.1
$region0: #{tpu_custom_call.1}
  #allocation0 [shape = 'u32[]', space=smem, size = 0x4, offset = 0x4, fixed_abs, tag = 'smem constant byte address 0x4 - core index']
  #allocation1 [shape = 'u32[144,128]{1,0:T(1,128)}', space=vmem, size = 0x12000, scoped, tag = 'internal scratch']
  %s0 = inlined_call_operand.hbm [shape: f32[392,768], index: 0, kind: input, shape index: {}]
  %s1 = inlined_call_operand.hbm [shape: bf16[768,512], index: 1, kind: input, shape index: {}]
  %s2 = inlined_call_operand.hbm [shape: f32[1,512], index: 2, kind: input, shape index: {}]
  %s3 = inlined_call_operand.hbm [shape: f32[392,512], index: 3, kind: output, shape index: {}]
  %s4 = sld [smem:[#allocation0]]
  $region34: #{tpu_custom_call.1} parent=0
    _
  %s6 = ssub.s32 1, %s4
  %s7 = scalar_select 0, %s6, %s4
  $region1: #{tpu_custom_call.1} parent=0
    #allocation2 [shape = 'u8[1204224]{0}', space=vmem, size = 0x126000, scoped, tag = 'input window, operand 0, single buffered']
    #allocation3 [shape = 's32[1]{0}', space=sflag, size = 0x4, scoped, tag = 'scoped memory for tpu_custom_call.1']
    #allocation4 [shape = 's32[1]{0}', space=sflag, size = 0x4, scoped, tag = 'scoped memory for tpu_custom_call.1']
    #allocation5 [shape = 'u8[786432]{0}', space=vmem, size = 0xc0000, scoped, tag = 'input window, operand 1, single buffered']
    #allocation6 [shape = 's32[1]{0}', space=sflag, size = 0x4, scoped, tag = 'scoped memory for tpu_custom_call.1']
    #allocation7 [shape = 'u8[2048]{0}', space=vmem, size = 0x800, scoped, tag = 'input window, operand 2, single buffered']
    #allocation8 [shape = 'u8[802816]{0}', space=vmem, size = 0xc4000, scoped, tag = 'output window, operand 0, single buffered']
    %8 = vsyncpa [#allocation3], 0
    %9 = vsyncpa [#allocation6], 0
    %10 = vsyncpa [#allocation4], 0
    // Predicated region
    $region2: #{tpu_custom_call.1} parent=1 // pred_check
      _
    $region3: #{tpu_custom_call.1} parent=1 // pred_check_branch
      %12 = sbr.rel (0) target = $region5
    $region4: #{tpu_custom_call.1} parent=1 // pred_region
      %s14 = ssub.s32 37632, 37632
      %15 = vsyncadd [#allocation3], %s14
      %s16 = sshll.u32 [#allocation2], 4
      %s17 = int_to_ptr.vmem [resolvable:$true] %s16
      %22 = dma.hbm_to_vmem [thread:$0]  %s0, 37632, %s17, [#allocation3], 768, 768, 48
    $region5: #{tpu_custom_call.1} parent=1 // pred_fallthru
      _
    // Predicated region
    $region6: #{tpu_custom_call.1} parent=1 // pred_check
      _
    $region7: #{tpu_custom_call.1} parent=1 // pred_check_branch
      %24 = sbr.rel (0) target = $region9
    $region8: #{tpu_custom_call.1} parent=1 // pred_region
      %s26 = ssub.s32 24576, 24576
      %27 = vsyncadd [#allocation6], %s26
      %s28 = sshll.u32 [#allocation5], 4
      %s29 = int_to_ptr.vmem [resolvable:$true] %s28
      %34 = dma.hbm_to_vmem [thread:$0]  %s1, 24576, %s29, [#allocation6], 256, 256, 16
    $region9: #{tpu_custom_call.1} parent=1 // pred_fallthru
      _
    // Predicated region
    $region10: #{tpu_custom_call.1} parent=1 // pred_check
      _
    $region11: #{tpu_custom_call.1} parent=1 // pred_check_branch
      %36 = sbr.rel (0) target = $region13
    $region12: #{tpu_custom_call.1} parent=1 // pred_region
      %s38 = ssub.s32 64, 64
      %39 = vsyncadd [#allocation6], %s38
      %s41 = sshll.u32 [#allocation7], 4
      %s42 = int_to_ptr.vmem [resolvable:$true] %s41
      %44 = dma.hbm_to_vmem [thread:$0]  %s2, 64, %s42, [#allocation6]
    $region13: #{tpu_custom_call.1} parent=1 // pred_fallthru
      _
    // Predicated region
    $region14: #{tpu_custom_call.1} parent=1 // pred_check
      _
    $region15: #{tpu_custom_call.1} parent=1 // pred_check_branch
      %46 = sbr.rel (0) target = $region17
    $region16: #{tpu_custom_call.1} parent=1 // pred_region
      %47 = dma.done [#allocation3], 37632
    $region17: #{tpu_custom_call.1} parent=1 // pred_fallthru
      _
    // Predicated region
    $region18: #{tpu_custom_call.1} parent=1 // pred_check
      _
    $region19: #{tpu_custom_call.1} parent=1 // pred_check_branch
      %49 = sbr.rel (0) target = $region21
    $region20: #{tpu_custom_call.1} parent=1 // pred_region
      %50 = dma.done [#allocation6], 24576
    $region21: #{tpu_custom_call.1} parent=1 // pred_fallthru
      _
    // Predicated region
    $region22: #{tpu_custom_call.1} parent=1 // pred_check
      _
    $region23: #{tpu_custom_call.1} parent=1 // pred_check_branch
      %52 = sbr.rel (0) target = $region25
    $region24: #{tpu_custom_call.1} parent=1 // pred_region
      %53 = dma.done [#allocation6], 64
    $region25: #{tpu_custom_call.1} parent=1 // pred_fallthru
      _
    %v54 = vld [vmem:[#allocation2] sm:$0xff]
    %v55 = vld [vmem:[#allocation2 + $0x8] sm:$0xff]
    %v56 = vld [vmem:[#allocation2 + $0x10] sm:$0xff]
    %v57 = vld [vmem:[#allocation2 + $0x18] sm:$0xff]
    %v58 = vld [vmem:[#allocation2 + $0x20] sm:$0xff]
    %v59 = vld [vmem:[#allocation2 + $0x28] sm:$0xff]
    %v60 = vld [vmem:[#allocation2 + $0x30] sm:$0xff]
    %v61 = vld [vmem:[#allocation2 + $0x38] sm:$0xff]
    %v62 = vld [vmem:[#allocation2 + $0x40] sm:$0xff]
    %v63 = vld [vmem:[#allocation2 + $0x48] sm:$0xff]
    %v64 = vld [vmem:[#allocation2 + $0x50] sm:$0xff]
    %v65 = vld [vmem:[#allocation2 + $0x58] sm:$0xff]
    %v66 = vld [vmem:[#allocation2 + $0x60] sm:$0xff]
    %v67 = vld [vmem:[#allocation2 + $0x68] sm:$0xff]
    %v68 = vld [vmem:[#allocation2 + $0x70] sm:$0xff]
    %v69 = vld [vmem:[#allocation2 + $0x78] sm:$0xff]
    %v70 = vld [vmem:[#allocation2 + $0x80] sm:$0xff]
    %v71 = vld [vmem:[#allocation2 + $0x88] sm:$0xff]
    %v72 = vld [vmem:[#allocation2 + $0x90] sm:$0xff]
    %v73 = vld [vmem:[#allocation2 + $0x98] sm:$0xff]
    %v74 = vld [vmem:[#allocation2 + $0xa0] sm:$0xff]
    %v75 = vld [vmem:[#allocation2 + $0xa8] sm:$0xff]
    %v76 = vld [vmem:[#allocation2 + $0xb0] sm:$0xff]
    %v77 = vld [vmem:[#allocation2 + $0xb8] sm:$0xff]
    %v78 = vld [vmem:[#allocation2 + $0xc0] sm:$0xff]
    %v79 = vld [vmem:[#allocation2 + $0xc8] sm:$0xff]
    %v80 = vld [vmem:[#allocation2 + $0xd0] sm:$0xff]
    %v81 = vld [vmem:[#allocation2 + $0xd8] sm:$0xff]
    %v82 = vld [vmem:[#allocation2 + $0xe0] sm:$0xff]
    %v83 = vld [vmem:[#allocation2 + $0xe8] sm:$0xff]
    %v84 = vld [vmem:[#allocation2 + $0xf0] sm:$0xff]
    %v85 = vld [vmem:[#allocation2 + $0xf8] sm:$0xff]
    %v86 = vld [vmem:[#allocation2 + $0x100] sm:$0xff]
    %v87 = vld [vmem:[#allocation2 + $0x108] sm:$0xff]
    %v88 = vld [vmem:[#allocation2 + $0x110] sm:$0xff]
    %v89 = vld [vmem:[#allocation2 + $0x118] sm:$0xff]
    %v90 = vld [vmem:[#allocation2 + $0x120] sm:$0xff]
    %v91 = vld [vmem:[#allocation2 + $0x128] sm:$0xff]
    %v92 = vld [vmem:[#allocation2 + $0x130] sm:$0xff]
    %v93 = vld [vmem:[#allocation2 + $0x138] sm:$0xff]
    %v94 = vld [vmem:[#allocation2 + $0x140] sm:$0xff]
    %v95 = vld [vmem:[#allocation2 + $0x148] sm:$0xff]
    %v96 = vld [vmem:[#allocation2 + $0x150] sm:$0xff]
    %v97 = vld [vmem:[#allocation2 + $0x158] sm:$0xff]
    %v98 = vld [vmem:[#allocation2 + $0x160] sm:$0xff]
    %v99 = vld [vmem:[#allocation2 + $0x168] sm:$0xff]
    %v100 = vld [vmem:[#allocation2 + $0x170] sm:$0xff]
    %v101 = vld [vmem:[#allocation2 + $0x178] sm:$0xff]
    %v102 = vld [vmem:[#allocation2 + $0x180] sm:$0xff]
    %v103 = vld [vmem:[#allocation2 + $0x188] sm:$0xff]
    %v104 = vld [vmem:[#allocation2 + $0x190] sm:$0xff]
    %v105 = vld [vmem:[#allocation2 + $0x198] sm:$0xff]
    %v106 = vld [vmem:[#allocation2 + $0x1a0] sm:$0xff]
    %v107 = vld [vmem:[#allocation2 + $0x1a8] sm:$0xff]
    %v108 = vld [vmem:[#allocation2 + $0x1b0] sm:$0xff]
    %v109 = vld [vmem:[#allocation2 + $0x1b8] sm:$0xff]
    %v110 = vld [vmem:[#allocation2 + $0x1c0] sm:$0xff]
    %v111 = vld [vmem:[#allocation2 + $0x1c8] sm:$0xff]
    %v112 = vld [vmem:[#allocation2 + $0x1d0] sm:$0xff]
    %v113 = vld [vmem:[#allocation2 + $0x1d8] sm:$0xff]
    %v114 = vld [vmem:[#allocation2 + $0x1e0] sm:$0xff]
    %v115 = vld [vmem:[#allocation2 + $0x1e8] sm:$0xff]
    %v116 = vld [vmem:[#allocation2 + $0x1f0] sm:$0xff]
    %v117 = vld [vmem:[#allocation2 + $0x1f8] sm:$0xff]
    %v118 = vld [vmem:[#allocation2 + $0x200] sm:$0xff]
    %v119 = vld [vmem:[#allocation2 + $0x208] sm:$0xff]
    %v120 = vld [vmem:[#allocation2 + $0x210] sm:$0xff]
    %v121 = vld [vmem:[#allocation2 + $0x218] sm:$0xff]
    %v122 = vld [vmem:[#allocation2 + $0x220] sm:$0xff]
    %v123 = vld [vmem:[#allocation2 + $0x228] sm:$0xff]
    %v124 = vld [vmem:[#allocation2 + $0x230] sm:$0xff]
    %v125 = vld [vmem:[#allocation2 + $0x238] sm:$0xff]
    %v126 = vld [vmem:[#allocation2 + $0x240] sm:$0xff]
    %v127 = vld [vmem:[#allocation2 + $0x248] sm:$0xff]
    %v128 = vld [vmem:[#allocation2 + $0x250] sm:$0xff]
    %v129 = vld [vmem:[#allocation2 + $0x258] sm:$0xff]
    %v130 = vld [vmem:[#allocation2 + $0x260] sm:$0xff]
    %v131 = vld [vmem:[#allocation2 + $0x268] sm:$0xff]
    %v132 = vld [vmem:[#allocation2 + $0x270] sm:$0xff]
    %v133 = vld [vmem:[#allocation2 + $0x278] sm:$0xff]
    %v134 = vld [vmem:[#allocation2 + $0x280] sm:$0xff]
    %v135 = vld [vmem:[#allocation2 + $0x288] sm:$0xff]
    %v136 = vld [vmem:[#allocation2 + $0x290] sm:$0xff]
    %v137 = vld [vmem:[#allocation2 + $0x298] sm:$0xff]
    %v138 = vld [vmem:[#allocation2 + $0x2a0] sm:$0xff]
    %v139 = vld [vmem:[#allocation2 + $0x2a8] sm:$0xff]
    %v140 = vld [vmem:[#allocation2 + $0x2b0] sm:$0xff]
    %v141 = vld [vmem:[#allocation2 + $0x2b8] sm:$0xff]
    %v142 = vld [vmem:[#allocation2 + $0x2c0] sm:$0xff]
    %v143 = vld [vmem:[#allocation2 + $0x2c8] sm:$0xff]
    %v144 = vld [vmem:[#allocation2 + $0x2d0] sm:$0xff]
    %v145 = vld [vmem:[#allocation2 + $0x2d8] sm:$0xff]
    %v146 = vld [vmem:[#allocation2 + $0x2e0] sm:$0xff]
    %v147 = vld [vmem:[#allocation2 + $0x2e8] sm:$0xff]
    %v148 = vld [vmem:[#allocation2 + $0x2f0] sm:$0xff]
    %v149 = vld [vmem:[#allocation2 + $0x2f8] sm:$0xff]
    %v150 = vld [vmem:[#allocation2 + $0x300] sm:$0xff]
    %v151 = vld [vmem:[#allocation2 + $0x308] sm:$0xff]
    %v152 = vld [vmem:[#allocation2 + $0x310] sm:$0xff]
    %v153 = vld [vmem:[#allocation2 + $0x318] sm:$0xff]
    %v154 = vld [vmem:[#allocation2 + $0x320] sm:$0xff]
    %v155 = vld [vmem:[#allocation2 + $0x328] sm:$0xff]
    %v156 = vld [vmem:[#allocation2 + $0x330] sm:$0xff]
    %v157 = vld [vmem:[#allocation2 + $0x338] sm:$0xff]
    %v158 = vld [vmem:[#allocation2 + $0x340] sm:$0xff]
    %v159 = vld [vmem:[#allocation2 + $0x348] sm:$0xff]
    %v160 = vld [vmem:[#allocation2 + $0x350] sm:$0xff]
    %v161 = vld [vmem:[#allocation2 + $0x358] sm:$0xff]
    %v162 = vld [vmem:[#allocation2 + $0x360] sm:$0xff]
    %v163 = vld [vmem:[#allocation2 + $0x368] sm:$0xff]
    %v164 = vld [vmem:[#allocation2 + $0x370] sm:$0xff]
    %v165 = vld [vmem:[#allocation2 + $0x378] sm:$0xff]
    %v166 = vld [vmem:[#allocation2 + $0x380] sm:$0xff]
    %v167 = vld [vmem:[#allocation2 + $0x388] sm:$0xff]
    %v168 = vld [vmem:[#allocation2 + $0x390] sm:$0xff]
    %v169 = vld [vmem:[#allocation2 + $0x398] sm:$0xff]
    %v170 = vld [vmem:[#allocation2 + $0x3a0] sm:$0xff]
    %v171 = vld [vmem:[#allocation2 + $0x3a8] sm:$0xff]
    %v172 = vld [vmem:[#allocation2 + $0x3b0] sm:$0xff]
    %v173 = vld [vmem:[#allocation2 + $0x3b8] sm:$0xff]
    %v174 = vld [vmem:[#allocation2 + $0x3c0] sm:$0xff]
    %v175 = vld [vmem:[#allocation2 + $0x3c8] sm:$0xff]
    %v176 = vld [vmem:[#allocation2 + $0x3d0] sm:$0xff]
    %v177 = vld [vmem:[#allocation2 + $0x3d8] sm:$0xff]
    %v178 = vld [vmem:[#allocation2 + $0x3e0] sm:$0xff]
    %v179 = vld [vmem:[#allocation2 + $0x3e8] sm:$0xff]
    %v180 = vld [vmem:[#allocation2 + $0x3f0] sm:$0xff]
    %v181 = vld [vmem:[#allocation2 + $0x3f8] sm:$0xff]
    %v182 = vld [vmem:[#allocation2 + $0x400] sm:$0xff]
    %v183 = vld [vmem:[#allocation2 + $0x408] sm:$0xff]
    %v184 = vld [vmem:[#allocation2 + $0x410] sm:$0xff]
    %v185 = vld [vmem:[#allocation2 + $0x418] sm:$0xff]
    %v186 = vld [vmem:[#allocation2 + $0x420] sm:$0xff]
    %v187 = vld [vmem:[#allocation2 + $0x428] sm:$0xff]
    %v188 = vld [vmem:[#allocation2 + $0x430] sm:$0xff]
    %v189 = vld [vmem:[#allocation2 + $0x438] sm:$0xff]
    %v190 = vld [vmem:[#allocation2 + $0x440] sm:$0xff]
    %v191 = vld [vmem:[#allocation2 + $0x448] sm:$0xff]
    %v192 = vld [vmem:[#allocation2 + $0x450] sm:$0xff]
    %v193 = vld [vmem:[#allocation2 + $0x458] sm:$0xff]
    %v194 = vld [vmem:[#allocation2 + $0x460] sm:$0xff]
    %v195 = vld [vmem:[#allocation2 + $0x468] sm:$0xff]
    %v196 = vld [vmem:[#allocation2 + $0x470] sm:$0xff]
    %v197 = vld [vmem:[#allocation2 + $0x478] sm:$0xff]
    %v198 = vld [vmem:[#allocation2 + $0x480] sm:$0xff]
    %v199 = vld [vmem:[#allocation2 + $0x488] sm:$0xff]
    %v200 = vld [vmem:[#allocation2 + $0x490] sm:$0xff]
    %v201 = vld [vmem:[#allocation2 + $0x498] sm:$0xff]
    %v202 = vld [vmem:[#allocation2 + $0x4a0] sm:$0xff]
    %v203 = vld [vmem:[#allocation2 + $0x4a8] sm:$0xff]
    %v204 = vld [vmem:[#allocation2 + $0x4b0] sm:$0xff]
    %v205 = vld [vmem:[#allocation2 + $0x4b8] sm:$0xff]
    %v206 = vld [vmem:[#allocation2 + $0x4c0] sm:$0xff]
    %v207 = vld [vmem:[#allocation2 + $0x4c8] sm:$0xff]
    %v208 = vld [vmem:[#allocation2 + $0x4d0] sm:$0xff]
    %v209 = vld [vmem:[#allocation2 + $0x4d8] sm:$0xff]
    %v210 = vld [vmem:[#allocation2 + $0x4e0] sm:$0xff]
    %v211 = vld [vmem:[#allocation2 + $0x4e8] sm:$0xff]
    %v212 = vld [vmem:[#allocation2 + $0x4f0] sm:$0xff]
    %v213 = vld [vmem:[#allocation2 + $0x4f8] sm:$0xff]
    %v214 = vld [vmem:[#allocation2 + $0x500] sm:$0xff]
    %v215 = vld [vmem:[#allocation2 + $0x508] sm:$0xff]
    %v216 = vld [vmem:[#allocation2 + $0x510] sm:$0xff]
    %v217 = vld [vmem:[#allocation2 + $0x518] sm:$0xff]
    %v218 = vld [vmem:[#allocation2 + $0x520] sm:$0xff]
    %v219 = vld [vmem:[#allocation2 + $0x528] sm:$0xff]
    %v220 = vld [vmem:[#allocation2 + $0x530] sm:$0xff]
    %v221 = vld [vmem:[#allocation2 + $0x538] sm:$0xff]
    %v222 = vld [vmem:[#allocation2 + $0x540] sm:$0xff]
    %v223 = vld [vmem:[#allocation2 + $0x548] sm:$0xff]
    %v224 = vld [vmem:[#allocation2 + $0x550] sm:$0xff]
    %v225 = vld [vmem:[#allocation2 + $0x558] sm:$0xff]
    %v226 = vld [vmem:[#allocation2 + $0x560] sm:$0xff]
    %v227 = vld [vmem:[#allocation2 + $0x568] sm:$0xff]
    %v228 = vld [vmem:[#allocation2 + $0x570] sm:$0xff]
    %v229 = vld [vmem:[#allocation2 + $0x578] sm:$0xff]
    %v230 = vld [vmem:[#allocation2 + $0x580] sm:$0xff]
    %v231 = vld [vmem:[#allocation2 + $0x588] sm:$0xff]
    %v232 = vld [vmem:[#allocation2 + $0x590] sm:$0xff]
    %v233 = vld [vmem:[#allocation2 + $0x598] sm:$0xff]
    %v234 = vld [vmem:[#allocation2 + $0x5a0] sm:$0xff]
    %v235 = vld [vmem:[#allocation2 + $0x5a8] sm:$0xff]
    %v236 = vld [vmem:[#allocation2 + $0x5b0] sm:$0xff]
    %v237 = vld [vmem:[#allocation2 + $0x5b8] sm:$0xff]
    %v238 = vld [vmem:[#allocation2 + $0x5c0] sm:$0xff]
    %v239 = vld [vmem:[#allocation2 + $0x5c8] sm:$0xff]
    %v240 = vld [vmem:[#allocation2 + $0x5d0] sm:$0xff]
    %v241 = vld [vmem:[#allocation2 + $0x5d8] sm:$0xff]
    %v242 = vld [vmem:[#allocation2 + $0x5e0] sm:$0xff]
    %v243 = vld [vmem:[#allocation2 + $0x5e8] sm:$0xff]
    %v244 = vld [vmem:[#allocation2 + $0x5f0] sm:$0xff]
    %v245 = vld [vmem:[#allocation2 + $0x5f8] sm:$0xff]
    %v246 = vld [vmem:[#allocation2 + $0x600] sm:$0xff]
    %v247 = vld [vmem:[#allocation2 + $0x608] sm:$0xff]
    %v248 = vld [vmem:[#allocation2 + $0x610] sm:$0xff]
    %v249 = vld [vmem:[#allocation2 + $0x618] sm:$0xff]
    %v250 = vld [vmem:[#allocation2 + $0x620] sm:$0xff]
    %v251 = vld [vmem:[#allocation2 + $0x628] sm:$0xff]
    %v252 = vld [vmem:[#allocation2 + $0x630] sm:$0xff]
    %v253 = vld [vmem:[#allocation2 + $0x638] sm:$0xff]
    %v254 = vld [vmem:[#allocation2 + $0x640] sm:$0xff]
    %v255 = vld [vmem:[#allocation2 + $0x648] sm:$0xff]
    %v256 = vld [vmem:[#allocation2 + $0x650] sm:$0xff]
    %v257 = vld [vmem:[#allocation2 + $0x658] sm:$0xff]
    %v258 = vld [vmem:[#allocation2 + $0x660] sm:$0xff]
    %v259 = vld [vmem:[#allocation2 + $0x668] sm:$0xff]
    %v260 = vld [vmem:[#allocation2 + $0x670] sm:$0xff]
    %v261 = vld [vmem:[#allocation2 + $0x678] sm:$0xff]
    %v262 = vld [vmem:[#allocation2 + $0x680] sm:$0xff]
    %v263 = vld [vmem:[#allocation2 + $0x688] sm:$0xff]
    %v264 = vld [vmem:[#allocation2 + $0x690] sm:$0xff]
    %v265 = vld [vmem:[#allocation2 + $0x698] sm:$0xff]
    %v266 = vld [vmem:[#allocation2 + $0x6a0] sm:$0xff]
    %v267 = vld [vmem:[#allocation2 + $0x6a8] sm:$0xff]
    %v268 = vld [vmem:[#allocation2 + $0x6b0] sm:$0xff]
    %v269 = vld [vmem:[#allocation2 + $0x6b8] sm:$0xff]
    %v270 = vld [vmem:[#allocation2 + $0x6c0] sm:$0xff]
    %v271 = vld [vmem:[#allocation2 + $0x6c8] sm:$0xff]
    %v272 = vld [vmem:[#allocation2 + $0x6d0] sm:$0xff]
    %v273 = vld [vmem:[#allocation2 + $0x6d8] sm:$0xff]
    %v274 = vld [vmem:[#allocation2 + $0x6e0] sm:$0xff]
    %v275 = vld [vmem:[#allocation2 + $0x6e8] sm:$0xff]
    %v276 = vld [vmem:[#allocation2 + $0x6f0] sm:$0xff]
    %v277 = vld [vmem:[#allocation2 + $0x6f8] sm:$0xff]
    %v278 = vld [vmem:[#allocation2 + $0x700] sm:$0xff]
    %v279 = vld [vmem:[#allocation2 + $0x708] sm:$0xff]
    %v280 = vld [vmem:[#allocation2 + $0x710] sm:$0xff]
    %v281 = vld [vmem:[#allocation2 + $0x718] sm:$0xff]
    %v282 = vld [vmem:[#allocation2 + $0x720] sm:$0xff]
    %v283 = vld [vmem:[#allocation2 + $0x728] sm:$0xff]
    %v284 = vld [vmem:[#allocation2 + $0x730] sm:$0xff]
    %v285 = vld [vmem:[#allocation2 + $0x738] sm:$0xff]
    %v286 = vld [vmem:[#allocation2 + $0x740] sm:$0xff]
    %v287 = vld [vmem:[#allocation2 + $0x748] sm:$0xff]
    %v288 = vld [vmem:[#allocation2 + $0x750] sm:$0xff]
    %v289 = vld [vmem:[#allocation2 + $0x758] sm:$0xff]
    %v290 = vld [vmem:[#allocation2 + $0x760] sm:$0xff]
    %v291 = vld [vmem:[#allocation2 + $0x768] sm:$0xff]
    %v292 = vld [vmem:[#allocation2 + $0x770] sm:$0xff]
    %v293 = vld [vmem:[#allocation2 + $0x778] sm:$0xff]
    %v294 = vld [vmem:[#allocation2 + $0x780] sm:$0xff]
    %v295 = vld [vmem:[#allocation2 + $0x788] sm:$0xff]
    %v296 = vld [vmem:[#allocation2 + $0x790] sm:$0xff]
    %v297 = vld [vmem:[#allocation2 + $0x798] sm:$0xff]
    %v298 = vld [vmem:[#allocation2 + $0x7a0] sm:$0xff]
    %v299 = vld [vmem:[#allocation2 + $0x7a8] sm:$0xff]
    %v300 = vld [vmem:[#allocation2 + $0x7b0] sm:$0xff]
    %v301 = vld [vmem:[#allocation2 + $0x7b8] sm:$0xff]
    %v302 = vld [vmem:[#allocation2 + $0x7c0] sm:$0xff]
    %v303 = vld [vmem:[#allocation2 + $0x7c8] sm:$0xff]
    %v304 = vld [vmem:[#allocation2 + $0x7d0] sm:$0xff]
    %v305 = vld [vmem:[#allocation2 + $0x7d8] sm:$0xff]
    %v306 = vld [vmem:[#allocation2 + $0x7e0] sm:$0xff]
    %v307 = vld [vmem:[#allocation2 + $0x7e8] sm:$0xff]
    %v308 = vld [vmem:[#allocation2 + $0x7f0] sm:$0xff]
    %v309 = vld [vmem:[#allocation2 + $0x7f8] sm:$0xff]
    %v310 = vld [vmem:[#allocation2 + $0x800] sm:$0xff]
    %v311 = vld [vmem:[#allocation2 + $0x808] sm:$0xff]
    %v312 = vld [vmem:[#allocation2 + $0x810] sm:$0xff]
    %v313 = vld [vmem:[#allocation2 + $0x818] sm:$0xff]
    %v314 = vld [vmem:[#allocation2 + $0x820] sm:$0xff]
    %v315 = vld [vmem:[#allocation2 + $0x828] sm:$0xff]
    %v316 = vld [vmem:[#allocation2 + $0x830] sm:$0xff]
    %v317 = vld [vmem:[#allocation2 + $0x838] sm:$0xff]
    %v318 = vld [vmem:[#allocation2 + $0x840] sm:$0xff]
    %v319 = vld [vmem:[#allocation2 + $0x848] sm:$0xff]
    %v320 = vld [vmem:[#allocation2 + $0x850] sm:$0xff]
    %v321 = vld [vmem:[#allocation2 + $0x858] sm:$0xff]
    %v322 = vld [vmem:[#allocation2 + $0x860] sm:$0xff]
    %v323 = vld [vmem:[#allocation2 + $0x868] sm:$0xff]
    %v324 = vld [vmem:[#allocation2 + $0x870] sm:$0xff]
    %v325 = vld [vmem:[#allocation2 + $0x878] sm:$0xff]
    %v326 = vld [vmem:[#allocation2 + $0x880] sm:$0xff]
    %v327 = vld [vmem:[#allocation2 + $0x888] sm:$0xff]
    %v328 = vld [vmem:[#allocation2 + $0x890] sm:$0xff]
    %v329 = vld [vmem:[#allocation2 + $0x898] sm:$0xff]
    %v330 = vld [vmem:[#allocation2 + $0x8a0] sm:$0xff]
    %v331 = vld [vmem:[#allocation2 + $0x8a8] sm:$0xff]
    %v332 = vld [vmem:[#allocation2 + $0x8b0] sm:$0xff]
    %v333 = vld [vmem:[#allocation2 + $0x8b8] sm:$0xff]
    %v334 = vld [vmem:[#allocation2 + $0x8c0] sm:$0xff]
    %v335 = vld [vmem:[#allocation2 + $0x8c8] sm:$0xff]
    %v336 = vld [vmem:[#allocation2 + $0x8d0] sm:$0xff]
    %v337 = vld [vmem:[#allocation2 + $0x8d8] sm:$0xff]
    %v338 = vld [vmem:[#allocation2 + $0x8e0] sm:$0xff]
    %v339 = vld [vmem:[#allocation2 + $0x8e8] sm:$0xff]
    %v340 = vld [vmem:[#allocation2 + $0x8f0] sm:$0xff]
    %v341 = vld [vmem:[#allocation2 + $0x8f8] sm:$0xff]
    %v342 = vld [vmem:[#allocation2 + $0x900] sm:$0xff]
    %v343 = vld [vmem:[#allocation2 + $0x908] sm:$0xff]
    %v344 = vld [vmem:[#allocation2 + $0x910] sm:$0xff]
    %v345 = vld [vmem:[#allocation2 + $0x918] sm:$0xff]
    %v346 = vld [vmem:[#allocation2 + $0x920] sm:$0xff]
    %v347 = vld [vmem:[#allocation2 + $0x928] sm:$0xff]
    %v348 = vpack.c.bf16 %v60, %v54
    %v349 = vpack.c.bf16 %v61, %v55
    %v350 = vpack.c.bf16 %v62, %v56
    %v351 = vpack.c.bf16 %v63, %v57
    %v352 = vpack.c.bf16 %v64, %v58
    %v353 = vpack.c.bf16 %v65, %v59
    %v354 = vpack.c.bf16 %v72, %v66
    %v355 = vpack.c.bf16 %v73, %v67
    %v356 = vpack.c.bf16 %v74, %v68
    %v357 = vpack.c.bf16 %v75, %v69
    %v358 = vpack.c.bf16 %v76, %v70
    %v359 = vpack.c.bf16 %v77, %v71
    %v360 = vpack.c.bf16 %v84, %v78
    %v361 = vpack.c.bf16 %v85, %v79
    %v362 = vpack.c.bf16 %v86, %v80
    %v363 = vpack.c.bf16 %v87, %v81
    %v364 = vpack.c.bf16 %v88, %v82
    %v365 = vpack.c.bf16 %v89, %v83
    %v366 = vpack.c.bf16 %v96, %v90
    %v367 = vpack.c.bf16 %v97, %v91
    %v368 = vpack.c.bf16 %v98, %v92
    %v369 = vpack.c.bf16 %v99, %v93
    %v370 = vpack.c.bf16 %v100, %v94
    %v371 = vpack.c.bf16 %v101, %v95
    %v372 = vpack.c.bf16 %v108, %v102
    %v373 = vpack.c.bf16 %v109, %v103
    %v374 = vpack.c.bf16 %v110, %v104
    %v375 = vpack.c.bf16 %v111, %v105
    %v376 = vpack.c.bf16 %v112, %v106
    %v377 = vpack.c.bf16 %v113, %v107
    %v378 = vpack.c.bf16 %v120, %v114
    %v379 = vpack.c.bf16 %v121, %v115
    %v380 = vpack.c.bf16 %v122, %v116
    %v381 = vpack.c.bf16 %v123, %v117
    %v382 = vpack.c.bf16 %v124, %v118
    %v383 = vpack.c.bf16 %v125, %v119
    %v384 = vpack.c.bf16 %v132, %v126
    %v385 = vpack.c.bf16 %v133, %v127
    %v386 = vpack.c.bf16 %v134, %v128
    %v387 = vpack.c.bf16 %v135, %v129
    %v388 = vpack.c.bf16 %v136, %v130
    %v389 = vpack.c.bf16 %v137, %v131
    %v390 = vpack.c.bf16 %v144, %v138
    %v391 = vpack.c.bf16 %v145, %v139
    %v392 = vpack.c.bf16 %v146, %v140
    %v393 = vpack.c.bf16 %v147, %v141
    %v394 = vpack.c.bf16 %v148, %v142
    %v395 = vpack.c.bf16 %v149, %v143
    %v396 = vpack.c.bf16 %v156, %v150
    %v397 = vpack.c.bf16 %v157, %v151
    %v398 = vpack.c.bf16 %v158, %v152
    %v399 = vpack.c.bf16 %v159, %v153
    %v400 = vpack.c.bf16 %v160, %v154
    %v401 = vpack.c.bf16 %v161, %v155
    %v402 = vpack.c.bf16 %v168, %v162
    %v403 = vpack.c.bf16 %v169, %v163
    %v404 = vpack.c.bf16 %v170, %v164
    %v405 = vpack.c.bf16 %v171, %v165
    %v406 = vpack.c.bf16 %v172, %v166
    %v407 = vpack.c.bf16 %v173, %v167
    %v408 = vpack.c.bf16 %v180, %v174
    %v409 = vpack.c.bf16 %v181, %v175
    %v410 = vpack.c.bf16 %v182, %v176
    %v411 = vpack.c.bf16 %v183, %v177
    %v412 = vpack.c.bf16 %v184, %v178
    %v413 = vpack.c.bf16 %v185, %v179
    %v414 = vpack.c.bf16 %v192, %v186
    %v415 = vpack.c.bf16 %v193, %v187
    %v416 = vpack.c.bf16 %v194, %v188
    %v417 = vpack.c.bf16 %v195, %v189
    %v418 = vpack.c.bf16 %v196, %v190
    %v419 = vpack.c.bf16 %v197, %v191
    %v420 = vpack.c.bf16 %v204, %v198
    %v421 = vpack.c.bf16 %v205, %v199
    %v422 = vpack.c.bf16 %v206, %v200
    %v423 = vpack.c.bf16 %v207, %v201
    %v424 = vpack.c.bf16 %v208, %v202
    %v425 = vpack.c.bf16 %v209, %v203
    %v426 = vpack.c.bf16 %v216, %v210
    %v427 = vpack.c.bf16 %v217, %v211
    %v428 = vpack.c.bf16 %v218, %v212
    %v429 = vpack.c.bf16 %v219, %v213
    %v430 = vpack.c.bf16 %v220, %v214
    %v431 = vpack.c.bf16 %v221, %v215
    %v432 = vpack.c.bf16 %v228, %v222
    %v433 = vpack.c.bf16 %v229, %v223
    %v434 = vpack.c.bf16 %v230, %v224
    %v435 = vpack.c.bf16 %v231, %v225
    %v436 = vpack.c.bf16 %v232, %v226
    %v437 = vpack.c.bf16 %v233, %v227
    %v438 = vpack.c.bf16 %v240, %v234
    %v439 = vpack.c.bf16 %v241, %v235
    %v440 = vpack.c.bf16 %v242, %v236
    %v441 = vpack.c.bf16 %v243, %v237
    %v442 = vpack.c.bf16 %v244, %v238
    %v443 = vpack.c.bf16 %v245, %v239
    %v444 = vpack.c.bf16 %v252, %v246
    %v445 = vpack.c.bf16 %v253, %v247
    %v446 = vpack.c.bf16 %v254, %v248
    %v447 = vpack.c.bf16 %v255, %v249
    %v448 = vpack.c.bf16 %v256, %v250
    %v449 = vpack.c.bf16 %v257, %v251
    %v450 = vpack.c.bf16 %v264, %v258
    %v451 = vpack.c.bf16 %v265, %v259
    %v452 = vpack.c.bf16 %v266, %v260
    %v453 = vpack.c.bf16 %v267, %v261
    %v454 = vpack.c.bf16 %v268, %v262
    %v455 = vpack.c.bf16 %v269, %v263
    %v456 = vpack.c.bf16 %v276, %v270
    %v457 = vpack.c.bf16 %v277, %v271
    %v458 = vpack.c.bf16 %v278, %v272
    %v459 = vpack.c.bf16 %v279, %v273
    %v460 = vpack.c.bf16 %v280, %v274
    %v461 = vpack.c.bf16 %v281, %v275
    %v462 = vpack.c.bf16 %v288, %v282
    %v463 = vpack.c.bf16 %v289, %v283
    %v464 = vpack.c.bf16 %v290, %v284
    %v465 = vpack.c.bf16 %v291, %v285
    %v466 = vpack.c.bf16 %v292, %v286
    %v467 = vpack.c.bf16 %v293, %v287
    %v468 = vpack.c.bf16 %v300, %v294
    %v469 = vpack.c.bf16 %v301, %v295
    %v470 = vpack.c.bf16 %v302, %v296
    %v471 = vpack.c.bf16 %v303, %v297
    %v472 = vpack.c.bf16 %v304, %v298
    %v473 = vpack.c.bf16 %v305, %v299
    %v474 = vpack.c.bf16 %v312, %v306
    %v475 = vpack.c.bf16 %v313, %v307
    %v476 = vpack.c.bf16 %v314, %v308
    %v477 = vpack.c.bf16 %v315, %v309
    %v478 = vpack.c.bf16 %v316, %v310
    %v479 = vpack.c.bf16 %v317, %v311
    %v480 = vpack.c.bf16 %v324, %v318
    %v481 = vpack.c.bf16 %v325, %v319
    %v482 = vpack.c.bf16 %v326, %v320
    %v483 = vpack.c.bf16 %v327, %v321
    %v484 = vpack.c.bf16 %v328, %v322
    %v485 = vpack.c.bf16 %v329, %v323
    %v486 = vpack.c.bf16 %v336, %v330
    %v487 = vpack.c.bf16 %v337, %v331
    %v488 = vpack.c.bf16 %v338, %v332
    %v489 = vpack.c.bf16 %v339, %v333
    %v490 = vpack.c.bf16 %v340, %v334
    %v491 = vpack.c.bf16 %v341, %v335
    %v492 = vpack.c.bf16 %v342, %v342
    %v493 = vpack.c.bf16 %v343, %v343
    %v494 = vpack.c.bf16 %v344, %v344
    %v495 = vpack.c.bf16 %v345, %v345
    %v496 = vpack.c.bf16 %v346, %v346
    %v497 = vpack.c.bf16 %v347, %v347
    %v498 = vld [vmem:[#allocation5] sm:$0xff]
    %v499 = vld [vmem:[#allocation5 + $0x8] sm:$0xff]
    %v500 = vld [vmem:[#allocation5 + $0x10] sm:$0xff]
    %v501 = vld [vmem:[#allocation5 + $0x18] sm:$0xff]
    %v502 = vld [vmem:[#allocation5 + $0x20] sm:$0xff]
    %v503 = vld [vmem:[#allocation5 + $0x28] sm:$0xff]
    %v504 = vld [vmem:[#allocation5 + $0x30] sm:$0xff]
    %v505 = vld [vmem:[#allocation5 + $0x38] sm:$0xff]
    %v506 = vld [vmem:[#allocation5 + $0x40] sm:$0xff]
    %v507 = vld [vmem:[#allocation5 + $0x48] sm:$0xff]
    %v508 = vld [vmem:[#allocation5 + $0x50] sm:$0xff]
    %v509 = vld [vmem:[#allocation5 + $0x58] sm:$0xff]
    %v510 = vld [vmem:[#allocation5 + $0x60] sm:$0xff]
    %v511 = vld [vmem:[#allocation5 + $0x68] sm:$0xff]
    %v512 = vld [vmem:[#allocation5 + $0x70] sm:$0xff]
    %v513 = vld [vmem:[#allocation5 + $0x78] sm:$0xff]
    %v514 = vld [vmem:[#allocation5 + $0x80] sm:$0xff]
    %v515 = vld [vmem:[#allocation5 + $0x88] sm:$0xff]
    %v516 = vld [vmem:[#allocation5 + $0x90] sm:$0xff]
    %v517 = vld [vmem:[#allocation5 + $0x98] sm:$0xff]
    %v518 = vld [vmem:[#allocation5 + $0xa0] sm:$0xff]
    %v519 = vld [vmem:[#allocation5 + $0xa8] sm:$0xff]
    %v520 = vld [vmem:[#allocation5 + $0xb0] sm:$0xff]
    %v521 = vld [vmem:[#allocation5 + $0xb8] sm:$0xff]
    %v522 = vld [vmem:[#allocation5 + $0xc0] sm:$0xff]
    %v523 = vld [vmem:[#allocation5 + $0xc8] sm:$0xff]
    %v524 = vld [vmem:[#allocation5 + $0xd0] sm:$0xff]
    %v525 = vld [vmem:[#allocation5 + $0xd8] sm:$0xff]
    %v526 = vld [vmem:[#allocation5 + $0xe0] sm:$0xff]
    %v527 = vld [vmem:[#allocation5 + $0xe8] sm:$0xff]
    %v528 = vld [vmem:[#allocation5 + $0xf0] sm:$0xff]
    %v529 = vld [vmem:[#allocation5 + $0xf8] sm:$0xff]
    %v530 = vld [vmem:[#allocation5 + $0x100] sm:$0xff]
    %v531 = vld [vmem:[#allocation5 + $0x108] sm:$0xff]
    %v532 = vld [vmem:[#allocation5 + $0x110] sm:$0xff]
    %v533 = vld [vmem:[#allocation5 + $0x118] sm:$0xff]
    %v534 = vld [vmem:[#allocation5 + $0x120] sm:$0xff]
    %v535 = vld [vmem:[#allocation5 + $0x128] sm:$0xff]
    %v536 = vld [vmem:[#allocation5 + $0x130] sm:$0xff]
    %v537 = vld [vmem:[#allocation5 + $0x138] sm:$0xff]
    %v538 = vld [vmem:[#allocation5 + $0x140] sm:$0xff]
    %v539 = vld [vmem:[#allocation5 + $0x148] sm:$0xff]
    %v540 = vld [vmem:[#allocation5 + $0x150] sm:$0xff]
    %v541 = vld [vmem:[#allocation5 + $0x158] sm:$0xff]
    %v542 = vld [vmem:[#allocation5 + $0x160] sm:$0xff]
    %v543 = vld [vmem:[#allocation5 + $0x168] sm:$0xff]
    %v544 = vld [vmem:[#allocation5 + $0x170] sm:$0xff]
    %v545 = vld [vmem:[#allocation5 + $0x178] sm:$0xff]
    %v546 = vld [vmem:[#allocation5 + $0x180] sm:$0xff]
    %v547 = vld [vmem:[#allocation5 + $0x188] sm:$0xff]
    %v548 = vld [vmem:[#allocation5 + $0x190] sm:$0xff]
    %v549 = vld [vmem:[#allocation5 + $0x198] sm:$0xff]
    %v550 = vld [vmem:[#allocation5 + $0x1a0] sm:$0xff]
    %v551 = vld [vmem:[#allocation5 + $0x1a8] sm:$0xff]
    %v552 = vld [vmem:[#allocation5 + $0x1b0] sm:$0xff]
    %v553 = vld [vmem:[#allocation5 + $0x1b8] sm:$0xff]
    %v554 = vld [vmem:[#allocation5 + $0x1c0] sm:$0xff]
    %v555 = vld [vmem:[#allocation5 + $0x1c8] sm:$0xff]
    %v556 = vld [vmem:[#allocation5 + $0x1d0] sm:$0xff]
    %v557 = vld [vmem:[#allocation5 + $0x1d8] sm:$0xff]
    %v558 = vld [vmem:[#allocation5 + $0x1e0] sm:$0xff]
    %v559 = vld [vmem:[#allocation5 + $0x1e8] sm:$0xff]
    %v560 = vld [vmem:[#allocation5 + $0x1f0] sm:$0xff]
    %v561 = vld [vmem:[#allocation5 + $0x1f8] sm:$0xff]
    %v562 = vld [vmem:[#allocation5 + $0x200] sm:$0xff]
    %v563 = vld [vmem:[#allocation5 + $0x208] sm:$0xff]
    %v564 = vld [vmem:[#allocation5 + $0x210] sm:$0xff]
    %v565 = vld [vmem:[#allocation5 + $0x218] sm:$0xff]
    %v566 = vld [vmem:[#allocation5 + $0x220] sm:$0xff]
    %v567 = vld [vmem:[#allocation5 + $0x228] sm:$0xff]
    %v568 = vld [vmem:[#allocation5 + $0x230] sm:$0xff]
    %v569 = vld [vmem:[#allocation5 + $0x238] sm:$0xff]
    %v570 = vld [vmem:[#allocation5 + $0x240] sm:$0xff]
    %v571 = vld [vmem:[#allocation5 + $0x248] sm:$0xff]
    %v572 = vld [vmem:[#allocation5 + $0x250] sm:$0xff]
    %v573 = vld [vmem:[#allocation5 + $0x258] sm:$0xff]
    %v574 = vld [vmem:[#allocation5 + $0x260] sm:$0xff]
    %v575 = vld [vmem:[#allocation5 + $0x268] sm:$0xff]
    %v576 = vld [vmem:[#allocation5 + $0x270] sm:$0xff]
    %v577 = vld [vmem:[#allocation5 + $0x278] sm:$0xff]
    %v578 = vld [vmem:[#allocation5 + $0x280] sm:$0xff]
    %v579 = vld [vmem:[#allocation5 + $0x288] sm:$0xff]
    %v580 = vld [vmem:[#allocation5 + $0x290] sm:$0xff]
    %v581 = vld [vmem:[#allocation5 + $0x298] sm:$0xff]
    %v582 = vld [vmem:[#allocation5 + $0x2a0] sm:$0xff]
    %v583 = vld [vmem:[#allocation5 + $0x2a8] sm:$0xff]
    %v584 = vld [vmem:[#allocation5 + $0x2b0] sm:$0xff]
    %v585 = vld [vmem:[#allocation5 + $0x2b8] sm:$0xff]
    %v586 = vld [vmem:[#allocation5 + $0x2c0] sm:$0xff]
    %v587 = vld [vmem:[#allocation5 + $0x2c8] sm:$0xff]
    %v588 = vld [vmem:[#allocation5 + $0x2d0] sm:$0xff]
    %v589 = vld [vmem:[#allocation5 + $0x2d8] sm:$0xff]
    %v590 = vld [vmem:[#allocation5 + $0x2e0] sm:$0xff]
    %v591 = vld [vmem:[#allocation5 + $0x2e8] sm:$0xff]
    %v592 = vld [vmem:[#allocation5 + $0x2f0] sm:$0xff]
    %v593 = vld [vmem:[#allocation5 + $0x2f8] sm:$0xff]
    %v594 = vld [vmem:[#allocation5 + $0x300] sm:$0xff]
    %v595 = vld [vmem:[#allocation5 + $0x308] sm:$0xff]
    %v596 = vld [vmem:[#allocation5 + $0x310] sm:$0xff]
    %v597 = vld [vmem:[#allocation5 + $0x318] sm:$0xff]
    %v598 = vld [vmem:[#allocation5 + $0x320] sm:$0xff]
    %v599 = vld [vmem:[#allocation5 + $0x328] sm:$0xff]
    %v600 = vld [vmem:[#allocation5 + $0x330] sm:$0xff]
    %v601 = vld [vmem:[#allocation5 + $0x338] sm:$0xff]
    %v602 = vld [vmem:[#allocation5 + $0x340] sm:$0xff]
    %v603 = vld [vmem:[#allocation5 + $0x348] sm:$0xff]
    %v604 = vld [vmem:[#allocation5 + $0x350] sm:$0xff]
    %v605 = vld [vmem:[#allocation5 + $0x358] sm:$0xff]
    %v606 = vld [vmem:[#allocation5 + $0x360] sm:$0xff]
    %v607 = vld [vmem:[#allocation5 + $0x368] sm:$0xff]
    %v608 = vld [vmem:[#allocation5 + $0x370] sm:$0xff]
    %v609 = vld [vmem:[#allocation5 + $0x378] sm:$0xff]
    %v610 = vld [vmem:[#allocation5 + $0x380] sm:$0xff]
    %v611 = vld [vmem:[#allocation5 + $0x388] sm:$0xff]
    %v612 = vld [vmem:[#allocation5 + $0x390] sm:$0xff]
    %v613 = vld [vmem:[#allocation5 + $0x398] sm:$0xff]
    %v614 = vld [vmem:[#allocation5 + $0x3a0] sm:$0xff]
    %v615 = vld [vmem:[#allocation5 + $0x3a8] sm:$0xff]
    %v616 = vld [vmem:[#allocation5 + $0x3b0] sm:$0xff]
    %v617 = vld [vmem:[#allocation5 + $0x3b8] sm:$0xff]
    %v618 = vld [vmem:[#allocation5 + $0x3c0] sm:$0xff]
    %v619 = vld [vmem:[#allocation5 + $0x3c8] sm:$0xff]
    %v620 = vld [vmem:[#allocation5 + $0x3d0] sm:$0xff]
    %v621 = vld [vmem:[#allocation5 + $0x3d8] sm:$0xff]
    %v622 = vld [vmem:[#allocation5 + $0x3e0] sm:$0xff]
    %v623 = vld [vmem:[#allocation5 + $0x3e8] sm:$0xff]
    %v624 = vld [vmem:[#allocation5 + $0x3f0] sm:$0xff]
    %v625 = vld [vmem:[#allocation5 + $0x3f8] sm:$0xff]
    %v626 = vld [vmem:[#allocation5 + $0x400] sm:$0xff]
    %v627 = vld [vmem:[#allocation5 + $0x408] sm:$0xff]
    %v628 = vld [vmem:[#allocation5 + $0x410] sm:$0xff]
    %v629 = vld [vmem:[#allocation5 + $0x418] sm:$0xff]
    %v630 = vld [vmem:[#allocation5 + $0x420] sm:$0xff]
    %v631 = vld [vmem:[#allocation5 + $0x428] sm:$0xff]
    %v632 = vld [vmem:[#allocation5 + $0x430] sm:$0xff]
    %v633 = vld [vmem:[#allocation5 + $0x438] sm:$0xff]
    %v634 = vld [vmem:[#allocation5 + $0x440] sm:$0xff]
    %v635 = vld [vmem:[#allocation5 + $0x448] sm:$0xff]
    %v636 = vld [vmem:[#allocation5 + $0x450] sm:$0xff]
    %v637 = vld [vmem:[#allocation5 + $0x458] sm:$0xff]
    %v638 = vld [vmem:[#allocation5 + $0x460] sm:$0xff]
    %v639 = vld [vmem:[#allocation5 + $0x468] sm:$0xff]
    %v640 = vld [vmem:[#allocation5 + $0x470] sm:$0xff]
    %v641 = vld [vmem:[#allocation5 + $0x478] sm:$0xff]
    %v642 = vld [vmem:[#allocation5 + $0x480] sm:$0xff]
    %v643 = vld [vmem:[#allocation5 + $0x488] sm:$0xff]
    %v644 = vld [vmem:[#allocation5 + $0x490] sm:$0xff]
    %v645 = vld [vmem:[#allocation5 + $0x498] sm:$0xff]
    %v646 = vld [vmem:[#allocation5 + $0x4a0] sm:$0xff]
    %v647 = vld [vmem:[#allocation5 + $0x4a8] sm:$0xff]
    %v648 = vld [vmem:[#allocation5 + $0x4b0] sm:$0xff]
    %v649 = vld [vmem:[#allocation5 + $0x4b8] sm:$0xff]
    %v650 = vld [vmem:[#allocation5 + $0x4c0] sm:$0xff]
    %v651 = vld [vmem:[#allocation5 + $0x4c8] sm:$0xff]
    %v652 = vld [vmem:[#allocation5 + $0x4d0] sm:$0xff]
    %v653 = vld [vmem:[#allocation5 + $0x4d8] sm:$0xff]
    %v654 = vld [vmem:[#allocation5 + $0x4e0] sm:$0xff]
    %v655 = vld [vmem:[#allocation5 + $0x4e8] sm:$0xff]
    %v656 = vld [vmem:[#allocation5 + $0x4f0] sm:$0xff]
    %v657 = vld [vmem:[#allocation5 + $0x4f8] sm:$0xff]
    %v658 = vld [vmem:[#allocation5 + $0x500] sm:$0xff]
    %v659 = vld [vmem:[#allocation5 + $0x508] sm:$0xff]
    %v660 = vld [vmem:[#allocation5 + $0x510] sm:$0xff]
    %v661 = vld [vmem:[#allocation5 + $0x518] sm:$0xff]
    %v662 = vld [vmem:[#allocation5 + $0x520] sm:$0xff]
    %v663 = vld [vmem:[#allocation5 + $0x528] sm:$0xff]
    %v664 = vld [vmem:[#allocation5 + $0x530] sm:$0xff]
    %v665 = vld [vmem:[#allocation5 + $0x538] sm:$0xff]
    %v666 = vld [vmem:[#allocation5 + $0x540] sm:$0xff]
    %v667 = vld [vmem:[#allocation5 + $0x548] sm:$0xff]
    %v668 = vld [vmem:[#allocation5 + $0x550] sm:$0xff]
    %v669 = vld [vmem:[#allocation5 + $0x558] sm:$0xff]
    %v670 = vld [vmem:[#allocation5 + $0x560] sm:$0xff]
    %v671 = vld [vmem:[#allocation5 + $0x568] sm:$0xff]
    %v672 = vld [vmem:[#allocation5 + $0x570] sm:$0xff]
    %v673 = vld [vmem:[#allocation5 + $0x578] sm:$0xff]
    %v674 = vld [vmem:[#allocation5 + $0x580] sm:$0xff]
    %v675 = vld [vmem:[#allocation5 + $0x588] sm:$0xff]
    %v676 = vld [vmem:[#allocation5 + $0x590] sm:$0xff]
    %v677 = vld [vmem:[#allocation5 + $0x598] sm:$0xff]
    %v678 = vld [vmem:[#allocation5 + $0x5a0] sm:$0xff]
    %v679 = vld [vmem:[#allocation5 + $0x5a8] sm:$0xff]
    %v680 = vld [vmem:[#allocation5 + $0x5b0] sm:$0xff]
    %v681 = vld [vmem:[#allocation5 + $0x5b8] sm:$0xff]
    %v682 = vld [vmem:[#allocation5 + $0x5c0] sm:$0xff]
    %v683 = vld [vmem:[#allocation5 + $0x5c8] sm:$0xff]
    %v684 = vld [vmem:[#allocation5 + $0x5d0] sm:$0xff]
    %v685 = vld [vmem:[#allocation5 + $0x5d8] sm:$0xff]
    %v686 = vld [vmem:[#allocation5 + $0x5e0] sm:$0xff]
    %v687 = vld [vmem:[#allocation5 + $0x5e8] sm:$0xff]
    %v688 = vld [vmem:[#allocation5 + $0x5f0] sm:$0xff]
    %v689 = vld [vmem:[#allocation5 + $0x5f8] sm:$0xff]
    %v690 = vld [vmem:[#allocation7] sm:$0xf]
    %v692 = vlaneseq
    %v693 = vshrl.u32 %v692, 7
    %v694 = vsub.s32 0, %v693
    %v695 = vrot.slane %v690, %v694
    %v696 = vlaneseq
    %v697 = vshrl.u32 %v696, 7
    %v698 = vsub.s32 1, %v697
    %v699 = vrot.slane %v690, %v698
    %v700 = vlaneseq
    %v701 = vshrl.u32 %v700, 7
    %v702 = vsub.s32 2, %v701
    %v703 = vrot.slane %v690, %v702
    %v704 = vlaneseq
    %v705 = vshrl.u32 %v704, 7
    %v706 = vsub.s32 3, %v705
    %v707 = vrot.slane %v690, %v706
    %v904 = vunpack.c.l.b16 %v498
    %v905 = vunpack.c.h.b16 %v498
    %v906 = vunpack.c.l.b16 %v499
    %v907 = vunpack.c.h.b16 %v499
    %v908 = vunpack.c.l.b16 %v500
    %v909 = vunpack.c.h.b16 %v500
    %v910 = vunpack.c.l.b16 %v501
    %v911 = vunpack.c.h.b16 %v501
    %v912 = vunpack.c.l.b16 %v502
    %v913 = vunpack.c.h.b16 %v502
    %v914 = vunpack.c.l.b16 %v503
    %v915 = vunpack.c.h.b16 %v503
    %v916 = vunpack.c.l.b16 %v504
    %v917 = vunpack.c.h.b16 %v504
    %v918 = vunpack.c.l.b16 %v505
    %v919 = vunpack.c.h.b16 %v505
    %v920 = vunpack.c.l.b16 %v506
    %v921 = vunpack.c.h.b16 %v506
    %v922 = vunpack.c.l.b16 %v507
    %v923 = vunpack.c.h.b16 %v507
    %v924 = vunpack.c.l.b16 %v508
    %v925 = vunpack.c.h.b16 %v508
    %v926 = vunpack.c.l.b16 %v509
    %v927 = vunpack.c.h.b16 %v509
    %v928 = vunpack.c.l.b16 %v510
    %v929 = vunpack.c.h.b16 %v510
    %v930 = vunpack.c.l.b16 %v511
    %v931 = vunpack.c.h.b16 %v511
    %v932 = vunpack.c.l.b16 %v512
    %v933 = vunpack.c.h.b16 %v512
    %v934 = vunpack.c.l.b16 %v513
    %v935 = vunpack.c.h.b16 %v513
    %v936 = vunpack.c.l.b16 %v514
    %v937 = vunpack.c.h.b16 %v514
    %v938 = vunpack.c.l.b16 %v515
    %v939 = vunpack.c.h.b16 %v515
    %v940 = vunpack.c.l.b16 %v516
    %v941 = vunpack.c.h.b16 %v516
    %v942 = vunpack.c.l.b16 %v517
    %v943 = vunpack.c.h.b16 %v517
    %v944 = vunpack.c.l.b16 %v518
    %v945 = vunpack.c.h.b16 %v518
    %v946 = vunpack.c.l.b16 %v519
    %v947 = vunpack.c.h.b16 %v519
    %v948 = vunpack.c.l.b16 %v520
    %v949 = vunpack.c.h.b16 %v520
    %v950 = vunpack.c.l.b16 %v521
    %v951 = vunpack.c.h.b16 %v521
    %v952 = vunpack.c.l.b16 %v522
    %v953 = vunpack.c.h.b16 %v522
    %v954 = vunpack.c.l.b16 %v523
    %v955 = vunpack.c.h.b16 %v523
    %v956 = vunpack.c.l.b16 %v524
    %v957 = vunpack.c.h.b16 %v524
    %v958 = vunpack.c.l.b16 %v525
    %v959 = vunpack.c.h.b16 %v525
    %v960 = vunpack.c.l.b16 %v526
    %v961 = vunpack.c.h.b16 %v526
    %v962 = vunpack.c.l.b16 %v527
    %v963 = vunpack.c.h.b16 %v527
    %v964 = vunpack.c.l.b16 %v528
    %v965 = vunpack.c.h.b16 %v528
    %v966 = vunpack.c.l.b16 %v529
    %v967 = vunpack.c.h.b16 %v529
    %v968 = vunpack.c.l.b16 %v530
    %v969 = vunpack.c.h.b16 %v530
    %v970 = vunpack.c.l.b16 %v531
    %v971 = vunpack.c.h.b16 %v531
    %v972 = vunpack.c.l.b16 %v532
    %v973 = vunpack.c.h.b16 %v532
    %v974 = vunpack.c.l.b16 %v533
    %v975 = vunpack.c.h.b16 %v533
    %v976 = vunpack.c.l.b16 %v534
    %v977 = vunpack.c.h.b16 %v534
    %v978 = vunpack.c.l.b16 %v535
    %v979 = vunpack.c.h.b16 %v535
    %v980 = vunpack.c.l.b16 %v536
    %v981 = vunpack.c.h.b16 %v536
    %v982 = vunpack.c.l.b16 %v537
    %v983 = vunpack.c.h.b16 %v537
    %v984 = vunpack.c.l.b16 %v538
    %v985 = vunpack.c.h.b16 %v538
    %v986 = vunpack.c.l.b16 %v539
    %v987 = vunpack.c.h.b16 %v539
    %v988 = vunpack.c.l.b16 %v540
    %v989 = vunpack.c.h.b16 %v540
    %v990 = vunpack.c.l.b16 %v541
    %v991 = vunpack.c.h.b16 %v541
    %v992 = vunpack.c.l.b16 %v542
    %v993 = vunpack.c.h.b16 %v542
    %v994 = vunpack.c.l.b16 %v543
    %v995 = vunpack.c.h.b16 %v543
    %v996 = vunpack.c.l.b16 %v544
    %v997 = vunpack.c.h.b16 %v544
    %v998 = vunpack.c.l.b16 %v545
    %v999 = vunpack.c.h.b16 %v545
    %v1000 = vunpack.c.l.b16 %v546
    %v1001 = vunpack.c.h.b16 %v546
    %v1002 = vunpack.c.l.b16 %v547
    %v1003 = vunpack.c.h.b16 %v547
    %v1004 = vunpack.c.l.b16 %v548
    %v1005 = vunpack.c.h.b16 %v548
    %v1006 = vunpack.c.l.b16 %v549
    %v1007 = vunpack.c.h.b16 %v549
    %v1008 = vunpack.c.l.b16 %v550
    %v1009 = vunpack.c.h.b16 %v550
    %v1010 = vunpack.c.l.b16 %v551
    %v1011 = vunpack.c.h.b16 %v551
    %v1012 = vunpack.c.l.b16 %v552
    %v1013 = vunpack.c.h.b16 %v552
    %v1014 = vunpack.c.l.b16 %v553
    %v1015 = vunpack.c.h.b16 %v553
    %v1016 = vunpack.c.l.b16 %v554
    %v1017 = vunpack.c.h.b16 %v554
    %v1018 = vunpack.c.l.b16 %v555
    %v1019 = vunpack.c.h.b16 %v555
    %v1020 = vunpack.c.l.b16 %v556
    %v1021 = vunpack.c.h.b16 %v556
    %v1022 = vunpack.c.l.b16 %v557
    %v1023 = vunpack.c.h.b16 %v557
    %v1024 = vunpack.c.l.b16 %v558
    %v1025 = vunpack.c.h.b16 %v558
    %v1026 = vunpack.c.l.b16 %v559
    %v1027 = vunpack.c.h.b16 %v559
    %v1028 = vunpack.c.l.b16 %v560
    %v1029 = vunpack.c.h.b16 %v560
    %v1030 = vunpack.c.l.b16 %v561
    %v1031 = vunpack.c.h.b16 %v561
    %v1032 = vunpack.c.l.b16 %v562
    %v1033 = vunpack.c.h.b16 %v562
    %v1034 = vunpack.c.l.b16 %v563
    %v1035 = vunpack.c.h.b16 %v563
    %v1036 = vunpack.c.l.b16 %v564
    %v1037 = vunpack.c.h.b16 %v564
    %v1038 = vunpack.c.l.b16 %v565
    %v1039 = vunpack.c.h.b16 %v565
    %v1040 = vunpack.c.l.b16 %v566
    %v1041 = vunpack.c.h.b16 %v566
    %v1042 = vunpack.c.l.b16 %v567
    %v1043 = vunpack.c.h.b16 %v567
    %v1044 = vunpack.c.l.b16 %v568
    %v1045 = vunpack.c.h.b16 %v568
    %v1046 = vunpack.c.l.b16 %v569
    %v1047 = vunpack.c.h.b16 %v569
    %v1048 = vunpack.c.l.b16 %v570
    %v1049 = vunpack.c.h.b16 %v570
    %v1050 = vunpack.c.l.b16 %v571
    %v1051 = vunpack.c.h.b16 %v571
    %v1052 = vunpack.c.l.b16 %v572
    %v1053 = vunpack.c.h.b16 %v572
    %v1054 = vunpack.c.l.b16 %v573
    %v1055 = vunpack.c.h.b16 %v573
    %v1056 = vunpack.c.l.b16 %v574
    %v1057 = vunpack.c.h.b16 %v574
    %v1058 = vunpack.c.l.b16 %v575
    %v1059 = vunpack.c.h.b16 %v575
    %v1060 = vunpack.c.l.b16 %v576
    %v1061 = vunpack.c.h.b16 %v576
    %v1062 = vunpack.c.l.b16 %v577
    %v1063 = vunpack.c.h.b16 %v577
    %v1064 = vunpack.c.l.b16 %v578
    %v1065 = vunpack.c.h.b16 %v578
    %v1066 = vunpack.c.l.b16 %v579
    %v1067 = vunpack.c.h.b16 %v579
    %v1068 = vunpack.c.l.b16 %v580
    %v1069 = vunpack.c.h.b16 %v580
    %v1070 = vunpack.c.l.b16 %v581
    %v1071 = vunpack.c.h.b16 %v581
    %v1072 = vunpack.c.l.b16 %v582
    %v1073 = vunpack.c.h.b16 %v582
    %v1074 = vunpack.c.l.b16 %v583
    %v1075 = vunpack.c.h.b16 %v583
    %v1076 = vunpack.c.l.b16 %v584
    %v1077 = vunpack.c.h.b16 %v584
    %v1078 = vunpack.c.l.b16 %v585
    %v1079 = vunpack.c.h.b16 %v585
    %v1080 = vunpack.c.l.b16 %v586
    %v1081 = vunpack.c.h.b16 %v586
    %v1082 = vunpack.c.l.b16 %v587
    %v1083 = vunpack.c.h.b16 %v587
    %v1084 = vunpack.c.l.b16 %v588
    %v1085 = vunpack.c.h.b16 %v588
    %v1086 = vunpack.c.l.b16 %v589
    %v1087 = vunpack.c.h.b16 %v589
    %v1088 = vunpack.c.l.b16 %v590
    %v1089 = vunpack.c.h.b16 %v590
    %v1090 = vunpack.c.l.b16 %v591
    %v1091 = vunpack.c.h.b16 %v591
    %v1092 = vunpack.c.l.b16 %v592
    %v1093 = vunpack.c.h.b16 %v592
    %v1094 = vunpack.c.l.b16 %v593
    %v1095 = vunpack.c.h.b16 %v593
    %v1096 = vunpack.c.l.b16 %v594
    %v1097 = vunpack.c.h.b16 %v594
    %v1098 = vunpack.c.l.b16 %v595
    %v1099 = vunpack.c.h.b16 %v595
    %v1100 = vunpack.c.l.b16 %v596
    %v1101 = vunpack.c.h.b16 %v596
    %v1102 = vunpack.c.l.b16 %v597
    %v1103 = vunpack.c.h.b16 %v597
    %v1104 = vunpack.c.l.b16 %v598
    %v1105 = vunpack.c.h.b16 %v598
    %v1106 = vunpack.c.l.b16 %v599
    %v1107 = vunpack.c.h.b16 %v599
    %v1108 = vunpack.c.l.b16 %v600
    %v1109 = vunpack.c.h.b16 %v600
    %v1110 = vunpack.c.l.b16 %v601
    %v1111 = vunpack.c.h.b16 %v601
    %v1112 = vunpack.c.l.b16 %v602
    %v1113 = vunpack.c.h.b16 %v602
    %v1114 = vunpack.c.l.b16 %v603
    %v1115 = vunpack.c.h.b16 %v603
    %v1116 = vunpack.c.l.b16 %v604
    %v1117 = vunpack.c.h.b16 %v604
    %v1118 = vunpack.c.l.b16 %v605
    %v1119 = vunpack.c.h.b16 %v605
    %v1120 = vunpack.c.l.b16 %v606
    %v1121 = vunpack.c.h.b16 %v606
    %v1122 = vunpack.c.l.b16 %v607
    %v1123 = vunpack.c.h.b16 %v607
    %v1124 = vunpack.c.l.b16 %v608
    %v1125 = vunpack.c.h.b16 %v608
    %v1126 = vunpack.c.l.b16 %v609
    %v1127 = vunpack.c.h.b16 %v609
    %v1128 = vunpack.c.l.b16 %v610
    %v1129 = vunpack.c.h.b16 %v610
    %v1130 = vunpack.c.l.b16 %v611
    %v1131 = vunpack.c.h.b16 %v611
    %v1132 = vunpack.c.l.b16 %v612
    %v1133 = vunpack.c.h.b16 %v612
    %v1134 = vunpack.c.l.b16 %v613
    %v1135 = vunpack.c.h.b16 %v613
    %v1136 = vunpack.c.l.b16 %v614
    %v1137 = vunpack.c.h.b16 %v614
    %v1138 = vunpack.c.l.b16 %v615
    %v1139 = vunpack.c.h.b16 %v615
    %v1140 = vunpack.c.l.b16 %v616
    %v1141 = vunpack.c.h.b16 %v616
    %v1142 = vunpack.c.l.b16 %v617
    %v1143 = vunpack.c.h.b16 %v617
    %v1144 = vunpack.c.l.b16 %v618
    %v1145 = vunpack.c.h.b16 %v618
    %v1146 = vunpack.c.l.b16 %v619
    %v1147 = vunpack.c.h.b16 %v619
    %v1148 = vunpack.c.l.b16 %v620
    %v1149 = vunpack.c.h.b16 %v620
    %v1150 = vunpack.c.l.b16 %v621
    %v1151 = vunpack.c.h.b16 %v621
    %v1152 = vunpack.c.l.b16 %v622
    %v1153 = vunpack.c.h.b16 %v622
    %v1154 = vunpack.c.l.b16 %v623
    %v1155 = vunpack.c.h.b16 %v623
    %v1156 = vunpack.c.l.b16 %v624
    %v1157 = vunpack.c.h.b16 %v624
    %v1158 = vunpack.c.l.b16 %v625
    %v1159 = vunpack.c.h.b16 %v625
    %v1160 = vunpack.c.l.b16 %v626
    %v1161 = vunpack.c.h.b16 %v626
    %v1162 = vunpack.c.l.b16 %v627
    %v1163 = vunpack.c.h.b16 %v627
    %v1164 = vunpack.c.l.b16 %v628
    %v1165 = vunpack.c.h.b16 %v628
    %v1166 = vunpack.c.l.b16 %v629
    %v1167 = vunpack.c.h.b16 %v629
    %v1168 = vunpack.c.l.b16 %v630
    %v1169 = vunpack.c.h.b16 %v630
    %v1170 = vunpack.c.l.b16 %v631
    %v1171 = vunpack.c.h.b16 %v631
    %v1172 = vunpack.c.l.b16 %v632
    %v1173 = vunpack.c.h.b16 %v632
    %v1174 = vunpack.c.l.b16 %v633
    %v1175 = vunpack.c.h.b16 %v633
    %v1176 = vunpack.c.l.b16 %v634
    %v1177 = vunpack.c.h.b16 %v634
    %v1178 = vunpack.c.l.b16 %v635
    %v1179 = vunpack.c.h.b16 %v635
    %v1180 = vunpack.c.l.b16 %v636
    %v1181 = vunpack.c.h.b16 %v636
    %v1182 = vunpack.c.l.b16 %v637
    %v1183 = vunpack.c.h.b16 %v637
    %v1184 = vunpack.c.l.b16 %v638
    %v1185 = vunpack.c.h.b16 %v638
    %v1186 = vunpack.c.l.b16 %v639
    %v1187 = vunpack.c.h.b16 %v639
    %v1188 = vunpack.c.l.b16 %v640
    %v1189 = vunpack.c.h.b16 %v640
    %v1190 = vunpack.c.l.b16 %v641
    %v1191 = vunpack.c.h.b16 %v641
    %v1192 = vunpack.c.l.b16 %v642
    %v1193 = vunpack.c.h.b16 %v642
    %v1194 = vunpack.c.l.b16 %v643
    %v1195 = vunpack.c.h.b16 %v643
    %v1196 = vunpack.c.l.b16 %v644
    %v1197 = vunpack.c.h.b16 %v644
    %v1198 = vunpack.c.l.b16 %v645
    %v1199 = vunpack.c.h.b16 %v645
    %v1200 = vunpack.c.l.b16 %v646
    %v1201 = vunpack.c.h.b16 %v646
    %v1202 = vunpack.c.l.b16 %v647
    %v1203 = vunpack.c.h.b16 %v647
    %v1204 = vunpack.c.l.b16 %v648
    %v1205 = vunpack.c.h.b16 %v648
    %v1206 = vunpack.c.l.b16 %v649
    %v1207 = vunpack.c.h.b16 %v649
    %v1208 = vunpack.c.l.b16 %v650
    %v1209 = vunpack.c.h.b16 %v650
    %v1210 = vunpack.c.l.b16 %v651
    %v1211 = vunpack.c.h.b16 %v651
    %v1212 = vunpack.c.l.b16 %v652
    %v1213 = vunpack.c.h.b16 %v652
    %v1214 = vunpack.c.l.b16 %v653
    %v1215 = vunpack.c.h.b16 %v653
    %v1216 = vunpack.c.l.b16 %v654
    %v1217 = vunpack.c.h.b16 %v654
    %v1218 = vunpack.c.l.b16 %v655
    %v1219 = vunpack.c.h.b16 %v655
    %v1220 = vunpack.c.l.b16 %v656
    %v1221 = vunpack.c.h.b16 %v656
    %v1222 = vunpack.c.l.b16 %v657
    %v1223 = vunpack.c.h.b16 %v657
    %v1224 = vunpack.c.l.b16 %v658
    %v1225 = vunpack.c.h.b16 %v658
    %v1226 = vunpack.c.l.b16 %v659
    %v1227 = vunpack.c.h.b16 %v659
    %v1228 = vunpack.c.l.b16 %v660
    %v1229 = vunpack.c.h.b16 %v660
    %v1230 = vunpack.c.l.b16 %v661
    %v1231 = vunpack.c.h.b16 %v661
    %v1232 = vunpack.c.l.b16 %v662
    %v1233 = vunpack.c.h.b16 %v662
    %v1234 = vunpack.c.l.b16 %v663
    %v1235 = vunpack.c.h.b16 %v663
    %v1236 = vunpack.c.l.b16 %v664
    %v1237 = vunpack.c.h.b16 %v664
    %v1238 = vunpack.c.l.b16 %v665
    %v1239 = vunpack.c.h.b16 %v665
    %v1240 = vunpack.c.l.b16 %v666
    %v1241 = vunpack.c.h.b16 %v666
    %v1242 = vunpack.c.l.b16 %v667
    %v1243 = vunpack.c.h.b16 %v667
    %v1244 = vunpack.c.l.b16 %v668
    %v1245 = vunpack.c.h.b16 %v668
    %v1246 = vunpack.c.l.b16 %v669
    %v1247 = vunpack.c.h.b16 %v669
    %v1248 = vunpack.c.l.b16 %v670
    %v1249 = vunpack.c.h.b16 %v670
    %v1250 = vunpack.c.l.b16 %v671
    %v1251 = vunpack.c.h.b16 %v671
    %v1252 = vunpack.c.l.b16 %v672
    %v1253 = vunpack.c.h.b16 %v672
    %v1254 = vunpack.c.l.b16 %v673
    %v1255 = vunpack.c.h.b16 %v673
    %v1256 = vunpack.c.l.b16 %v674
    %v1257 = vunpack.c.h.b16 %v674
    %v1258 = vunpack.c.l.b16 %v675
    %v1259 = vunpack.c.h.b16 %v675
    %v1260 = vunpack.c.l.b16 %v676
    %v1261 = vunpack.c.h.b16 %v676
    %v1262 = vunpack.c.l.b16 %v677
    %v1263 = vunpack.c.h.b16 %v677
    %v1264 = vunpack.c.l.b16 %v678
    %v1265 = vunpack.c.h.b16 %v678
    %v1266 = vunpack.c.l.b16 %v679
    %v1267 = vunpack.c.h.b16 %v679
    %v1268 = vunpack.c.l.b16 %v680
    %v1269 = vunpack.c.h.b16 %v680
    %v1270 = vunpack.c.l.b16 %v681
    %v1271 = vunpack.c.h.b16 %v681
    %v1272 = vunpack.c.l.b16 %v682
    %v1273 = vunpack.c.h.b16 %v682
    %v1274 = vunpack.c.l.b16 %v683
    %v1275 = vunpack.c.h.b16 %v683
    %v1276 = vunpack.c.l.b16 %v684
    %v1277 = vunpack.c.h.b16 %v684
    %v1278 = vunpack.c.l.b16 %v685
    %v1279 = vunpack.c.h.b16 %v685
    %v1280 = vunpack.c.l.b16 %v686
    %v1281 = vunpack.c.h.b16 %v686
    %v1282 = vunpack.c.l.b16 %v687
    %v1283 = vunpack.c.h.b16 %v687
    %v1284 = vunpack.c.l.b16 %v688
    %v1285 = vunpack.c.h.b16 %v688
    %v1286 = vunpack.c.l.b16 %v689
    %v1287 = vunpack.c.h.b16 %v689
    %v1288 = vpack.c.b16 %v908, %v904
    %v1289 = vpack.c.b16 %v909, %v905
    %v1290 = vpack.c.b16 %v910, %v906
    %v1291 = vpack.c.b16 %v911, %v907
    %v1292 = vpack.c.b16 %v916, %v912
    %v1293 = vpack.c.b16 %v917, %v913
    %v1294 = vpack.c.b16 %v918, %v914
    %v1295 = vpack.c.b16 %v919, %v915
    %v1296 = vpack.c.b16 %v924, %v920
    %v1297 = vpack.c.b16 %v925, %v921
    %v1298 = vpack.c.b16 %v926, %v922
    %v1299 = vpack.c.b16 %v927, %v923
    %v1300 = vpack.c.b16 %v932, %v928
    %v1301 = vpack.c.b16 %v933, %v929
    %v1302 = vpack.c.b16 %v934, %v930
    %v1303 = vpack.c.b16 %v935, %v931
    %v1304 = vpack.c.b16 %v940, %v936
    %v1305 = vpack.c.b16 %v941, %v937
    %v1306 = vpack.c.b16 %v942, %v938
    %v1307 = vpack.c.b16 %v943, %v939
    %v1308 = vpack.c.b16 %v948, %v944
    %v1309 = vpack.c.b16 %v949, %v945
    %v1310 = vpack.c.b16 %v950, %v946
    %v1311 = vpack.c.b16 %v951, %v947
    %v1312 = vpack.c.b16 %v956, %v952
    %v1313 = vpack.c.b16 %v957, %v953
    %v1314 = vpack.c.b16 %v958, %v954
    %v1315 = vpack.c.b16 %v959, %v955
    %v1316 = vpack.c.b16 %v964, %v960
    %v1317 = vpack.c.b16 %v965, %v961
    %v1318 = vpack.c.b16 %v966, %v962
    %v1319 = vpack.c.b16 %v967, %v963
    %v1320 = vpack.c.b16 %v972, %v968
    %v1321 = vpack.c.b16 %v973, %v969
    %v1322 = vpack.c.b16 %v974, %v970
    %v1323 = vpack.c.b16 %v975, %v971
    %v1324 = vpack.c.b16 %v980, %v976
    %v1325 = vpack.c.b16 %v981, %v977
    %v1326 = vpack.c.b16 %v982, %v978
    %v1327 = vpack.c.b16 %v983, %v979
    %v1328 = vpack.c.b16 %v988, %v984
    %v1329 = vpack.c.b16 %v989, %v985
    %v1330 = vpack.c.b16 %v990, %v986
    %v1331 = vpack.c.b16 %v991, %v987
    %v1332 = vpack.c.b16 %v996, %v992
    %v1333 = vpack.c.b16 %v997, %v993
    %v1334 = vpack.c.b16 %v998, %v994
    %v1335 = vpack.c.b16 %v999, %v995
    %v1336 = vpack.c.b16 %v1004, %v1000
    %v1337 = vpack.c.b16 %v1005, %v1001
    %v1338 = vpack.c.b16 %v1006, %v1002
    %v1339 = vpack.c.b16 %v1007, %v1003
    %v1340 = vpack.c.b16 %v1012, %v1008
    %v1341 = vpack.c.b16 %v1013, %v1009
    %v1342 = vpack.c.b16 %v1014, %v1010
    %v1343 = vpack.c.b16 %v1015, %v1011
    %v1344 = vpack.c.b16 %v1020, %v1016
    %v1345 = vpack.c.b16 %v1021, %v1017
    %v1346 = vpack.c.b16 %v1022, %v1018
    %v1347 = vpack.c.b16 %v1023, %v1019
    %v1348 = vpack.c.b16 %v1028, %v1024
    %v1349 = vpack.c.b16 %v1029, %v1025
    %v1350 = vpack.c.b16 %v1030, %v1026
    %v1351 = vpack.c.b16 %v1031, %v1027
    %v1352 = vpack.c.b16 %v1036, %v1032
    %v1353 = vpack.c.b16 %v1037, %v1033
    %v1354 = vpack.c.b16 %v1038, %v1034
    %v1355 = vpack.c.b16 %v1039, %v1035
    %v1356 = vpack.c.b16 %v1044, %v1040
    %v1357 = vpack.c.b16 %v1045, %v1041
    %v1358 = vpack.c.b16 %v1046, %v1042
    %v1359 = vpack.c.b16 %v1047, %v1043
    %v1360 = vpack.c.b16 %v1052, %v1048
    %v1361 = vpack.c.b16 %v1053, %v1049
    %v1362 = vpack.c.b16 %v1054, %v1050
    %v1363 = vpack.c.b16 %v1055, %v1051
    %v1364 = vpack.c.b16 %v1060, %v1056
    %v1365 = vpack.c.b16 %v1061, %v1057
    %v1366 = vpack.c.b16 %v1062, %v1058
    %v1367 = vpack.c.b16 %v1063, %v1059
    %v1368 = vpack.c.b16 %v1068, %v1064
    %v1369 = vpack.c.b16 %v1069, %v1065
    %v1370 = vpack.c.b16 %v1070, %v1066
    %v1371 = vpack.c.b16 %v1071, %v1067
    %v1372 = vpack.c.b16 %v1076, %v1072
    %v1373 = vpack.c.b16 %v1077, %v1073
    %v1374 = vpack.c.b16 %v1078, %v1074
    %v1375 = vpack.c.b16 %v1079, %v1075
    %v1376 = vpack.c.b16 %v1084, %v1080
    %v1377 = vpack.c.b16 %v1085, %v1081
    %v1378 = vpack.c.b16 %v1086, %v1082
    %v1379 = vpack.c.b16 %v1087, %v1083
    %v1380 = vpack.c.b16 %v1092, %v1088
    %v1381 = vpack.c.b16 %v1093, %v1089
    %v1382 = vpack.c.b16 %v1094, %v1090
    %v1383 = vpack.c.b16 %v1095, %v1091
    %v1384 = vpack.c.b16 %v1100, %v1096
    %v1385 = vpack.c.b16 %v1101, %v1097
    %v1386 = vpack.c.b16 %v1102, %v1098
    %v1387 = vpack.c.b16 %v1103, %v1099
    %v1388 = vpack.c.b16 %v1108, %v1104
    %v1389 = vpack.c.b16 %v1109, %v1105
    %v1390 = vpack.c.b16 %v1110, %v1106
    %v1391 = vpack.c.b16 %v1111, %v1107
    %v1392 = vpack.c.b16 %v1116, %v1112
    %v1393 = vpack.c.b16 %v1117, %v1113
    %v1394 = vpack.c.b16 %v1118, %v1114
    %v1395 = vpack.c.b16 %v1119, %v1115
    %v1396 = vpack.c.b16 %v1124, %v1120
    %v1397 = vpack.c.b16 %v1125, %v1121
    %v1398 = vpack.c.b16 %v1126, %v1122
    %v1399 = vpack.c.b16 %v1127, %v1123
    %v1400 = vpack.c.b16 %v1132, %v1128
    %v1401 = vpack.c.b16 %v1133, %v1129
    %v1402 = vpack.c.b16 %v1134, %v1130
    %v1403 = vpack.c.b16 %v1135, %v1131
    %v1404 = vpack.c.b16 %v1140, %v1136
    %v1405 = vpack.c.b16 %v1141, %v1137
    %v1406 = vpack.c.b16 %v1142, %v1138
    %v1407 = vpack.c.b16 %v1143, %v1139
    %v1408 = vpack.c.b16 %v1148, %v1144
    %v1409 = vpack.c.b16 %v1149, %v1145
    %v1410 = vpack.c.b16 %v1150, %v1146
    %v1411 = vpack.c.b16 %v1151, %v1147
    %v1412 = vpack.c.b16 %v1156, %v1152
    %v1413 = vpack.c.b16 %v1157, %v1153
    %v1414 = vpack.c.b16 %v1158, %v1154
    %v1415 = vpack.c.b16 %v1159, %v1155
    %v1416 = vpack.c.b16 %v1164, %v1160
    %v1417 = vpack.c.b16 %v1165, %v1161
    %v1418 = vpack.c.b16 %v1166, %v1162
    %v1419 = vpack.c.b16 %v1167, %v1163
    %v1420 = vpack.c.b16 %v1172, %v1168
    %v1421 = vpack.c.b16 %v1173, %v1169
    %v1422 = vpack.c.b16 %v1174, %v1170
    %v1423 = vpack.c.b16 %v1175, %v1171
    %v1424 = vpack.c.b16 %v1180, %v1176
    %v1425 = vpack.c.b16 %v1181, %v1177
    %v1426 = vpack.c.b16 %v1182, %v1178
    %v1427 = vpack.c.b16 %v1183, %v1179
    %v1428 = vpack.c.b16 %v1188, %v1184
    %v1429 = vpack.c.b16 %v1189, %v1185
    %v1430 = vpack.c.b16 %v1190, %v1186
    %v1431 = vpack.c.b16 %v1191, %v1187
    %v1432 = vpack.c.b16 %v1196, %v1192
    %v1433 = vpack.c.b16 %v1197, %v1193
    %v1434 = vpack.c.b16 %v1198, %v1194
    %v1435 = vpack.c.b16 %v1199, %v1195
    %v1436 = vpack.c.b16 %v1204, %v1200
    %v1437 = vpack.c.b16 %v1205, %v1201
    %v1438 = vpack.c.b16 %v1206, %v1202
    %v1439 = vpack.c.b16 %v1207, %v1203
    %v1440 = vpack.c.b16 %v1212, %v1208
    %v1441 = vpack.c.b16 %v1213, %v1209
    %v1442 = vpack.c.b16 %v1214, %v1210
    %v1443 = vpack.c.b16 %v1215, %v1211
    %v1444 = vpack.c.b16 %v1220, %v1216
    %v1445 = vpack.c.b16 %v1221, %v1217
    %v1446 = vpack.c.b16 %v1222, %v1218
    %v1447 = vpack.c.b16 %v1223, %v1219
    %v1448 = vpack.c.b16 %v1228, %v1224
    %v1449 = vpack.c.b16 %v1229, %v1225
    %v1450 = vpack.c.b16 %v1230, %v1226
    %v1451 = vpack.c.b16 %v1231, %v1227
    %v1452 = vpack.c.b16 %v1236, %v1232
    %v1453 = vpack.c.b16 %v1237, %v1233
    %v1454 = vpack.c.b16 %v1238, %v1234
    %v1455 = vpack.c.b16 %v1239, %v1235
    %v1456 = vpack.c.b16 %v1244, %v1240
    %v1457 = vpack.c.b16 %v1245, %v1241
    %v1458 = vpack.c.b16 %v1246, %v1242
    %v1459 = vpack.c.b16 %v1247, %v1243
    %v1460 = vpack.c.b16 %v1252, %v1248
    %v1461 = vpack.c.b16 %v1253, %v1249
    %v1462 = vpack.c.b16 %v1254, %v1250
    %v1463 = vpack.c.b16 %v1255, %v1251
    %v1464 = vpack.c.b16 %v1260, %v1256
    %v1465 = vpack.c.b16 %v1261, %v1257
    %v1466 = vpack.c.b16 %v1262, %v1258
    %v1467 = vpack.c.b16 %v1263, %v1259
    %v1468 = vpack.c.b16 %v1268, %v1264
    %v1469 = vpack.c.b16 %v1269, %v1265
    %v1470 = vpack.c.b16 %v1270, %v1266
    %v1471 = vpack.c.b16 %v1271, %v1267
    %v1472 = vpack.c.b16 %v1276, %v1272
    %v1473 = vpack.c.b16 %v1277, %v1273
    %v1474 = vpack.c.b16 %v1278, %v1274
    %v1475 = vpack.c.b16 %v1279, %v1275
    %v1476 = vpack.c.b16 %v1284, %v1280
    %v1477 = vpack.c.b16 %v1285, %v1281
    %v1478 = vpack.c.b16 %v1286, %v1282
    %v1479 = vpack.c.b16 %v1287, %v1283
    %1672 = vmatprep.subr.bf16.mxu0 %v1317
    %1673 = vmatpush1.bf16.msra.mxu0 %v1316
    %1674 = vmatprep.subr.bf16.mxu0 %v1313
    %1675 = vmatpush1.bf16.msra.mxu0 %v1312
    %1676 = vmatprep.subr.bf16.mxu0 %v1309
    %1677 = vmatpush1.bf16.msra.mxu0 %v1308
    %1678 = vmatprep.subr.bf16.mxu0 %v1305
    %1679 = vmatpush1.bf16.msra.mxu0 %v1304
    %1680 = vmatprep.subr.bf16.mxu0 %v1301
    %1681 = vmatpush1.bf16.msra.mxu0 %v1300
    %1682 = vmatprep.subr.bf16.mxu0 %v1297
    %1683 = vmatpush1.bf16.msra.mxu0 %v1296
    %1684 = vmatprep.subr.bf16.mxu0 %v1293
    %1685 = vmatpush1.bf16.msra.mxu0 %v1292
    %1686 = vmatprep.subr.bf16.mxu0 %v1289
    %1687 = vmatpush1.bf16.msra.mxu0 %v1288
    %1688 = vmatprep.subr.bf16.mxu0 %v1349
    %1689 = vmatpush2.bf16.msra.mxu0 %v1348
    %1690 = vmatprep.subr.bf16.mxu0 %v1345
    %1691 = vmatpush2.bf16.msra.mxu0 %v1344
    %1692 = vmatprep.subr.bf16.mxu0 %v1341
    %1693 = vmatpush2.bf16.msra.mxu0 %v1340
    %1694 = vmatprep.subr.bf16.mxu0 %v1337
    %1695 = vmatpush2.bf16.msra.mxu0 %v1336
    %1696 = vmatprep.subr.bf16.mxu0 %v1333
    %1697 = vmatpush2.bf16.msra.mxu0 %v1332
    %1698 = vmatprep.subr.bf16.mxu0 %v1329
    %1699 = vmatpush2.bf16.msra.mxu0 %v1328
    %1700 = vmatprep.subr.bf16.mxu0 %v1325
    %1701 = vmatpush2.bf16.msra.mxu0 %v1324
    %1702 = vmatprep.subr.bf16.mxu0 %v1321
    %1703 = vmatpush2.bf16.msra.mxu0 %v1320
    %1704 = vmatprep.mubr.bf16.mxu0 %v349
    %1705 = vmatmul.mubr.bf16.gmra.mxu0 %v348
    %v1706 = vpop.f32.mrf.mxu0
    %v1707 = vadd.f32 %v695, %v1706
    %v1708 = vpop.f32.mrf.mxu0
    %v1709 = vadd.f32 %v699, %v1708
    %v1710 = vpop.f32.mrf.mxu0
    %v1711 = vadd.f32 %v695, %v1710
    %v1712 = vpop.f32.mrf.mxu0
    %v1713 = vadd.f32 %v699, %v1712
    %1714 = vmatprep.mubr.bf16.mxu0 %v355
    %1715 = vmatmul.mubr.bf16.gmra.mxu0 %v354
    %v1716 = vpop.f32.mrf.mxu0
    %v1717 = vadd.f32 %v695, %v1716
    %v1718 = vpop.f32.mrf.mxu0
    %v1719 = vadd.f32 %v699, %v1718
    %v1720 = vpop.f32.mrf.mxu0
    %v1721 = vadd.f32 %v695, %v1720
    %v1722 = vpop.f32.mrf.mxu0
    %v1723 = vadd.f32 %v699, %v1722
    %1724 = vmatprep.mubr.bf16.mxu0 %v361
    %1725 = vmatmul.mubr.bf16.gmra.mxu0 %v360
    %v1726 = vpop.f32.mrf.mxu0
    %v1727 = vadd.f32 %v695, %v1726
    %v1728 = vpop.f32.mrf.mxu0
    %v1729 = vadd.f32 %v699, %v1728
    %v1730 = vpop.f32.mrf.mxu0
    %v1731 = vadd.f32 %v695, %v1730
    %v1732 = vpop.f32.mrf.mxu0
    %v1733 = vadd.f32 %v699, %v1732
    %1734 = vmatprep.mubr.bf16.mxu0 %v367
    %1735 = vmatmul.mubr.bf16.gmra.mxu0 %v366
    %v1736 = vpop.f32.mrf.mxu0
    %v1737 = vadd.f32 %v695, %v1736
    %v1738 = vpop.f32.mrf.mxu0
    %v1739 = vadd.f32 %v699, %v1738
    %v1740 = vpop.f32.mrf.mxu0
    %v1741 = vadd.f32 %v695, %v1740
    %v1742 = vpop.f32.mrf.mxu0
    %v1743 = vadd.f32 %v699, %v1742
    %1744 = vmatprep.mubr.bf16.mxu0 %v373
    %1745 = vmatmul.mubr.bf16.gmra.mxu0 %v372
    %v1746 = vpop.f32.mrf.mxu0
    %v1747 = vadd.f32 %v695, %v1746
    %v1748 = vpop.f32.mrf.mxu0
    %v1749 = vadd.f32 %v699, %v1748
    %v1750 = vpop.f32.mrf.mxu0
    %v1751 = vadd.f32 %v695, %v1750
    %v1752 = vpop.f32.mrf.mxu0
    %v1753 = vadd.f32 %v699, %v1752
    %1754 = vmatprep.mubr.bf16.mxu0 %v379
    %1755 = vmatmul.mubr.bf16.gmra.mxu0 %v378
    %v1756 = vpop.f32.mrf.mxu0
    %v1757 = vadd.f32 %v695, %v1756
    %v1758 = vpop.f32.mrf.mxu0
    %v1759 = vadd.f32 %v699, %v1758
    %v1760 = vpop.f32.mrf.mxu0
    %v1761 = vadd.f32 %v695, %v1760
    %v1762 = vpop.f32.mrf.mxu0
    %v1763 = vadd.f32 %v699, %v1762
    %1764 = vmatprep.mubr.bf16.mxu0 %v385
    %1765 = vmatmul.mubr.bf16.gmra.mxu0 %v384
    %v1766 = vpop.f32.mrf.mxu0
    %v1767 = vadd.f32 %v695, %v1766
    %v1768 = vpop.f32.mrf.mxu0
    %v1769 = vadd.f32 %v699, %v1768
    %v1770 = vpop.f32.mrf.mxu0
    %v1771 = vadd.f32 %v695, %v1770
    %v1772 = vpop.f32.mrf.mxu0
    %v1773 = vadd.f32 %v699, %v1772
    %1774 = vmatprep.mubr.bf16.mxu0 %v391
    %1775 = vmatmul.mubr.bf16.gmra.mxu0 %v390
    %v1776 = vpop.f32.mrf.mxu0
    %v1777 = vadd.f32 %v695, %v1776
    %v1778 = vpop.f32.mrf.mxu0
    %v1779 = vadd.f32 %v699, %v1778
    %v1780 = vpop.f32.mrf.mxu0
    %v1781 = vadd.f32 %v695, %v1780
    %v1782 = vpop.f32.mrf.mxu0
    %v1783 = vadd.f32 %v699, %v1782
    %1784 = vmatprep.mubr.bf16.mxu0 %v397
    %1785 = vmatmul.mubr.bf16.gmra.mxu0 %v396
    %v1786 = vpop.f32.mrf.mxu0
    %v1787 = vadd.f32 %v695, %v1786
    %v1788 = vpop.f32.mrf.mxu0
    %v1789 = vadd.f32 %v699, %v1788
    %v1790 = vpop.f32.mrf.mxu0
    %v1791 = vadd.f32 %v695, %v1790
    %v1792 = vpop.f32.mrf.mxu0
    %v1793 = vadd.f32 %v699, %v1792
    %1794 = vmatprep.mubr.bf16.mxu0 %v403
    %1795 = vmatmul.mubr.bf16.gmra.mxu0 %v402
    %v1796 = vpop.f32.mrf.mxu0
    %v1797 = vadd.f32 %v695, %v1796
    %v1798 = vpop.f32.mrf.mxu0
    %v1799 = vadd.f32 %v699, %v1798
    %v1800 = vpop.f32.mrf.mxu0
    %v1801 = vadd.f32 %v695, %v1800
    %v1802 = vpop.f32.mrf.mxu0
    %v1803 = vadd.f32 %v699, %v1802
    %1804 = vmatprep.mubr.bf16.mxu0 %v409
    %1805 = vmatmul.mubr.bf16.gmra.mxu0 %v408
    %v1806 = vpop.f32.mrf.mxu0
    %v1807 = vadd.f32 %v695, %v1806
    %v1808 = vpop.f32.mrf.mxu0
    %v1809 = vadd.f32 %v699, %v1808
    %v1810 = vpop.f32.mrf.mxu0
    %v1811 = vadd.f32 %v695, %v1810
    %v1812 = vpop.f32.mrf.mxu0
    %v1813 = vadd.f32 %v699, %v1812
    %1814 = vmatprep.mubr.bf16.mxu0 %v415
    %1815 = vmatmul.mubr.bf16.gmra.mxu0 %v414
    %v1816 = vpop.f32.mrf.mxu0
    %v1817 = vadd.f32 %v695, %v1816
    %v1818 = vpop.f32.mrf.mxu0
    %v1819 = vadd.f32 %v699, %v1818
    %v1820 = vpop.f32.mrf.mxu0
    %v1821 = vadd.f32 %v695, %v1820
    %v1822 = vpop.f32.mrf.mxu0
    %v1823 = vadd.f32 %v699, %v1822
    %1824 = vmatprep.mubr.bf16.mxu0 %v421
    %1825 = vmatmul.mubr.bf16.gmra.mxu0 %v420
    %v1826 = vpop.f32.mrf.mxu0
    %v1827 = vadd.f32 %v695, %v1826
    %v1828 = vpop.f32.mrf.mxu0
    %v1829 = vadd.f32 %v699, %v1828
    %v1830 = vpop.f32.mrf.mxu0
    %v1831 = vadd.f32 %v695, %v1830
    %v1832 = vpop.f32.mrf.mxu0
    %v1833 = vadd.f32 %v699, %v1832
    %1834 = vmatprep.mubr.bf16.mxu0 %v427
    %1835 = vmatmul.mubr.bf16.gmra.mxu0 %v426
    %v1836 = vpop.f32.mrf.mxu0
    %v1837 = vadd.f32 %v695, %v1836
    %v1838 = vpop.f32.mrf.mxu0
    %v1839 = vadd.f32 %v699, %v1838
    %v1840 = vpop.f32.mrf.mxu0
    %v1841 = vadd.f32 %v695, %v1840
    %v1842 = vpop.f32.mrf.mxu0
    %v1843 = vadd.f32 %v699, %v1842
    %1844 = vmatprep.mubr.bf16.mxu0 %v433
    %1845 = vmatmul.mubr.bf16.gmra.mxu0 %v432
    %v1846 = vpop.f32.mrf.mxu0
    %v1847 = vadd.f32 %v695, %v1846
    %v1848 = vpop.f32.mrf.mxu0
    %v1849 = vadd.f32 %v699, %v1848
    %v1850 = vpop.f32.mrf.mxu0
    %v1851 = vadd.f32 %v695, %v1850
    %v1852 = vpop.f32.mrf.mxu0
    %v1853 = vadd.f32 %v699, %v1852
    %1854 = vmatprep.mubr.bf16.mxu0 %v439
    %1855 = vmatmul.mubr.bf16.gmra.mxu0 %v438
    %v1856 = vpop.f32.mrf.mxu0
    %v1857 = vadd.f32 %v695, %v1856
    %v1858 = vpop.f32.mrf.mxu0
    %v1859 = vadd.f32 %v699, %v1858
    %v1860 = vpop.f32.mrf.mxu0
    %v1861 = vadd.f32 %v695, %v1860
    %v1862 = vpop.f32.mrf.mxu0
    %v1863 = vadd.f32 %v699, %v1862
    %1864 = vmatprep.mubr.bf16.mxu0 %v445
    %1865 = vmatmul.mubr.bf16.gmra.mxu0 %v444
    %v1866 = vpop.f32.mrf.mxu0
    %v1867 = vadd.f32 %v695, %v1866
    %v1868 = vpop.f32.mrf.mxu0
    %v1869 = vadd.f32 %v699, %v1868
    %v1870 = vpop.f32.mrf.mxu0
    %v1871 = vadd.f32 %v695, %v1870
    %v1872 = vpop.f32.mrf.mxu0
    %v1873 = vadd.f32 %v699, %v1872
    %1874 = vmatprep.mubr.bf16.mxu0 %v451
    %1875 = vmatmul.mubr.bf16.gmra.mxu0 %v450
    %v1876 = vpop.f32.mrf.mxu0
    %v1877 = vadd.f32 %v695, %v1876
    %v1878 = vpop.f32.mrf.mxu0
    %v1879 = vadd.f32 %v699, %v1878
    %v1880 = vpop.f32.mrf.mxu0
    %v1881 = vadd.f32 %v695, %v1880
    %v1882 = vpop.f32.mrf.mxu0
    %v1883 = vadd.f32 %v699, %v1882
    %1884 = vmatprep.mubr.bf16.mxu0 %v457
    %1885 = vmatmul.mubr.bf16.gmra.mxu0 %v456
    %v1886 = vpop.f32.mrf.mxu0
    %v1887 = vadd.f32 %v695, %v1886
    %v1888 = vpop.f32.mrf.mxu0
    %v1889 = vadd.f32 %v699, %v1888
    %v1890 = vpop.f32.mrf.mxu0
    %v1891 = vadd.f32 %v695, %v1890
    %v1892 = vpop.f32.mrf.mxu0
    %v1893 = vadd.f32 %v699, %v1892
    %1894 = vmatprep.mubr.bf16.mxu0 %v463
    %1895 = vmatmul.mubr.bf16.gmra.mxu0 %v462
    %v1896 = vpop.f32.mrf.mxu0
    %v1897 = vadd.f32 %v695, %v1896
    %v1898 = vpop.f32.mrf.mxu0
    %v1899 = vadd.f32 %v699, %v1898
    %v1900 = vpop.f32.mrf.mxu0
    %v1901 = vadd.f32 %v695, %v1900
    %v1902 = vpop.f32.mrf.mxu0
    %v1903 = vadd.f32 %v699, %v1902
    %1904 = vmatprep.mubr.bf16.mxu0 %v469
    %1905 = vmatmul.mubr.bf16.gmra.mxu0 %v468
    %v1906 = vpop.f32.mrf.mxu0
    %v1907 = vadd.f32 %v695, %v1906
    %v1908 = vpop.f32.mrf.mxu0
    %v1909 = vadd.f32 %v699, %v1908
    %v1910 = vpop.f32.mrf.mxu0
    %v1911 = vadd.f32 %v695, %v1910
    %v1912 = vpop.f32.mrf.mxu0
    %v1913 = vadd.f32 %v699, %v1912
    %1914 = vmatprep.mubr.bf16.mxu0 %v475
    %1915 = vmatmul.mubr.bf16.gmra.mxu0 %v474
    %v1916 = vpop.f32.mrf.mxu0
    %v1917 = vadd.f32 %v695, %v1916
    %v1918 = vpop.f32.mrf.mxu0
    %v1919 = vadd.f32 %v699, %v1918
    %v1920 = vpop.f32.mrf.mxu0
    %v1921 = vadd.f32 %v695, %v1920
    %v1922 = vpop.f32.mrf.mxu0
    %v1923 = vadd.f32 %v699, %v1922
    %1924 = vmatprep.mubr.bf16.mxu0 %v481
    %1925 = vmatmul.mubr.bf16.gmra.mxu0 %v480
    %v1926 = vpop.f32.mrf.mxu0
    %v1927 = vadd.f32 %v695, %v1926
    %v1928 = vpop.f32.mrf.mxu0
    %v1929 = vadd.f32 %v699, %v1928
    %v1930 = vpop.f32.mrf.mxu0
    %v1931 = vadd.f32 %v695, %v1930
    %v1932 = vpop.f32.mrf.mxu0
    %v1933 = vadd.f32 %v699, %v1932
    %1934 = vmatprep.mubr.bf16.mxu0 %v487
    %1935 = vmatmul.mubr.bf16.gmra.mxu0 %v486
    %v1936 = vpop.f32.mrf.mxu0
    %v1937 = vadd.f32 %v695, %v1936
    %v1938 = vpop.f32.mrf.mxu0
    %v1939 = vadd.f32 %v699, %v1938
    %v1940 = vpop.f32.mrf.mxu0
    %v1941 = vadd.f32 %v695, %v1940
    %v1942 = vpop.f32.mrf.mxu0
    %v1943 = vadd.f32 %v699, %v1942
    %1944 = vmatprep.mubr.bf16.mxu0 %v493
    %1945 = vmatmul.mubr.bf16.gmra.mxu0 %v492
    %v1946 = vpop.f32.mrf.mxu0
    %v1947 = vadd.f32 %v695, %v1946
    %v1948 = vpop.f32.mrf.mxu0
    %v1949 = vadd.f32 %v699, %v1948
    %v1950 = vpop.f32.mrf.mxu0
    %v1951 = vpop.f32.mrf.mxu0
    %1952 = vdwg.mxu0
    %1953 = vmatprep.subr.bf16.mxu0 %v1381
    %1954 = vmatpush1.bf16.msra.mxu0 %v1380
    %1955 = vmatprep.subr.bf16.mxu0 %v1377
    %1956 = vmatpush1.bf16.msra.mxu0 %v1376
    %1957 = vmatprep.subr.bf16.mxu0 %v1373
    %1958 = vmatpush1.bf16.msra.mxu0 %v1372
    %1959 = vmatprep.subr.bf16.mxu0 %v1369
    %1960 = vmatpush1.bf16.msra.mxu0 %v1368
    %1961 = vmatprep.subr.bf16.mxu0 %v1365
    %1962 = vmatpush1.bf16.msra.mxu0 %v1364
    %1963 = vmatprep.subr.bf16.mxu0 %v1361
    %1964 = vmatpush1.bf16.msra.mxu0 %v1360
    %1965 = vmatprep.subr.bf16.mxu0 %v1357
    %1966 = vmatpush1.bf16.msra.mxu0 %v1356
    %1967 = vmatprep.subr.bf16.mxu0 %v1353
    %1968 = vmatpush1.bf16.msra.mxu0 %v1352
    %1969 = vmatprep.subr.bf16.mxu0 %v1413
    %1970 = vmatpush2.bf16.msra.mxu0 %v1412
    %1971 = vmatprep.subr.bf16.mxu0 %v1409
    %1972 = vmatpush2.bf16.msra.mxu0 %v1408
    %1973 = vmatprep.subr.bf16.mxu0 %v1405
    %1974 = vmatpush2.bf16.msra.mxu0 %v1404
    %1975 = vmatprep.subr.bf16.mxu0 %v1401
    %1976 = vmatpush2.bf16.msra.mxu0 %v1400
    %1977 = vmatprep.subr.bf16.mxu0 %v1397
    %1978 = vmatpush2.bf16.msra.mxu0 %v1396
    %1979 = vmatprep.subr.bf16.mxu0 %v1393
    %1980 = vmatpush2.bf16.msra.mxu0 %v1392
    %1981 = vmatprep.subr.bf16.mxu0 %v1389
    %1982 = vmatpush2.bf16.msra.mxu0 %v1388
    %1983 = vmatprep.subr.bf16.mxu0 %v1385
    %1984 = vmatpush2.bf16.msra.mxu0 %v1384
    %1985 = vmatprep.mubr.bf16.mxu0 %v351
    %1986 = vmatmul.mubr.bf16.gmra.mxu0 %v350
    %v1987 = vpop.f32.mrf.mxu0
    %v1988 = vadd.f32 %v1707, %v1987
    %v1989 = vpop.f32.mrf.mxu0
    %v1990 = vadd.f32 %v1709, %v1989
    %v1991 = vpop.f32.mrf.mxu0
    %v1992 = vadd.f32 %v1711, %v1991
    %v1993 = vpop.f32.mrf.mxu0
    %v1994 = vadd.f32 %v1713, %v1993
    %1995 = vmatprep.mubr.bf16.mxu0 %v357
    %1996 = vmatmul.mubr.bf16.gmra.mxu0 %v356
    %v1997 = vpop.f32.mrf.mxu0
    %v1998 = vadd.f32 %v1717, %v1997
    %v1999 = vpop.f32.mrf.mxu0
    %v2000 = vadd.f32 %v1719, %v1999
    %v2001 = vpop.f32.mrf.mxu0
    %v2002 = vadd.f32 %v1721, %v2001
    %v2003 = vpop.f32.mrf.mxu0
    %v2004 = vadd.f32 %v1723, %v2003
    %2005 = vmatprep.mubr.bf16.mxu0 %v363
    %2006 = vmatmul.mubr.bf16.gmra.mxu0 %v362
    %v2007 = vpop.f32.mrf.mxu0
    %v2008 = vadd.f32 %v1727, %v2007
    %v2009 = vpop.f32.mrf.mxu0
    %v2010 = vadd.f32 %v1729, %v2009
    %v2011 = vpop.f32.mrf.mxu0
    %v2012 = vadd.f32 %v1731, %v2011
    %v2013 = vpop.f32.mrf.mxu0
    %v2014 = vadd.f32 %v1733, %v2013
    %2015 = vmatprep.mubr.bf16.mxu0 %v369
    %2016 = vmatmul.mubr.bf16.gmra.mxu0 %v368
    %v2017 = vpop.f32.mrf.mxu0
    %v2018 = vadd.f32 %v1737, %v2017
    %v2019 = vpop.f32.mrf.mxu0
    %v2020 = vadd.f32 %v1739, %v2019
    %v2021 = vpop.f32.mrf.mxu0
    %v2022 = vadd.f32 %v1741, %v2021
    %v2023 = vpop.f32.mrf.mxu0
    %v2024 = vadd.f32 %v1743, %v2023
    %2025 = vmatprep.mubr.bf16.mxu0 %v375
    %2026 = vmatmul.mubr.bf16.gmra.mxu0 %v374
    %v2027 = vpop.f32.mrf.mxu0
    %v2028 = vadd.f32 %v1747, %v2027
    %v2029 = vpop.f32.mrf.mxu0
    %v2030 = vadd.f32 %v1749, %v2029
    %v2031 = vpop.f32.mrf.mxu0
    %v2032 = vadd.f32 %v1751, %v2031
    %v2033 = vpop.f32.mrf.mxu0
    %v2034 = vadd.f32 %v1753, %v2033
    %2035 = vmatprep.mubr.bf16.mxu0 %v381
    %2036 = vmatmul.mubr.bf16.gmra.mxu0 %v380
    %v2037 = vpop.f32.mrf.mxu0
    %v2038 = vadd.f32 %v1757, %v2037
    %v2039 = vpop.f32.mrf.mxu0
    %v2040 = vadd.f32 %v1759, %v2039
    %v2041 = vpop.f32.mrf.mxu0
    %v2042 = vadd.f32 %v1761, %v2041
    %v2043 = vpop.f32.mrf.mxu0
    %v2044 = vadd.f32 %v1763, %v2043
    %2045 = vmatprep.mubr.bf16.mxu0 %v387
    %2046 = vmatmul.mubr.bf16.gmra.mxu0 %v386
    %v2047 = vpop.f32.mrf.mxu0
    %v2048 = vadd.f32 %v1767, %v2047
    %v2049 = vpop.f32.mrf.mxu0
    %v2050 = vadd.f32 %v1769, %v2049
    %v2051 = vpop.f32.mrf.mxu0
    %v2052 = vadd.f32 %v1771, %v2051
    %v2053 = vpop.f32.mrf.mxu0
    %v2054 = vadd.f32 %v1773, %v2053
    %2055 = vmatprep.mubr.bf16.mxu0 %v393
    %2056 = vmatmul.mubr.bf16.gmra.mxu0 %v392
    %v2057 = vpop.f32.mrf.mxu0
    %v2058 = vadd.f32 %v1777, %v2057
    %v2059 = vpop.f32.mrf.mxu0
    %v2060 = vadd.f32 %v1779, %v2059
    %v2061 = vpop.f32.mrf.mxu0
    %v2062 = vadd.f32 %v1781, %v2061
    %v2063 = vpop.f32.mrf.mxu0
    %v2064 = vadd.f32 %v1783, %v2063
    %2065 = vmatprep.mubr.bf16.mxu0 %v399
    %2066 = vmatmul.mubr.bf16.gmra.mxu0 %v398
    %v2067 = vpop.f32.mrf.mxu0
    %v2068 = vadd.f32 %v1787, %v2067
    %v2069 = vpop.f32.mrf.mxu0
    %v2070 = vadd.f32 %v1789, %v2069
    %v2071 = vpop.f32.mrf.mxu0
    %v2072 = vadd.f32 %v1791, %v2071
    %v2073 = vpop.f32.mrf.mxu0
    %v2074 = vadd.f32 %v1793, %v2073
    %2075 = vmatprep.mubr.bf16.mxu0 %v405
    %2076 = vmatmul.mubr.bf16.gmra.mxu0 %v404
    %v2077 = vpop.f32.mrf.mxu0
    %v2078 = vadd.f32 %v1797, %v2077
    %v2079 = vpop.f32.mrf.mxu0
    %v2080 = vadd.f32 %v1799, %v2079
    %v2081 = vpop.f32.mrf.mxu0
    %v2082 = vadd.f32 %v1801, %v2081
    %v2083 = vpop.f32.mrf.mxu0
    %v2084 = vadd.f32 %v1803, %v2083
    %2085 = vmatprep.mubr.bf16.mxu0 %v411
    %2086 = vmatmul.mubr.bf16.gmra.mxu0 %v410
    %v2087 = vpop.f32.mrf.mxu0
    %v2088 = vadd.f32 %v1807, %v2087
    %v2089 = vpop.f32.mrf.mxu0
    %v2090 = vadd.f32 %v1809, %v2089
    %v2091 = vpop.f32.mrf.mxu0
    %v2092 = vadd.f32 %v1811, %v2091
    %v2093 = vpop.f32.mrf.mxu0
    %v2094 = vadd.f32 %v1813, %v2093
    %2095 = vmatprep.mubr.bf16.mxu0 %v417
    %2096 = vmatmul.mubr.bf16.gmra.mxu0 %v416
    %v2097 = vpop.f32.mrf.mxu0
    %v2098 = vadd.f32 %v1817, %v2097
    %v2099 = vpop.f32.mrf.mxu0
    %v2100 = vadd.f32 %v1819, %v2099
    %v2101 = vpop.f32.mrf.mxu0
    %v2102 = vadd.f32 %v1821, %v2101
    %v2103 = vpop.f32.mrf.mxu0
    %v2104 = vadd.f32 %v1823, %v2103
    %2105 = vmatprep.mubr.bf16.mxu0 %v423
    %2106 = vmatmul.mubr.bf16.gmra.mxu0 %v422
    %v2107 = vpop.f32.mrf.mxu0
    %v2108 = vadd.f32 %v1827, %v2107
    %v2109 = vpop.f32.mrf.mxu0
    %v2110 = vadd.f32 %v1829, %v2109
    %v2111 = vpop.f32.mrf.mxu0
    %v2112 = vadd.f32 %v1831, %v2111
    %v2113 = vpop.f32.mrf.mxu0
    %v2114 = vadd.f32 %v1833, %v2113
    %2115 = vmatprep.mubr.bf16.mxu0 %v429
    %2116 = vmatmul.mubr.bf16.gmra.mxu0 %v428
    %v2117 = vpop.f32.mrf.mxu0
    %v2118 = vadd.f32 %v1837, %v2117
    %v2119 = vpop.f32.mrf.mxu0
    %v2120 = vadd.f32 %v1839, %v2119
    %v2121 = vpop.f32.mrf.mxu0
    %v2122 = vadd.f32 %v1841, %v2121
    %v2123 = vpop.f32.mrf.mxu0
    %v2124 = vadd.f32 %v1843, %v2123
    %2125 = vmatprep.mubr.bf16.mxu0 %v435
    %2126 = vmatmul.mubr.bf16.gmra.mxu0 %v434
    %v2127 = vpop.f32.mrf.mxu0
    %v2128 = vadd.f32 %v1847, %v2127
    %v2129 = vpop.f32.mrf.mxu0
    %v2130 = vadd.f32 %v1849, %v2129
    %v2131 = vpop.f32.mrf.mxu0
    %v2132 = vadd.f32 %v1851, %v2131
    %v2133 = vpop.f32.mrf.mxu0
    %v2134 = vadd.f32 %v1853, %v2133
    %2135 = vmatprep.mubr.bf16.mxu0 %v441
    %2136 = vmatmul.mubr.bf16.gmra.mxu0 %v440
    %v2137 = vpop.f32.mrf.mxu0
    %v2138 = vadd.f32 %v1857, %v2137
    %v2139 = vpop.f32.mrf.mxu0
    %v2140 = vadd.f32 %v1859, %v2139
    %v2141 = vpop.f32.mrf.mxu0
    %v2142 = vadd.f32 %v1861, %v2141
    %v2143 = vpop.f32.mrf.mxu0
    %v2144 = vadd.f32 %v1863, %v2143
    %2145 = vmatprep.mubr.bf16.mxu0 %v447
    %2146 = vmatmul.mubr.bf16.gmra.mxu0 %v446
    %v2147 = vpop.f32.mrf.mxu0
    %v2148 = vadd.f32 %v1867, %v2147
    %v2149 = vpop.f32.mrf.mxu0
    %v2150 = vadd.f32 %v1869, %v2149
    %v2151 = vpop.f32.mrf.mxu0
    %v2152 = vadd.f32 %v1871, %v2151
    %v2153 = vpop.f32.mrf.mxu0
    %v2154 = vadd.f32 %v1873, %v2153
    %2155 = vmatprep.mubr.bf16.mxu0 %v453
    %2156 = vmatmul.mubr.bf16.gmra.mxu0 %v452
    %v2157 = vpop.f32.mrf.mxu0
    %v2158 = vadd.f32 %v1877, %v2157
    %v2159 = vpop.f32.mrf.mxu0
    %v2160 = vadd.f32 %v1879, %v2159
    %v2161 = vpop.f32.mrf.mxu0
    %v2162 = vadd.f32 %v1881, %v2161
    %v2163 = vpop.f32.mrf.mxu0
    %v2164 = vadd.f32 %v1883, %v2163
    %2165 = vmatprep.mubr.bf16.mxu0 %v459
    %2166 = vmatmul.mubr.bf16.gmra.mxu0 %v458
    %v2167 = vpop.f32.mrf.mxu0
    %v2168 = vadd.f32 %v1887, %v2167
    %v2169 = vpop.f32.mrf.mxu0
    %v2170 = vadd.f32 %v1889, %v2169
    %v2171 = vpop.f32.mrf.mxu0
    %v2172 = vadd.f32 %v1891, %v2171
    %v2173 = vpop.f32.mrf.mxu0
    %v2174 = vadd.f32 %v1893, %v2173
    %2175 = vmatprep.mubr.bf16.mxu0 %v465
    %2176 = vmatmul.mubr.bf16.gmra.mxu0 %v464
    %v2177 = vpop.f32.mrf.mxu0
    %v2178 = vadd.f32 %v1897, %v2177
    %v2179 = vpop.f32.mrf.mxu0
    %v2180 = vadd.f32 %v1899, %v2179
    %v2181 = vpop.f32.mrf.mxu0
    %v2182 = vadd.f32 %v1901, %v2181
    %v2183 = vpop.f32.mrf.mxu0
    %v2184 = vadd.f32 %v1903, %v2183
    %2185 = vmatprep.mubr.bf16.mxu0 %v471
    %2186 = vmatmul.mubr.bf16.gmra.mxu0 %v470
    %v2187 = vpop.f32.mrf.mxu0
    %v2188 = vadd.f32 %v1907, %v2187
    %v2189 = vpop.f32.mrf.mxu0
    %v2190 = vadd.f32 %v1909, %v2189
    %v2191 = vpop.f32.mrf.mxu0
    %v2192 = vadd.f32 %v1911, %v2191
    %v2193 = vpop.f32.mrf.mxu0
    %v2194 = vadd.f32 %v1913, %v2193
    %2195 = vmatprep.mubr.bf16.mxu0 %v477
    %2196 = vmatmul.mubr.bf16.gmra.mxu0 %v476
    %v2197 = vpop.f32.mrf.mxu0
    %v2198 = vadd.f32 %v1917, %v2197
    %v2199 = vpop.f32.mrf.mxu0
    %v2200 = vadd.f32 %v1919, %v2199
    %v2201 = vpop.f32.mrf.mxu0
    %v2202 = vadd.f32 %v1921, %v2201
    %v2203 = vpop.f32.mrf.mxu0
    %v2204 = vadd.f32 %v1923, %v2203
    %2205 = vmatprep.mubr.bf16.mxu0 %v483
    %2206 = vmatmul.mubr.bf16.gmra.mxu0 %v482
    %v2207 = vpop.f32.mrf.mxu0
    %v2208 = vadd.f32 %v1927, %v2207
    %v2209 = vpop.f32.mrf.mxu0
    %v2210 = vadd.f32 %v1929, %v2209
    %v2211 = vpop.f32.mrf.mxu0
    %v2212 = vadd.f32 %v1931, %v2211
    %v2213 = vpop.f32.mrf.mxu0
    %v2214 = vadd.f32 %v1933, %v2213
    %2215 = vmatprep.mubr.bf16.mxu0 %v489
    %2216 = vmatmul.mubr.bf16.gmra.mxu0 %v488
    %v2217 = vpop.f32.mrf.mxu0
    %v2218 = vadd.f32 %v1937, %v2217
    %v2219 = vpop.f32.mrf.mxu0
    %v2220 = vadd.f32 %v1939, %v2219
    %v2221 = vpop.f32.mrf.mxu0
    %v2222 = vadd.f32 %v1941, %v2221
    %v2223 = vpop.f32.mrf.mxu0
    %v2224 = vadd.f32 %v1943, %v2223
    %2225 = vmatprep.mubr.bf16.mxu0 %v495
    %2226 = vmatmul.mubr.bf16.gmra.mxu0 %v494
    %v2227 = vpop.f32.mrf.mxu0
    %v2228 = vadd.f32 %v1947, %v2227
    %v2229 = vpop.f32.mrf.mxu0
    %v2230 = vadd.f32 %v1949, %v2229
    %v2231 = vpop.f32.mrf.mxu0
    %v2232 = vpop.f32.mrf.mxu0
    %2233 = vdwg.mxu0
    %2234 = vmatprep.subr.bf16.mxu0 %v1445
    %2235 = vmatpush1.bf16.msra.mxu0 %v1444
    %2236 = vmatprep.subr.bf16.mxu0 %v1441
    %2237 = vmatpush1.bf16.msra.mxu0 %v1440
    %2238 = vmatprep.subr.bf16.mxu0 %v1437
    %2239 = vmatpush1.bf16.msra.mxu0 %v1436
    %2240 = vmatprep.subr.bf16.mxu0 %v1433
    %2241 = vmatpush1.bf16.msra.mxu0 %v1432
    %2242 = vmatprep.subr.bf16.mxu0 %v1429
    %2243 = vmatpush1.bf16.msra.mxu0 %v1428
    %2244 = vmatprep.subr.bf16.mxu0 %v1425
    %2245 = vmatpush1.bf16.msra.mxu0 %v1424
    %2246 = vmatprep.subr.bf16.mxu0 %v1421
    %2247 = vmatpush1.bf16.msra.mxu0 %v1420
    %2248 = vmatprep.subr.bf16.mxu0 %v1417
    %2249 = vmatpush1.bf16.msra.mxu0 %v1416
    %2250 = vmatprep.subr.bf16.mxu0 %v1477
    %2251 = vmatpush2.bf16.msra.mxu0 %v1476
    %2252 = vmatprep.subr.bf16.mxu0 %v1473
    %2253 = vmatpush2.bf16.msra.mxu0 %v1472
    %2254 = vmatprep.subr.bf16.mxu0 %v1469
    %2255 = vmatpush2.bf16.msra.mxu0 %v1468
    %2256 = vmatprep.subr.bf16.mxu0 %v1465
    %2257 = vmatpush2.bf16.msra.mxu0 %v1464
    %2258 = vmatprep.subr.bf16.mxu0 %v1461
    %2259 = vmatpush2.bf16.msra.mxu0 %v1460
    %2260 = vmatprep.subr.bf16.mxu0 %v1457
    %2261 = vmatpush2.bf16.msra.mxu0 %v1456
    %2262 = vmatprep.subr.bf16.mxu0 %v1453
    %2263 = vmatpush2.bf16.msra.mxu0 %v1452
    %2264 = vmatprep.subr.bf16.mxu0 %v1449
    %2265 = vmatpush2.bf16.msra.mxu0 %v1448
    %2266 = vmatprep.mubr.bf16.mxu0 %v353
    %2267 = vmatmul.mubr.bf16.gmra.mxu0 %v352
    %v2268 = vpop.f32.mrf.mxu0
    %v2269 = vadd.f32 %v1988, %v2268
    %v2270 = vpop.f32.mrf.mxu0
    %v2271 = vadd.f32 %v1990, %v2270
    %v2272 = vpop.f32.mrf.mxu0
    %v2273 = vadd.f32 %v1992, %v2272
    %v2274 = vpop.f32.mrf.mxu0
    %v2275 = vadd.f32 %v1994, %v2274
    %2276 = vmatprep.mubr.bf16.mxu0 %v359
    %2277 = vmatmul.mubr.bf16.gmra.mxu0 %v358
    %v2278 = vpop.f32.mrf.mxu0
    %v2279 = vadd.f32 %v1998, %v2278
    %v2280 = vpop.f32.mrf.mxu0
    %v2281 = vadd.f32 %v2000, %v2280
    %v2282 = vpop.f32.mrf.mxu0
    %v2283 = vadd.f32 %v2002, %v2282
    %v2284 = vpop.f32.mrf.mxu0
    %v2285 = vadd.f32 %v2004, %v2284
    %2286 = vmatprep.mubr.bf16.mxu0 %v365
    %2287 = vmatmul.mubr.bf16.gmra.mxu0 %v364
    %v2288 = vpop.f32.mrf.mxu0
    %v2289 = vadd.f32 %v2008, %v2288
    %v2290 = vpop.f32.mrf.mxu0
    %v2291 = vadd.f32 %v2010, %v2290
    %v2292 = vpop.f32.mrf.mxu0
    %v2293 = vadd.f32 %v2012, %v2292
    %v2294 = vpop.f32.mrf.mxu0
    %v2295 = vadd.f32 %v2014, %v2294
    %2296 = vmatprep.mubr.bf16.mxu0 %v371
    %2297 = vmatmul.mubr.bf16.gmra.mxu0 %v370
    %v2298 = vpop.f32.mrf.mxu0
    %v2299 = vadd.f32 %v2018, %v2298
    %v2300 = vpop.f32.mrf.mxu0
    %v2301 = vadd.f32 %v2020, %v2300
    %v2302 = vpop.f32.mrf.mxu0
    %v2303 = vadd.f32 %v2022, %v2302
    %v2304 = vpop.f32.mrf.mxu0
    %v2305 = vadd.f32 %v2024, %v2304
    %2306 = vmatprep.mubr.bf16.mxu0 %v377
    %2307 = vmatmul.mubr.bf16.gmra.mxu0 %v376
    %v2308 = vpop.f32.mrf.mxu0
    %v2309 = vadd.f32 %v2028, %v2308
    %v2310 = vpop.f32.mrf.mxu0
    %v2311 = vadd.f32 %v2030, %v2310
    %v2312 = vpop.f32.mrf.mxu0
    %v2313 = vadd.f32 %v2032, %v2312
    %v2314 = vpop.f32.mrf.mxu0
    %v2315 = vadd.f32 %v2034, %v2314
    %2316 = vmatprep.mubr.bf16.mxu0 %v383
    %2317 = vmatmul.mubr.bf16.gmra.mxu0 %v382
    %v2318 = vpop.f32.mrf.mxu0
    %v2319 = vadd.f32 %v2038, %v2318
    %v2320 = vpop.f32.mrf.mxu0
    %v2321 = vadd.f32 %v2040, %v2320
    %v2322 = vpop.f32.mrf.mxu0
    %v2323 = vadd.f32 %v2042, %v2322
    %v2324 = vpop.f32.mrf.mxu0
    %v2325 = vadd.f32 %v2044, %v2324
    %2326 = vmatprep.mubr.bf16.mxu0 %v389
    %2327 = vmatmul.mubr.bf16.gmra.mxu0 %v388
    %v2328 = vpop.f32.mrf.mxu0
    %v2329 = vadd.f32 %v2048, %v2328
    %v2330 = vpop.f32.mrf.mxu0
    %v2331 = vadd.f32 %v2050, %v2330
    %v2332 = vpop.f32.mrf.mxu0
    %v2333 = vadd.f32 %v2052, %v2332
    %v2334 = vpop.f32.mrf.mxu0
    %v2335 = vadd.f32 %v2054, %v2334
    %2336 = vmatprep.mubr.bf16.mxu0 %v395
    %2337 = vmatmul.mubr.bf16.gmra.mxu0 %v394
    %v2338 = vpop.f32.mrf.mxu0
    %v2339 = vadd.f32 %v2058, %v2338
    %v2340 = vpop.f32.mrf.mxu0
    %v2341 = vadd.f32 %v2060, %v2340
    %v2342 = vpop.f32.mrf.mxu0
    %v2343 = vadd.f32 %v2062, %v2342
    %v2344 = vpop.f32.mrf.mxu0
    %v2345 = vadd.f32 %v2064, %v2344
    %2346 = vmatprep.mubr.bf16.mxu0 %v401
    %2347 = vmatmul.mubr.bf16.gmra.mxu0 %v400
    %v2348 = vpop.f32.mrf.mxu0
    %v2349 = vadd.f32 %v2068, %v2348
    %v2350 = vpop.f32.mrf.mxu0
    %v2351 = vadd.f32 %v2070, %v2350
    %v2352 = vpop.f32.mrf.mxu0
    %v2353 = vadd.f32 %v2072, %v2352
    %v2354 = vpop.f32.mrf.mxu0
    %v2355 = vadd.f32 %v2074, %v2354
    %2356 = vmatprep.mubr.bf16.mxu0 %v407
    %2357 = vmatmul.mubr.bf16.gmra.mxu0 %v406
    %v2358 = vpop.f32.mrf.mxu0
    %v2359 = vadd.f32 %v2078, %v2358
    %v2360 = vpop.f32.mrf.mxu0
    %v2361 = vadd.f32 %v2080, %v2360
    %v2362 = vpop.f32.mrf.mxu0
    %v2363 = vadd.f32 %v2082, %v2362
    %v2364 = vpop.f32.mrf.mxu0
    %v2365 = vadd.f32 %v2084, %v2364
    %2366 = vmatprep.mubr.bf16.mxu0 %v413
    %2367 = vmatmul.mubr.bf16.gmra.mxu0 %v412
    %v2368 = vpop.f32.mrf.mxu0
    %v2369 = vadd.f32 %v2088, %v2368
    %v2370 = vpop.f32.mrf.mxu0
    %v2371 = vadd.f32 %v2090, %v2370
    %v2372 = vpop.f32.mrf.mxu0
    %v2373 = vadd.f32 %v2092, %v2372
    %v2374 = vpop.f32.mrf.mxu0
    %v2375 = vadd.f32 %v2094, %v2374
    %2376 = vmatprep.mubr.bf16.mxu0 %v419
    %2377 = vmatmul.mubr.bf16.gmra.mxu0 %v418
    %v2378 = vpop.f32.mrf.mxu0
    %v2379 = vadd.f32 %v2098, %v2378
    %v2380 = vpop.f32.mrf.mxu0
    %v2381 = vadd.f32 %v2100, %v2380
    %v2382 = vpop.f32.mrf.mxu0
    %v2383 = vadd.f32 %v2102, %v2382
    %v2384 = vpop.f32.mrf.mxu0
    %v2385 = vadd.f32 %v2104, %v2384
    %2386 = vmatprep.mubr.bf16.mxu0 %v425
    %2387 = vmatmul.mubr.bf16.gmra.mxu0 %v424
    %v2388 = vpop.f32.mrf.mxu0
    %v2389 = vadd.f32 %v2108, %v2388
    %v2390 = vpop.f32.mrf.mxu0
    %v2391 = vadd.f32 %v2110, %v2390
    %v2392 = vpop.f32.mrf.mxu0
    %v2393 = vadd.f32 %v2112, %v2392
    %v2394 = vpop.f32.mrf.mxu0
    %v2395 = vadd.f32 %v2114, %v2394
    %2396 = vmatprep.mubr.bf16.mxu0 %v431
    %2397 = vmatmul.mubr.bf16.gmra.mxu0 %v430
    %v2398 = vpop.f32.mrf.mxu0
    %v2399 = vadd.f32 %v2118, %v2398
    %v2400 = vpop.f32.mrf.mxu0
    %v2401 = vadd.f32 %v2120, %v2400
    %v2402 = vpop.f32.mrf.mxu0
    %v2403 = vadd.f32 %v2122, %v2402
    %v2404 = vpop.f32.mrf.mxu0
    %v2405 = vadd.f32 %v2124, %v2404
    %2406 = vmatprep.mubr.bf16.mxu0 %v437
    %2407 = vmatmul.mubr.bf16.gmra.mxu0 %v436
    %v2408 = vpop.f32.mrf.mxu0
    %v2409 = vadd.f32 %v2128, %v2408
    %v2410 = vpop.f32.mrf.mxu0
    %v2411 = vadd.f32 %v2130, %v2410
    %v2412 = vpop.f32.mrf.mxu0
    %v2413 = vadd.f32 %v2132, %v2412
    %v2414 = vpop.f32.mrf.mxu0
    %v2415 = vadd.f32 %v2134, %v2414
    %2416 = vmatprep.mubr.bf16.mxu0 %v443
    %2417 = vmatmul.mubr.bf16.gmra.mxu0 %v442
    %v2418 = vpop.f32.mrf.mxu0
    %v2419 = vadd.f32 %v2138, %v2418
    %v2420 = vpop.f32.mrf.mxu0
    %v2421 = vadd.f32 %v2140, %v2420
    %v2422 = vpop.f32.mrf.mxu0
    %v2423 = vadd.f32 %v2142, %v2422
    %v2424 = vpop.f32.mrf.mxu0
    %v2425 = vadd.f32 %v2144, %v2424
    %2426 = vmatprep.mubr.bf16.mxu0 %v449
    %2427 = vmatmul.mubr.bf16.gmra.mxu0 %v448
    %v2428 = vpop.f32.mrf.mxu0
    %v2429 = vadd.f32 %v2148, %v2428
    %v2430 = vpop.f32.mrf.mxu0
    %v2431 = vadd.f32 %v2150, %v2430
    %v2432 = vpop.f32.mrf.mxu0
    %v2433 = vadd.f32 %v2152, %v2432
    %v2434 = vpop.f32.mrf.mxu0
    %v2435 = vadd.f32 %v2154, %v2434
    %2436 = vmatprep.mubr.bf16.mxu0 %v455
    %2437 = vmatmul.mubr.bf16.gmra.mxu0 %v454
    %v2438 = vpop.f32.mrf.mxu0
    %v2439 = vadd.f32 %v2158, %v2438
    %v2440 = vpop.f32.mrf.mxu0
    %v2441 = vadd.f32 %v2160, %v2440
    %v2442 = vpop.f32.mrf.mxu0
    %v2443 = vadd.f32 %v2162, %v2442
    %v2444 = vpop.f32.mrf.mxu0
    %v2445 = vadd.f32 %v2164, %v2444
    %2446 = vmatprep.mubr.bf16.mxu0 %v461
    %2447 = vmatmul.mubr.bf16.gmra.mxu0 %v460
    %v2448 = vpop.f32.mrf.mxu0
    %v2449 = vadd.f32 %v2168, %v2448
    %v2450 = vpop.f32.mrf.mxu0
    %v2451 = vadd.f32 %v2170, %v2450
    %v2452 = vpop.f32.mrf.mxu0
    %v2453 = vadd.f32 %v2172, %v2452
    %v2454 = vpop.f32.mrf.mxu0
    %v2455 = vadd.f32 %v2174, %v2454
    %2456 = vmatprep.mubr.bf16.mxu0 %v467
    %2457 = vmatmul.mubr.bf16.gmra.mxu0 %v466
    %v2458 = vpop.f32.mrf.mxu0
    %v2459 = vadd.f32 %v2178, %v2458
    %v2460 = vpop.f32.mrf.mxu0
    %v2461 = vadd.f32 %v2180, %v2460
    %v2462 = vpop.f32.mrf.mxu0
    %v2463 = vadd.f32 %v2182, %v2462
    %v2464 = vpop.f32.mrf.mxu0
    %v2465 = vadd.f32 %v2184, %v2464
    %2466 = vmatprep.mubr.bf16.mxu0 %v473
    %2467 = vmatmul.mubr.bf16.gmra.mxu0 %v472
    %v2468 = vpop.f32.mrf.mxu0
    %v2469 = vadd.f32 %v2188, %v2468
    %v2470 = vpop.f32.mrf.mxu0
    %v2471 = vadd.f32 %v2190, %v2470
    %v2472 = vpop.f32.mrf.mxu0
    %v2473 = vadd.f32 %v2192, %v2472
    %v2474 = vpop.f32.mrf.mxu0
    %v2475 = vadd.f32 %v2194, %v2474
    %2476 = vmatprep.mubr.bf16.mxu0 %v479
    %2477 = vmatmul.mubr.bf16.gmra.mxu0 %v478
    %v2478 = vpop.f32.mrf.mxu0
    %v2479 = vadd.f32 %v2198, %v2478
    %v2480 = vpop.f32.mrf.mxu0
    %v2481 = vadd.f32 %v2200, %v2480
    %v2482 = vpop.f32.mrf.mxu0
    %v2483 = vadd.f32 %v2202, %v2482
    %v2484 = vpop.f32.mrf.mxu0
    %v2485 = vadd.f32 %v2204, %v2484
    %2486 = vmatprep.mubr.bf16.mxu0 %v485
    %2487 = vmatmul.mubr.bf16.gmra.mxu0 %v484
    %v2488 = vpop.f32.mrf.mxu0
    %v2489 = vadd.f32 %v2208, %v2488
    %v2490 = vpop.f32.mrf.mxu0
    %v2491 = vadd.f32 %v2210, %v2490
    %v2492 = vpop.f32.mrf.mxu0
    %v2493 = vadd.f32 %v2212, %v2492
    %v2494 = vpop.f32.mrf.mxu0
    %v2495 = vadd.f32 %v2214, %v2494
    %2496 = vmatprep.mubr.bf16.mxu0 %v491
    %2497 = vmatmul.mubr.bf16.gmra.mxu0 %v490
    %v2498 = vpop.f32.mrf.mxu0
    %v2499 = vadd.f32 %v2218, %v2498
    %v2500 = vpop.f32.mrf.mxu0
    %v2501 = vadd.f32 %v2220, %v2500
    %v2502 = vpop.f32.mrf.mxu0
    %v2503 = vadd.f32 %v2222, %v2502
    %v2504 = vpop.f32.mrf.mxu0
    %v2505 = vadd.f32 %v2224, %v2504
    %2506 = vmatprep.mubr.bf16.mxu0 %v497
    %2507 = vmatmul.mubr.bf16.gmra.mxu0 %v496
    %v2508 = vpop.f32.mrf.mxu0
    %v2509 = vadd.f32 %v2228, %v2508
    %v2510 = vpop.f32.mrf.mxu0
    %v2511 = vadd.f32 %v2230, %v2510
    %v2512 = vpop.f32.mrf.mxu0
    %v2513 = vpop.f32.mrf.mxu0
    %2514 = vdwg.mxu0
    %2515 = vmatprep.subr.bf16.mxu0 %v1319
    %2516 = vmatpush1.bf16.msra.mxu0 %v1318
    %2517 = vmatprep.subr.bf16.mxu0 %v1315
    %2518 = vmatpush1.bf16.msra.mxu0 %v1314
    %2519 = vmatprep.subr.bf16.mxu0 %v1311
    %2520 = vmatpush1.bf16.msra.mxu0 %v1310
    %2521 = vmatprep.subr.bf16.mxu0 %v1307
    %2522 = vmatpush1.bf16.msra.mxu0 %v1306
    %2523 = vmatprep.subr.bf16.mxu0 %v1303
    %2524 = vmatpush1.bf16.msra.mxu0 %v1302
    %2525 = vmatprep.subr.bf16.mxu0 %v1299
    %2526 = vmatpush1.bf16.msra.mxu0 %v1298
    %2527 = vmatprep.subr.bf16.mxu0 %v1295
    %2528 = vmatpush1.bf16.msra.mxu0 %v1294
    %2529 = vmatprep.subr.bf16.mxu0 %v1291
    %2530 = vmatpush1.bf16.msra.mxu0 %v1290
    %2531 = vmatprep.subr.bf16.mxu0 %v1351
    %2532 = vmatpush2.bf16.msra.mxu0 %v1350
    %2533 = vmatprep.subr.bf16.mxu0 %v1347
    %2534 = vmatpush2.bf16.msra.mxu0 %v1346
    %2535 = vmatprep.subr.bf16.mxu0 %v1343
    %2536 = vmatpush2.bf16.msra.mxu0 %v1342
    %2537 = vmatprep.subr.bf16.mxu0 %v1339
    %2538 = vmatpush2.bf16.msra.mxu0 %v1338
    %2539 = vmatprep.subr.bf16.mxu0 %v1335
    %2540 = vmatpush2.bf16.msra.mxu0 %v1334
    %2541 = vmatprep.subr.bf16.mxu0 %v1331
    %2542 = vmatpush2.bf16.msra.mxu0 %v1330
    %2543 = vmatprep.subr.bf16.mxu0 %v1327
    %2544 = vmatpush2.bf16.msra.mxu0 %v1326
    %2545 = vmatprep.subr.bf16.mxu0 %v1323
    %2546 = vmatpush2.bf16.msra.mxu0 %v1322
    %2547 = vmatprep.mubr.bf16.mxu0 %v349
    %2548 = vmatmul.mubr.bf16.gmra.mxu0 %v348
    %v2549 = vpop.f32.mrf.mxu0
    %v2550 = vadd.f32 %v703, %v2549
    %v2551 = vpop.f32.mrf.mxu0
    %v2552 = vadd.f32 %v707, %v2551
    %v2553 = vpop.f32.mrf.mxu0
    %v2554 = vadd.f32 %v703, %v2553
    %v2555 = vpop.f32.mrf.mxu0
    %v2556 = vadd.f32 %v707, %v2555
    %2557 = vmatprep.mubr.bf16.mxu0 %v355
    %2558 = vmatmul.mubr.bf16.gmra.mxu0 %v354
    %v2559 = vpop.f32.mrf.mxu0
    %v2560 = vadd.f32 %v703, %v2559
    %v2561 = vpop.f32.mrf.mxu0
    %v2562 = vadd.f32 %v707, %v2561
    %v2563 = vpop.f32.mrf.mxu0
    %v2564 = vadd.f32 %v703, %v2563
    %v2565 = vpop.f32.mrf.mxu0
    %v2566 = vadd.f32 %v707, %v2565
    %2567 = vmatprep.mubr.bf16.mxu0 %v361
    %2568 = vmatmul.mubr.bf16.gmra.mxu0 %v360
    %v2569 = vpop.f32.mrf.mxu0
    %v2570 = vadd.f32 %v703, %v2569
    %v2571 = vpop.f32.mrf.mxu0
    %v2572 = vadd.f32 %v707, %v2571
    %v2573 = vpop.f32.mrf.mxu0
    %v2574 = vadd.f32 %v703, %v2573
    %v2575 = vpop.f32.mrf.mxu0
    %v2576 = vadd.f32 %v707, %v2575
    %2577 = vmatprep.mubr.bf16.mxu0 %v367
    %2578 = vmatmul.mubr.bf16.gmra.mxu0 %v366
    %v2579 = vpop.f32.mrf.mxu0
    %v2580 = vadd.f32 %v703, %v2579
    %v2581 = vpop.f32.mrf.mxu0
    %v2582 = vadd.f32 %v707, %v2581
    %v2583 = vpop.f32.mrf.mxu0
    %v2584 = vadd.f32 %v703, %v2583
    %v2585 = vpop.f32.mrf.mxu0
    %v2586 = vadd.f32 %v707, %v2585
    %2587 = vmatprep.mubr.bf16.mxu0 %v373
    %2588 = vmatmul.mubr.bf16.gmra.mxu0 %v372
    %v2589 = vpop.f32.mrf.mxu0
    %v2590 = vadd.f32 %v703, %v2589
    %v2591 = vpop.f32.mrf.mxu0
    %v2592 = vadd.f32 %v707, %v2591
    %v2593 = vpop.f32.mrf.mxu0
    %v2594 = vadd.f32 %v703, %v2593
    %v2595 = vpop.f32.mrf.mxu0
    %v2596 = vadd.f32 %v707, %v2595
    %2597 = vmatprep.mubr.bf16.mxu0 %v379
    %2598 = vmatmul.mubr.bf16.gmra.mxu0 %v378
    %v2599 = vpop.f32.mrf.mxu0
    %v2600 = vadd.f32 %v703, %v2599
    %v2601 = vpop.f32.mrf.mxu0
    %v2602 = vadd.f32 %v707, %v2601
    %v2603 = vpop.f32.mrf.mxu0
    %v2604 = vadd.f32 %v703, %v2603
    %v2605 = vpop.f32.mrf.mxu0
    %v2606 = vadd.f32 %v707, %v2605
    %2607 = vmatprep.mubr.bf16.mxu0 %v385
    %2608 = vmatmul.mubr.bf16.gmra.mxu0 %v384
    %v2609 = vpop.f32.mrf.mxu0
    %v2610 = vadd.f32 %v703, %v2609
    %v2611 = vpop.f32.mrf.mxu0
    %v2612 = vadd.f32 %v707, %v2611
    %v2613 = vpop.f32.mrf.mxu0
    %v2614 = vadd.f32 %v703, %v2613
    %v2615 = vpop.f32.mrf.mxu0
    %v2616 = vadd.f32 %v707, %v2615
    %2617 = vmatprep.mubr.bf16.mxu0 %v391
    %2618 = vmatmul.mubr.bf16.gmra.mxu0 %v390
    %v2619 = vpop.f32.mrf.mxu0
    %v2620 = vadd.f32 %v703, %v2619
    %v2621 = vpop.f32.mrf.mxu0
    %v2622 = vadd.f32 %v707, %v2621
    %v2623 = vpop.f32.mrf.mxu0
    %v2624 = vadd.f32 %v703, %v2623
    %v2625 = vpop.f32.mrf.mxu0
    %v2626 = vadd.f32 %v707, %v2625
    %2627 = vmatprep.mubr.bf16.mxu0 %v397
    %2628 = vmatmul.mubr.bf16.gmra.mxu0 %v396
    %v2629 = vpop.f32.mrf.mxu0
    %v2630 = vadd.f32 %v703, %v2629
    %v2631 = vpop.f32.mrf.mxu0
    %v2632 = vadd.f32 %v707, %v2631
    %v2633 = vpop.f32.mrf.mxu0
    %v2634 = vadd.f32 %v703, %v2633
    %v2635 = vpop.f32.mrf.mxu0
    %v2636 = vadd.f32 %v707, %v2635
    %2637 = vmatprep.mubr.bf16.mxu0 %v403
    %2638 = vmatmul.mubr.bf16.gmra.mxu0 %v402
    %v2639 = vpop.f32.mrf.mxu0
    %v2640 = vadd.f32 %v703, %v2639
    %v2641 = vpop.f32.mrf.mxu0
    %v2642 = vadd.f32 %v707, %v2641
    %v2643 = vpop.f32.mrf.mxu0
    %v2644 = vadd.f32 %v703, %v2643
    %v2645 = vpop.f32.mrf.mxu0
    %v2646 = vadd.f32 %v707, %v2645
    %2647 = vmatprep.mubr.bf16.mxu0 %v409
    %2648 = vmatmul.mubr.bf16.gmra.mxu0 %v408
    %v2649 = vpop.f32.mrf.mxu0
    %v2650 = vadd.f32 %v703, %v2649
    %v2651 = vpop.f32.mrf.mxu0
    %v2652 = vadd.f32 %v707, %v2651
    %v2653 = vpop.f32.mrf.mxu0
    %v2654 = vadd.f32 %v703, %v2653
    %v2655 = vpop.f32.mrf.mxu0
    %v2656 = vadd.f32 %v707, %v2655
    %2657 = vmatprep.mubr.bf16.mxu0 %v415
    %2658 = vmatmul.mubr.bf16.gmra.mxu0 %v414
    %v2659 = vpop.f32.mrf.mxu0
    %v2660 = vadd.f32 %v703, %v2659
    %v2661 = vpop.f32.mrf.mxu0
    %v2662 = vadd.f32 %v707, %v2661
    %v2663 = vpop.f32.mrf.mxu0
    %v2664 = vadd.f32 %v703, %v2663
    %v2665 = vpop.f32.mrf.mxu0
    %v2666 = vadd.f32 %v707, %v2665
    %2667 = vmatprep.mubr.bf16.mxu0 %v421
    %2668 = vmatmul.mubr.bf16.gmra.mxu0 %v420
    %v2669 = vpop.f32.mrf.mxu0
    %v2670 = vadd.f32 %v703, %v2669
    %v2671 = vpop.f32.mrf.mxu0
    %v2672 = vadd.f32 %v707, %v2671
    %v2673 = vpop.f32.mrf.mxu0
    %v2674 = vadd.f32 %v703, %v2673
    %v2675 = vpop.f32.mrf.mxu0
    %v2676 = vadd.f32 %v707, %v2675
    %2677 = vmatprep.mubr.bf16.mxu0 %v427
    %2678 = vmatmul.mubr.bf16.gmra.mxu0 %v426
    %v2679 = vpop.f32.mrf.mxu0
    %v2680 = vadd.f32 %v703, %v2679
    %v2681 = vpop.f32.mrf.mxu0
    %v2682 = vadd.f32 %v707, %v2681
    %v2683 = vpop.f32.mrf.mxu0
    %v2684 = vadd.f32 %v703, %v2683
    %v2685 = vpop.f32.mrf.mxu0
    %v2686 = vadd.f32 %v707, %v2685
    %2687 = vmatprep.mubr.bf16.mxu0 %v433
    %2688 = vmatmul.mubr.bf16.gmra.mxu0 %v432
    %v2689 = vpop.f32.mrf.mxu0
    %v2690 = vadd.f32 %v703, %v2689
    %v2691 = vpop.f32.mrf.mxu0
    %v2692 = vadd.f32 %v707, %v2691
    %v2693 = vpop.f32.mrf.mxu0
    %v2694 = vadd.f32 %v703, %v2693
    %v2695 = vpop.f32.mrf.mxu0
    %v2696 = vadd.f32 %v707, %v2695
    %2697 = vmatprep.mubr.bf16.mxu0 %v439
    %2698 = vmatmul.mubr.bf16.gmra.mxu0 %v438
    %v2699 = vpop.f32.mrf.mxu0
    %v2700 = vadd.f32 %v703, %v2699
    %v2701 = vpop.f32.mrf.mxu0
    %v2702 = vadd.f32 %v707, %v2701
    %v2703 = vpop.f32.mrf.mxu0
    %v2704 = vadd.f32 %v703, %v2703
    %v2705 = vpop.f32.mrf.mxu0
    %v2706 = vadd.f32 %v707, %v2705
    %2707 = vmatprep.mubr.bf16.mxu0 %v445
    %2708 = vmatmul.mubr.bf16.gmra.mxu0 %v444
    %v2709 = vpop.f32.mrf.mxu0
    %v2710 = vadd.f32 %v703, %v2709
    %v2711 = vpop.f32.mrf.mxu0
    %v2712 = vadd.f32 %v707, %v2711
    %v2713 = vpop.f32.mrf.mxu0
    %v2714 = vadd.f32 %v703, %v2713
    %v2715 = vpop.f32.mrf.mxu0
    %v2716 = vadd.f32 %v707, %v2715
    %2717 = vmatprep.mubr.bf16.mxu0 %v451
    %2718 = vmatmul.mubr.bf16.gmra.mxu0 %v450
    %v2719 = vpop.f32.mrf.mxu0
    %v2720 = vadd.f32 %v703, %v2719
    %v2721 = vpop.f32.mrf.mxu0
    %v2722 = vadd.f32 %v707, %v2721
    %v2723 = vpop.f32.mrf.mxu0
    %v2724 = vadd.f32 %v703, %v2723
    %v2725 = vpop.f32.mrf.mxu0
    %v2726 = vadd.f32 %v707, %v2725
    %2727 = vmatprep.mubr.bf16.mxu0 %v457
    %2728 = vmatmul.mubr.bf16.gmra.mxu0 %v456
    %v2729 = vpop.f32.mrf.mxu0
    %v2730 = vadd.f32 %v703, %v2729
    %v2731 = vpop.f32.mrf.mxu0
    %v2732 = vadd.f32 %v707, %v2731
    %v2733 = vpop.f32.mrf.mxu0
    %v2734 = vadd.f32 %v703, %v2733
    %v2735 = vpop.f32.mrf.mxu0
    %v2736 = vadd.f32 %v707, %v2735
    %2737 = vmatprep.mubr.bf16.mxu0 %v463
    %2738 = vmatmul.mubr.bf16.gmra.mxu0 %v462
    %v2739 = vpop.f32.mrf.mxu0
    %v2740 = vadd.f32 %v703, %v2739
    %v2741 = vpop.f32.mrf.mxu0
    %v2742 = vadd.f32 %v707, %v2741
    %v2743 = vpop.f32.mrf.mxu0
    %v2744 = vadd.f32 %v703, %v2743
    %v2745 = vpop.f32.mrf.mxu0
    %v2746 = vadd.f32 %v707, %v2745
    %2747 = vmatprep.mubr.bf16.mxu0 %v469
    %2748 = vmatmul.mubr.bf16.gmra.mxu0 %v468
    %v2749 = vpop.f32.mrf.mxu0
    %v2750 = vadd.f32 %v703, %v2749
    %v2751 = vpop.f32.mrf.mxu0
    %v2752 = vadd.f32 %v707, %v2751
    %v2753 = vpop.f32.mrf.mxu0
    %v2754 = vadd.f32 %v703, %v2753
    %v2755 = vpop.f32.mrf.mxu0
    %v2756 = vadd.f32 %v707, %v2755
    %2757 = vmatprep.mubr.bf16.mxu0 %v475
    %2758 = vmatmul.mubr.bf16.gmra.mxu0 %v474
    %v2759 = vpop.f32.mrf.mxu0
    %v2760 = vadd.f32 %v703, %v2759
    %v2761 = vpop.f32.mrf.mxu0
    %v2762 = vadd.f32 %v707, %v2761
    %v2763 = vpop.f32.mrf.mxu0
    %v2764 = vadd.f32 %v703, %v2763
    %v2765 = vpop.f32.mrf.mxu0
    %v2766 = vadd.f32 %v707, %v2765
    %2767 = vmatprep.mubr.bf16.mxu0 %v481
    %2768 = vmatmul.mubr.bf16.gmra.mxu0 %v480
    %v2769 = vpop.f32.mrf.mxu0
    %v2770 = vadd.f32 %v703, %v2769
    %v2771 = vpop.f32.mrf.mxu0
    %v2772 = vadd.f32 %v707, %v2771
    %v2773 = vpop.f32.mrf.mxu0
    %v2774 = vadd.f32 %v703, %v2773
    %v2775 = vpop.f32.mrf.mxu0
    %v2776 = vadd.f32 %v707, %v2775
    %2777 = vmatprep.mubr.bf16.mxu0 %v487
    %2778 = vmatmul.mubr.bf16.gmra.mxu0 %v486
    %v2779 = vpop.f32.mrf.mxu0
    %v2780 = vadd.f32 %v703, %v2779
    %v2781 = vpop.f32.mrf.mxu0
    %v2782 = vadd.f32 %v707, %v2781
    %v2783 = vpop.f32.mrf.mxu0
    %v2784 = vadd.f32 %v703, %v2783
    %v2785 = vpop.f32.mrf.mxu0
    %v2786 = vadd.f32 %v707, %v2785
    %2787 = vmatprep.mubr.bf16.mxu0 %v493
    %2788 = vmatmul.mubr.bf16.gmra.mxu0 %v492
    %v2789 = vpop.f32.mrf.mxu0
    %v2790 = vadd.f32 %v703, %v2789
    %v2791 = vpop.f32.mrf.mxu0
    %v2792 = vadd.f32 %v707, %v2791
    %v2793 = vpop.f32.mrf.mxu0
    %v2794 = vpop.f32.mrf.mxu0
    %2795 = vdwg.mxu0
    %2796 = vmatprep.subr.bf16.mxu0 %v1383
    %2797 = vmatpush1.bf16.msra.mxu0 %v1382
    %2798 = vmatprep.subr.bf16.mxu0 %v1379
    %2799 = vmatpush1.bf16.msra.mxu0 %v1378
    %2800 = vmatprep.subr.bf16.mxu0 %v1375
    %2801 = vmatpush1.bf16.msra.mxu0 %v1374
    %2802 = vmatprep.subr.bf16.mxu0 %v1371
    %2803 = vmatpush1.bf16.msra.mxu0 %v1370
    %2804 = vmatprep.subr.bf16.mxu0 %v1367
    %2805 = vmatpush1.bf16.msra.mxu0 %v1366
    %2806 = vmatprep.subr.bf16.mxu0 %v1363
    %2807 = vmatpush1.bf16.msra.mxu0 %v1362
    %2808 = vmatprep.subr.bf16.mxu0 %v1359
    %2809 = vmatpush1.bf16.msra.mxu0 %v1358
    %2810 = vmatprep.subr.bf16.mxu0 %v1355
    %2811 = vmatpush1.bf16.msra.mxu0 %v1354
    %2812 = vmatprep.subr.bf16.mxu0 %v1415
    %2813 = vmatpush2.bf16.msra.mxu0 %v1414
    %2814 = vmatprep.subr.bf16.mxu0 %v1411
    %2815 = vmatpush2.bf16.msra.mxu0 %v1410
    %2816 = vmatprep.subr.bf16.mxu0 %v1407
    %2817 = vmatpush2.bf16.msra.mxu0 %v1406
    %2818 = vmatprep.subr.bf16.mxu0 %v1403
    %2819 = vmatpush2.bf16.msra.mxu0 %v1402
    %2820 = vmatprep.subr.bf16.mxu0 %v1399
    %2821 = vmatpush2.bf16.msra.mxu0 %v1398
    %2822 = vmatprep.subr.bf16.mxu0 %v1395
    %2823 = vmatpush2.bf16.msra.mxu0 %v1394
    %2824 = vmatprep.subr.bf16.mxu0 %v1391
    %2825 = vmatpush2.bf16.msra.mxu0 %v1390
    %2826 = vmatprep.subr.bf16.mxu0 %v1387
    %2827 = vmatpush2.bf16.msra.mxu0 %v1386
    %2828 = vmatprep.mubr.bf16.mxu0 %v351
    %2829 = vmatmul.mubr.bf16.gmra.mxu0 %v350
    %v2830 = vpop.f32.mrf.mxu0
    %v2831 = vadd.f32 %v2550, %v2830
    %v2832 = vpop.f32.mrf.mxu0
    %v2833 = vadd.f32 %v2552, %v2832
    %v2834 = vpop.f32.mrf.mxu0
    %v2835 = vadd.f32 %v2554, %v2834
    %v2836 = vpop.f32.mrf.mxu0
    %v2837 = vadd.f32 %v2556, %v2836
    %2838 = vmatprep.mubr.bf16.mxu0 %v357
    %2839 = vmatmul.mubr.bf16.gmra.mxu0 %v356
    %v2840 = vpop.f32.mrf.mxu0
    %v2841 = vadd.f32 %v2560, %v2840
    %v2842 = vpop.f32.mrf.mxu0
    %v2843 = vadd.f32 %v2562, %v2842
    %v2844 = vpop.f32.mrf.mxu0
    %v2845 = vadd.f32 %v2564, %v2844
    %v2846 = vpop.f32.mrf.mxu0
    %v2847 = vadd.f32 %v2566, %v2846
    %2848 = vmatprep.mubr.bf16.mxu0 %v363
    %2849 = vmatmul.mubr.bf16.gmra.mxu0 %v362
    %v2850 = vpop.f32.mrf.mxu0
    %v2851 = vadd.f32 %v2570, %v2850
    %v2852 = vpop.f32.mrf.mxu0
    %v2853 = vadd.f32 %v2572, %v2852
    %v2854 = vpop.f32.mrf.mxu0
    %v2855 = vadd.f32 %v2574, %v2854
    %v2856 = vpop.f32.mrf.mxu0
    %v2857 = vadd.f32 %v2576, %v2856
    %2858 = vmatprep.mubr.bf16.mxu0 %v369
    %2859 = vmatmul.mubr.bf16.gmra.mxu0 %v368
    %v2860 = vpop.f32.mrf.mxu0
    %v2861 = vadd.f32 %v2580, %v2860
    %v2862 = vpop.f32.mrf.mxu0
    %v2863 = vadd.f32 %v2582, %v2862
    %v2864 = vpop.f32.mrf.mxu0
    %v2865 = vadd.f32 %v2584, %v2864
    %v2866 = vpop.f32.mrf.mxu0
    %v2867 = vadd.f32 %v2586, %v2866
    %2868 = vmatprep.mubr.bf16.mxu0 %v375
    %2869 = vmatmul.mubr.bf16.gmra.mxu0 %v374
    %v2870 = vpop.f32.mrf.mxu0
    %v2871 = vadd.f32 %v2590, %v2870
    %v2872 = vpop.f32.mrf.mxu0
    %v2873 = vadd.f32 %v2592, %v2872
    %v2874 = vpop.f32.mrf.mxu0
    %v2875 = vadd.f32 %v2594, %v2874
    %v2876 = vpop.f32.mrf.mxu0
    %v2877 = vadd.f32 %v2596, %v2876
    %2878 = vmatprep.mubr.bf16.mxu0 %v381
    %2879 = vmatmul.mubr.bf16.gmra.mxu0 %v380
    %v2880 = vpop.f32.mrf.mxu0
    %v2881 = vadd.f32 %v2600, %v2880
    %v2882 = vpop.f32.mrf.mxu0
    %v2883 = vadd.f32 %v2602, %v2882
    %v2884 = vpop.f32.mrf.mxu0
    %v2885 = vadd.f32 %v2604, %v2884
    %v2886 = vpop.f32.mrf.mxu0
    %v2887 = vadd.f32 %v2606, %v2886
    %2888 = vmatprep.mubr.bf16.mxu0 %v387
    %2889 = vmatmul.mubr.bf16.gmra.mxu0 %v386
    %v2890 = vpop.f32.mrf.mxu0
    %v2891 = vadd.f32 %v2610, %v2890
    %v2892 = vpop.f32.mrf.mxu0
    %v2893 = vadd.f32 %v2612, %v2892
    %v2894 = vpop.f32.mrf.mxu0
    %v2895 = vadd.f32 %v2614, %v2894
    %v2896 = vpop.f32.mrf.mxu0
    %v2897 = vadd.f32 %v2616, %v2896
    %2898 = vmatprep.mubr.bf16.mxu0 %v393
    %2899 = vmatmul.mubr.bf16.gmra.mxu0 %v392
    %v2900 = vpop.f32.mrf.mxu0
    %v2901 = vadd.f32 %v2620, %v2900
    %v2902 = vpop.f32.mrf.mxu0
    %v2903 = vadd.f32 %v2622, %v2902
    %v2904 = vpop.f32.mrf.mxu0
    %v2905 = vadd.f32 %v2624, %v2904
    %v2906 = vpop.f32.mrf.mxu0
    %v2907 = vadd.f32 %v2626, %v2906
    %2908 = vmatprep.mubr.bf16.mxu0 %v399
    %2909 = vmatmul.mubr.bf16.gmra.mxu0 %v398
    %v2910 = vpop.f32.mrf.mxu0
    %v2911 = vadd.f32 %v2630, %v2910
    %v2912 = vpop.f32.mrf.mxu0
    %v2913 = vadd.f32 %v2632, %v2912
    %v2914 = vpop.f32.mrf.mxu0
    %v2915 = vadd.f32 %v2634, %v2914
    %v2916 = vpop.f32.mrf.mxu0
    %v2917 = vadd.f32 %v2636, %v2916
    %2918 = vmatprep.mubr.bf16.mxu0 %v405
    %2919 = vmatmul.mubr.bf16.gmra.mxu0 %v404
    %v2920 = vpop.f32.mrf.mxu0
    %v2921 = vadd.f32 %v2640, %v2920
    %v2922 = vpop.f32.mrf.mxu0
    %v2923 = vadd.f32 %v2642, %v2922
    %v2924 = vpop.f32.mrf.mxu0
    %v2925 = vadd.f32 %v2644, %v2924
    %v2926 = vpop.f32.mrf.mxu0
    %v2927 = vadd.f32 %v2646, %v2926
    %2928 = vmatprep.mubr.bf16.mxu0 %v411
    %2929 = vmatmul.mubr.bf16.gmra.mxu0 %v410
    %v2930 = vpop.f32.mrf.mxu0
    %v2931 = vadd.f32 %v2650, %v2930
    %v2932 = vpop.f32.mrf.mxu0
    %v2933 = vadd.f32 %v2652, %v2932
    %v2934 = vpop.f32.mrf.mxu0
    %v2935 = vadd.f32 %v2654, %v2934
    %v2936 = vpop.f32.mrf.mxu0
    %v2937 = vadd.f32 %v2656, %v2936
    %2938 = vmatprep.mubr.bf16.mxu0 %v417
    %2939 = vmatmul.mubr.bf16.gmra.mxu0 %v416
    %v2940 = vpop.f32.mrf.mxu0
    %v2941 = vadd.f32 %v2660, %v2940
    %v2942 = vpop.f32.mrf.mxu0
    %v2943 = vadd.f32 %v2662, %v2942
    %v2944 = vpop.f32.mrf.mxu0
    %v2945 = vadd.f32 %v2664, %v2944
    %v2946 = vpop.f32.mrf.mxu0
    %v2947 = vadd.f32 %v2666, %v2946
    %2948 = vmatprep.mubr.bf16.mxu0 %v423
    %2949 = vmatmul.mubr.bf16.gmra.mxu0 %v422
    %v2950 = vpop.f32.mrf.mxu0
    %v2951 = vadd.f32 %v2670, %v2950
    %v2952 = vpop.f32.mrf.mxu0
    %v2953 = vadd.f32 %v2672, %v2952
    %v2954 = vpop.f32.mrf.mxu0
    %v2955 = vadd.f32 %v2674, %v2954
    %v2956 = vpop.f32.mrf.mxu0
    %v2957 = vadd.f32 %v2676, %v2956
    %2958 = vmatprep.mubr.bf16.mxu0 %v429
    %2959 = vmatmul.mubr.bf16.gmra.mxu0 %v428
    %v2960 = vpop.f32.mrf.mxu0
    %v2961 = vadd.f32 %v2680, %v2960
    %v2962 = vpop.f32.mrf.mxu0
    %v2963 = vadd.f32 %v2682, %v2962
    %v2964 = vpop.f32.mrf.mxu0
    %v2965 = vadd.f32 %v2684, %v2964
    %v2966 = vpop.f32.mrf.mxu0
    %v2967 = vadd.f32 %v2686, %v2966
    %2968 = vmatprep.mubr.bf16.mxu0 %v435
    %2969 = vmatmul.mubr.bf16.gmra.mxu0 %v434
    %v2970 = vpop.f32.mrf.mxu0
    %v2971 = vadd.f32 %v2690, %v2970
    %v2972 = vpop.f32.mrf.mxu0
    %v2973 = vadd.f32 %v2692, %v2972
    %v2974 = vpop.f32.mrf.mxu0
    %v2975 = vadd.f32 %v2694, %v2974
    %v2976 = vpop.f32.mrf.mxu0
    %v2977 = vadd.f32 %v2696, %v2976
    %2978 = vmatprep.mubr.bf16.mxu0 %v441
    %2979 = vmatmul.mubr.bf16.gmra.mxu0 %v440
    %v2980 = vpop.f32.mrf.mxu0
    %v2981 = vadd.f32 %v2700, %v2980
    %v2982 = vpop.f32.mrf.mxu0
    %v2983 = vadd.f32 %v2702, %v2982
    %v2984 = vpop.f32.mrf.mxu0
    %v2985 = vadd.f32 %v2704, %v2984
    %v2986 = vpop.f32.mrf.mxu0
    %v2987 = vadd.f32 %v2706, %v2986
    %2988 = vmatprep.mubr.bf16.mxu0 %v447
    %2989 = vmatmul.mubr.bf16.gmra.mxu0 %v446
    %v2990 = vpop.f32.mrf.mxu0
    %v2991 = vadd.f32 %v2710, %v2990
    %v2992 = vpop.f32.mrf.mxu0
    %v2993 = vadd.f32 %v2712, %v2992
    %v2994 = vpop.f32.mrf.mxu0
    %v2995 = vadd.f32 %v2714, %v2994
    %v2996 = vpop.f32.mrf.mxu0
    %v2997 = vadd.f32 %v2716, %v2996
    %2998 = vmatprep.mubr.bf16.mxu0 %v453
    %2999 = vmatmul.mubr.bf16.gmra.mxu0 %v452
    %v3000 = vpop.f32.mrf.mxu0
    %v3001 = vadd.f32 %v2720, %v3000
    %v3002 = vpop.f32.mrf.mxu0
    %v3003 = vadd.f32 %v2722, %v3002
    %v3004 = vpop.f32.mrf.mxu0
    %v3005 = vadd.f32 %v2724, %v3004
    %v3006 = vpop.f32.mrf.mxu0
    %v3007 = vadd.f32 %v2726, %v3006
    %3008 = vmatprep.mubr.bf16.mxu0 %v459
    %3009 = vmatmul.mubr.bf16.gmra.mxu0 %v458
    %v3010 = vpop.f32.mrf.mxu0
    %v3011 = vadd.f32 %v2730, %v3010
    %v3012 = vpop.f32.mrf.mxu0
    %v3013 = vadd.f32 %v2732, %v3012
    %v3014 = vpop.f32.mrf.mxu0
    %v3015 = vadd.f32 %v2734, %v3014
    %v3016 = vpop.f32.mrf.mxu0
    %v3017 = vadd.f32 %v2736, %v3016
    %3018 = vmatprep.mubr.bf16.mxu0 %v465
    %3019 = vmatmul.mubr.bf16.gmra.mxu0 %v464
    %v3020 = vpop.f32.mrf.mxu0
    %v3021 = vadd.f32 %v2740, %v3020
    %v3022 = vpop.f32.mrf.mxu0
    %v3023 = vadd.f32 %v2742, %v3022
    %v3024 = vpop.f32.mrf.mxu0
    %v3025 = vadd.f32 %v2744, %v3024
    %v3026 = vpop.f32.mrf.mxu0
    %v3027 = vadd.f32 %v2746, %v3026
    %3028 = vmatprep.mubr.bf16.mxu0 %v471
    %3029 = vmatmul.mubr.bf16.gmra.mxu0 %v470
    %v3030 = vpop.f32.mrf.mxu0
    %v3031 = vadd.f32 %v2750, %v3030
    %v3032 = vpop.f32.mrf.mxu0
    %v3033 = vadd.f32 %v2752, %v3032
    %v3034 = vpop.f32.mrf.mxu0
    %v3035 = vadd.f32 %v2754, %v3034
    %v3036 = vpop.f32.mrf.mxu0
    %v3037 = vadd.f32 %v2756, %v3036
    %3038 = vmatprep.mubr.bf16.mxu0 %v477
    %3039 = vmatmul.mubr.bf16.gmra.mxu0 %v476
    %v3040 = vpop.f32.mrf.mxu0
    %v3041 = vadd.f32 %v2760, %v3040
    %v3042 = vpop.f32.mrf.mxu0
    %v3043 = vadd.f32 %v2762, %v3042
    %v3044 = vpop.f32.mrf.mxu0
    %v3045 = vadd.f32 %v2764, %v3044
    %v3046 = vpop.f32.mrf.mxu0
    %v3047 = vadd.f32 %v2766, %v3046
    %3048 = vmatprep.mubr.bf16.mxu0 %v483
    %3049 = vmatmul.mubr.bf16.gmra.mxu0 %v482
    %v3050 = vpop.f32.mrf.mxu0
    %v3051 = vadd.f32 %v2770, %v3050
    %v3052 = vpop.f32.mrf.mxu0
    %v3053 = vadd.f32 %v2772, %v3052
    %v3054 = vpop.f32.mrf.mxu0
    %v3055 = vadd.f32 %v2774, %v3054
    %v3056 = vpop.f32.mrf.mxu0
    %v3057 = vadd.f32 %v2776, %v3056
    %3058 = vmatprep.mubr.bf16.mxu0 %v489
    %3059 = vmatmul.mubr.bf16.gmra.mxu0 %v488
    %v3060 = vpop.f32.mrf.mxu0
    %v3061 = vadd.f32 %v2780, %v3060
    %v3062 = vpop.f32.mrf.mxu0
    %v3063 = vadd.f32 %v2782, %v3062
    %v3064 = vpop.f32.mrf.mxu0
    %v3065 = vadd.f32 %v2784, %v3064
    %v3066 = vpop.f32.mrf.mxu0
    %v3067 = vadd.f32 %v2786, %v3066
    %3068 = vmatprep.mubr.bf16.mxu0 %v495
    %3069 = vmatmul.mubr.bf16.gmra.mxu0 %v494
    %v3070 = vpop.f32.mrf.mxu0
    %v3071 = vadd.f32 %v2790, %v3070
    %v3072 = vpop.f32.mrf.mxu0
    %v3073 = vadd.f32 %v2792, %v3072
    %v3074 = vpop.f32.mrf.mxu0
    %v3075 = vpop.f32.mrf.mxu0
    %3076 = vdwg.mxu0
    %3077 = vmatprep.subr.bf16.mxu0 %v1447
    %3078 = vmatpush1.bf16.msra.mxu0 %v1446
    %3079 = vmatprep.subr.bf16.mxu0 %v1443
    %3080 = vmatpush1.bf16.msra.mxu0 %v1442
    %3081 = vmatprep.subr.bf16.mxu0 %v1439
    %3082 = vmatpush1.bf16.msra.mxu0 %v1438
    %3083 = vmatprep.subr.bf16.mxu0 %v1435
    %3084 = vmatpush1.bf16.msra.mxu0 %v1434
    %3085 = vmatprep.subr.bf16.mxu0 %v1431
    %3086 = vmatpush1.bf16.msra.mxu0 %v1430
    %3087 = vmatprep.subr.bf16.mxu0 %v1427
    %3088 = vmatpush1.bf16.msra.mxu0 %v1426
    %3089 = vmatprep.subr.bf16.mxu0 %v1423
    %3090 = vmatpush1.bf16.msra.mxu0 %v1422
    %3091 = vmatprep.subr.bf16.mxu0 %v1419
    %3092 = vmatpush1.bf16.msra.mxu0 %v1418
    %3093 = vmatprep.subr.bf16.mxu0 %v1479
    %3094 = vmatpush2.bf16.msra.mxu0 %v1478
    %3095 = vmatprep.subr.bf16.mxu0 %v1475
    %3096 = vmatpush2.bf16.msra.mxu0 %v1474
    %3097 = vmatprep.subr.bf16.mxu0 %v1471
    %3098 = vmatpush2.bf16.msra.mxu0 %v1470
    %3099 = vmatprep.subr.bf16.mxu0 %v1467
    %3100 = vmatpush2.bf16.msra.mxu0 %v1466
    %3101 = vmatprep.subr.bf16.mxu0 %v1463
    %3102 = vmatpush2.bf16.msra.mxu0 %v1462
    %3103 = vmatprep.subr.bf16.mxu0 %v1459
    %3104 = vmatpush2.bf16.msra.mxu0 %v1458
    %3105 = vmatprep.subr.bf16.mxu0 %v1455
    %3106 = vmatpush2.bf16.msra.mxu0 %v1454
    %3107 = vmatprep.subr.bf16.mxu0 %v1451
    %3108 = vmatpush2.bf16.msra.mxu0 %v1450
    %3109 = vmatprep.mubr.bf16.mxu0 %v353
    %3110 = vmatmul.mubr.bf16.gmra.mxu0 %v352
    %v3111 = vpop.f32.mrf.mxu0
    %v3112 = vadd.f32 %v2831, %v3111
    %v3113 = vpop.f32.mrf.mxu0
    %v3114 = vadd.f32 %v2833, %v3113
    %v3115 = vpop.f32.mrf.mxu0
    %v3116 = vadd.f32 %v2835, %v3115
    %v3117 = vpop.f32.mrf.mxu0
    %v3118 = vadd.f32 %v2837, %v3117
    %3119 = vmatprep.mubr.bf16.mxu0 %v359
    %3120 = vmatmul.mubr.bf16.gmra.mxu0 %v358
    %v3121 = vpop.f32.mrf.mxu0
    %v3122 = vadd.f32 %v2841, %v3121
    %v3123 = vpop.f32.mrf.mxu0
    %v3124 = vadd.f32 %v2843, %v3123
    %v3125 = vpop.f32.mrf.mxu0
    %v3126 = vadd.f32 %v2845, %v3125
    %v3127 = vpop.f32.mrf.mxu0
    %v3128 = vadd.f32 %v2847, %v3127
    %3129 = vmatprep.mubr.bf16.mxu0 %v365
    %3130 = vmatmul.mubr.bf16.gmra.mxu0 %v364
    %v3131 = vpop.f32.mrf.mxu0
    %v3132 = vadd.f32 %v2851, %v3131
    %v3133 = vpop.f32.mrf.mxu0
    %v3134 = vadd.f32 %v2853, %v3133
    %v3135 = vpop.f32.mrf.mxu0
    %v3136 = vadd.f32 %v2855, %v3135
    %v3137 = vpop.f32.mrf.mxu0
    %v3138 = vadd.f32 %v2857, %v3137
    %3139 = vmatprep.mubr.bf16.mxu0 %v371
    %3140 = vmatmul.mubr.bf16.gmra.mxu0 %v370
    %v3141 = vpop.f32.mrf.mxu0
    %v3142 = vadd.f32 %v2861, %v3141
    %v3143 = vpop.f32.mrf.mxu0
    %v3144 = vadd.f32 %v2863, %v3143
    %v3145 = vpop.f32.mrf.mxu0
    %v3146 = vadd.f32 %v2865, %v3145
    %v3147 = vpop.f32.mrf.mxu0
    %v3148 = vadd.f32 %v2867, %v3147
    %3149 = vmatprep.mubr.bf16.mxu0 %v377
    %3150 = vmatmul.mubr.bf16.gmra.mxu0 %v376
    %v3151 = vpop.f32.mrf.mxu0
    %v3152 = vadd.f32 %v2871, %v3151
    %v3153 = vpop.f32.mrf.mxu0
    %v3154 = vadd.f32 %v2873, %v3153
    %v3155 = vpop.f32.mrf.mxu0
    %v3156 = vadd.f32 %v2875, %v3155
    %v3157 = vpop.f32.mrf.mxu0
    %v3158 = vadd.f32 %v2877, %v3157
    %3159 = vmatprep.mubr.bf16.mxu0 %v383
    %3160 = vmatmul.mubr.bf16.gmra.mxu0 %v382
    %v3161 = vpop.f32.mrf.mxu0
    %v3162 = vadd.f32 %v2881, %v3161
    %v3163 = vpop.f32.mrf.mxu0
    %v3164 = vadd.f32 %v2883, %v3163
    %v3165 = vpop.f32.mrf.mxu0
    %v3166 = vadd.f32 %v2885, %v3165
    %v3167 = vpop.f32.mrf.mxu0
    %v3168 = vadd.f32 %v2887, %v3167
    %3169 = vmatprep.mubr.bf16.mxu0 %v389
    %3170 = vmatmul.mubr.bf16.gmra.mxu0 %v388
    %v3171 = vpop.f32.mrf.mxu0
    %v3172 = vadd.f32 %v2891, %v3171
    %v3173 = vpop.f32.mrf.mxu0
    %v3174 = vadd.f32 %v2893, %v3173
    %v3175 = vpop.f32.mrf.mxu0
    %v3176 = vadd.f32 %v2895, %v3175
    %v3177 = vpop.f32.mrf.mxu0
    %v3178 = vadd.f32 %v2897, %v3177
    %3179 = vmatprep.mubr.bf16.mxu0 %v395
    %3180 = vmatmul.mubr.bf16.gmra.mxu0 %v394
    %v3181 = vpop.f32.mrf.mxu0
    %v3182 = vadd.f32 %v2901, %v3181
    %v3183 = vpop.f32.mrf.mxu0
    %v3184 = vadd.f32 %v2903, %v3183
    %v3185 = vpop.f32.mrf.mxu0
    %v3186 = vadd.f32 %v2905, %v3185
    %v3187 = vpop.f32.mrf.mxu0
    %v3188 = vadd.f32 %v2907, %v3187
    %3189 = vmatprep.mubr.bf16.mxu0 %v401
    %3190 = vmatmul.mubr.bf16.gmra.mxu0 %v400
    %v3191 = vpop.f32.mrf.mxu0
    %v3192 = vadd.f32 %v2911, %v3191
    %v3193 = vpop.f32.mrf.mxu0
    %v3194 = vadd.f32 %v2913, %v3193
    %v3195 = vpop.f32.mrf.mxu0
    %v3196 = vadd.f32 %v2915, %v3195
    %v3197 = vpop.f32.mrf.mxu0
    %v3198 = vadd.f32 %v2917, %v3197
    %3199 = vmatprep.mubr.bf16.mxu0 %v407
    %3200 = vmatmul.mubr.bf16.gmra.mxu0 %v406
    %v3201 = vpop.f32.mrf.mxu0
    %v3202 = vadd.f32 %v2921, %v3201
    %v3203 = vpop.f32.mrf.mxu0
    %v3204 = vadd.f32 %v2923, %v3203
    %v3205 = vpop.f32.mrf.mxu0
    %v3206 = vadd.f32 %v2925, %v3205
    %v3207 = vpop.f32.mrf.mxu0
    %v3208 = vadd.f32 %v2927, %v3207
    %3209 = vmatprep.mubr.bf16.mxu0 %v413
    %3210 = vmatmul.mubr.bf16.gmra.mxu0 %v412
    %v3211 = vpop.f32.mrf.mxu0
    %v3212 = vadd.f32 %v2931, %v3211
    %v3213 = vpop.f32.mrf.mxu0
    %v3214 = vadd.f32 %v2933, %v3213
    %v3215 = vpop.f32.mrf.mxu0
    %v3216 = vadd.f32 %v2935, %v3215
    %v3217 = vpop.f32.mrf.mxu0
    %v3218 = vadd.f32 %v2937, %v3217
    %3219 = vmatprep.mubr.bf16.mxu0 %v419
    %3220 = vmatmul.mubr.bf16.gmra.mxu0 %v418
    %v3221 = vpop.f32.mrf.mxu0
    %v3222 = vadd.f32 %v2941, %v3221
    %v3223 = vpop.f32.mrf.mxu0
    %v3224 = vadd.f32 %v2943, %v3223
    %v3225 = vpop.f32.mrf.mxu0
    %v3226 = vadd.f32 %v2945, %v3225
    %v3227 = vpop.f32.mrf.mxu0
    %v3228 = vadd.f32 %v2947, %v3227
    %3229 = vmatprep.mubr.bf16.mxu0 %v425
    %3230 = vmatmul.mubr.bf16.gmra.mxu0 %v424
    %v3231 = vpop.f32.mrf.mxu0
    %v3232 = vadd.f32 %v2951, %v3231
    %v3233 = vpop.f32.mrf.mxu0
    %v3234 = vadd.f32 %v2953, %v3233
    %v3235 = vpop.f32.mrf.mxu0
    %v3236 = vadd.f32 %v2955, %v3235
    %v3237 = vpop.f32.mrf.mxu0
    %v3238 = vadd.f32 %v2957, %v3237
    %3239 = vmatprep.mubr.bf16.mxu0 %v431
    %3240 = vmatmul.mubr.bf16.gmra.mxu0 %v430
    %v3241 = vpop.f32.mrf.mxu0
    %v3242 = vadd.f32 %v2961, %v3241
    %v3243 = vpop.f32.mrf.mxu0
    %v3244 = vadd.f32 %v2963, %v3243
    %v3245 = vpop.f32.mrf.mxu0
    %v3246 = vadd.f32 %v2965, %v3245
    %v3247 = vpop.f32.mrf.mxu0
    %v3248 = vadd.f32 %v2967, %v3247
    %3249 = vmatprep.mubr.bf16.mxu0 %v437
    %3250 = vmatmul.mubr.bf16.gmra.mxu0 %v436
    %v3251 = vpop.f32.mrf.mxu0
    %v3252 = vadd.f32 %v2971, %v3251
    %v3253 = vpop.f32.mrf.mxu0
    %v3254 = vadd.f32 %v2973, %v3253
    %v3255 = vpop.f32.mrf.mxu0
    %v3256 = vadd.f32 %v2975, %v3255
    %v3257 = vpop.f32.mrf.mxu0
    %v3258 = vadd.f32 %v2977, %v3257
    %3259 = vmatprep.mubr.bf16.mxu0 %v443
    %3260 = vmatmul.mubr.bf16.gmra.mxu0 %v442
    %v3261 = vpop.f32.mrf.mxu0
    %v3262 = vadd.f32 %v2981, %v3261
    %v3263 = vpop.f32.mrf.mxu0
    %v3264 = vadd.f32 %v2983, %v3263
    %v3265 = vpop.f32.mrf.mxu0
    %v3266 = vadd.f32 %v2985, %v3265
    %v3267 = vpop.f32.mrf.mxu0
    %v3268 = vadd.f32 %v2987, %v3267
    %3269 = vmatprep.mubr.bf16.mxu0 %v449
    %3270 = vmatmul.mubr.bf16.gmra.mxu0 %v448
    %v3271 = vpop.f32.mrf.mxu0
    %v3272 = vadd.f32 %v2991, %v3271
    %v3273 = vpop.f32.mrf.mxu0
    %v3274 = vadd.f32 %v2993, %v3273
    %v3275 = vpop.f32.mrf.mxu0
    %v3276 = vadd.f32 %v2995, %v3275
    %v3277 = vpop.f32.mrf.mxu0
    %v3278 = vadd.f32 %v2997, %v3277
    %3279 = vmatprep.mubr.bf16.mxu0 %v455
    %3280 = vmatmul.mubr.bf16.gmra.mxu0 %v454
    %v3281 = vpop.f32.mrf.mxu0
    %v3282 = vadd.f32 %v3001, %v3281
    %v3283 = vpop.f32.mrf.mxu0
    %v3284 = vadd.f32 %v3003, %v3283
    %v3285 = vpop.f32.mrf.mxu0
    %v3286 = vadd.f32 %v3005, %v3285
    %v3287 = vpop.f32.mrf.mxu0
    %v3288 = vadd.f32 %v3007, %v3287
    %3289 = vmatprep.mubr.bf16.mxu0 %v461
    %3290 = vmatmul.mubr.bf16.gmra.mxu0 %v460
    %v3291 = vpop.f32.mrf.mxu0
    %v3292 = vadd.f32 %v3011, %v3291
    %v3293 = vpop.f32.mrf.mxu0
    %v3294 = vadd.f32 %v3013, %v3293
    %v3295 = vpop.f32.mrf.mxu0
    %v3296 = vadd.f32 %v3015, %v3295
    %v3297 = vpop.f32.mrf.mxu0
    %v3298 = vadd.f32 %v3017, %v3297
    %3299 = vmatprep.mubr.bf16.mxu0 %v467
    %3300 = vmatmul.mubr.bf16.gmra.mxu0 %v466
    %v3301 = vpop.f32.mrf.mxu0
    %v3302 = vadd.f32 %v3021, %v3301
    %v3303 = vpop.f32.mrf.mxu0
    %v3304 = vadd.f32 %v3023, %v3303
    %v3305 = vpop.f32.mrf.mxu0
    %v3306 = vadd.f32 %v3025, %v3305
    %v3307 = vpop.f32.mrf.mxu0
    %v3308 = vadd.f32 %v3027, %v3307
    %3309 = vmatprep.mubr.bf16.mxu0 %v473
    %3310 = vmatmul.mubr.bf16.gmra.mxu0 %v472
    %v3311 = vpop.f32.mrf.mxu0
    %v3312 = vadd.f32 %v3031, %v3311
    %v3313 = vpop.f32.mrf.mxu0
    %v3314 = vadd.f32 %v3033, %v3313
    %v3315 = vpop.f32.mrf.mxu0
    %v3316 = vadd.f32 %v3035, %v3315
    %v3317 = vpop.f32.mrf.mxu0
    %v3318 = vadd.f32 %v3037, %v3317
    %3319 = vmatprep.mubr.bf16.mxu0 %v479
    %3320 = vmatmul.mubr.bf16.gmra.mxu0 %v478
    %v3321 = vpop.f32.mrf.mxu0
    %v3322 = vadd.f32 %v3041, %v3321
    %v3323 = vpop.f32.mrf.mxu0
    %v3324 = vadd.f32 %v3043, %v3323
    %v3325 = vpop.f32.mrf.mxu0
    %v3326 = vadd.f32 %v3045, %v3325
    %v3327 = vpop.f32.mrf.mxu0
    %v3328 = vadd.f32 %v3047, %v3327
    %3329 = vmatprep.mubr.bf16.mxu0 %v485
    %3330 = vmatmul.mubr.bf16.gmra.mxu0 %v484
    %v3331 = vpop.f32.mrf.mxu0
    %v3332 = vadd.f32 %v3051, %v3331
    %v3333 = vpop.f32.mrf.mxu0
    %v3334 = vadd.f32 %v3053, %v3333
    %v3335 = vpop.f32.mrf.mxu0
    %v3336 = vadd.f32 %v3055, %v3335
    %v3337 = vpop.f32.mrf.mxu0
    %v3338 = vadd.f32 %v3057, %v3337
    %3339 = vmatprep.mubr.bf16.mxu0 %v491
    %3340 = vmatmul.mubr.bf16.gmra.mxu0 %v490
    %v3341 = vpop.f32.mrf.mxu0
    %v3342 = vadd.f32 %v3061, %v3341
    %v3343 = vpop.f32.mrf.mxu0
    %v3344 = vadd.f32 %v3063, %v3343
    %v3345 = vpop.f32.mrf.mxu0
    %v3346 = vadd.f32 %v3065, %v3345
    %v3347 = vpop.f32.mrf.mxu0
    %v3348 = vadd.f32 %v3067, %v3347
    %3349 = vmatprep.mubr.bf16.mxu0 %v497
    %3350 = vmatmul.mubr.bf16.gmra.mxu0 %v496
    %v3351 = vpop.f32.mrf.mxu0
    %v3352 = vadd.f32 %v3071, %v3351
    %v3353 = vpop.f32.mrf.mxu0
    %v3354 = vadd.f32 %v3073, %v3353
    %v3355 = vpop.f32.mrf.mxu0
    %v3356 = vpop.f32.mrf.mxu0
    %3357 = vdwg.mxu0
    %3358 = vst [vmem:[#allocation8] sm:$0xff] %v2269
    %3359 = vst [vmem:[#allocation8 + $0x8] sm:$0xff] %v2271
    %3360 = vst [vmem:[#allocation8 + $0x10] sm:$0xff] %v3112
    %3361 = vst [vmem:[#allocation8 + $0x18] sm:$0xff] %v3114
    %3362 = vst [vmem:[#allocation8 + $0x20] sm:$0xff] %v2273
    %3363 = vst [vmem:[#allocation8 + $0x28] sm:$0xff] %v2275
    %3364 = vst [vmem:[#allocation8 + $0x30] sm:$0xff] %v3116
    %3365 = vst [vmem:[#allocation8 + $0x38] sm:$0xff] %v3118
    %3366 = vst [vmem:[#allocation8 + $0x40] sm:$0xff] %v2279
    %3367 = vst [vmem:[#allocation8 + $0x48] sm:$0xff] %v2281
    %3368 = vst [vmem:[#allocation8 + $0x50] sm:$0xff] %v3122
    %3369 = vst [vmem:[#allocation8 + $0x58] sm:$0xff] %v3124
    %3370 = vst [vmem:[#allocation8 + $0x60] sm:$0xff] %v2283
    %3371 = vst [vmem:[#allocation8 + $0x68] sm:$0xff] %v2285
    %3372 = vst [vmem:[#allocation8 + $0x70] sm:$0xff] %v3126
    %3373 = vst [vmem:[#allocation8 + $0x78] sm:$0xff] %v3128
    %3374 = vst [vmem:[#allocation8 + $0x80] sm:$0xff] %v2289
    %3375 = vst [vmem:[#allocation8 + $0x88] sm:$0xff] %v2291
    %3376 = vst [vmem:[#allocation8 + $0x90] sm:$0xff] %v3132
    %3377 = vst [vmem:[#allocation8 + $0x98] sm:$0xff] %v3134
    %3378 = vst [vmem:[#allocation8 + $0xa0] sm:$0xff] %v2293
    %3379 = vst [vmem:[#allocation8 + $0xa8] sm:$0xff] %v2295
    %3380 = vst [vmem:[#allocation8 + $0xb0] sm:$0xff] %v3136
    %3381 = vst [vmem:[#allocation8 + $0xb8] sm:$0xff] %v3138
    %3382 = vst [vmem:[#allocation8 + $0xc0] sm:$0xff] %v2299
    %3383 = vst [vmem:[#allocation8 + $0xc8] sm:$0xff] %v2301
    %3384 = vst [vmem:[#allocation8 + $0xd0] sm:$0xff] %v3142
    %3385 = vst [vmem:[#allocation8 + $0xd8] sm:$0xff] %v3144
    %3386 = vst [vmem:[#allocation8 + $0xe0] sm:$0xff] %v2303
    %3387 = vst [vmem:[#allocation8 + $0xe8] sm:$0xff] %v2305
    %3388 = vst [vmem:[#allocation8 + $0xf0] sm:$0xff] %v3146
    %3389 = vst [vmem:[#allocation8 + $0xf8] sm:$0xff] %v3148
    %3390 = vst [vmem:[#allocation8 + $0x100] sm:$0xff] %v2309
    %3391 = vst [vmem:[#allocation8 + $0x108] sm:$0xff] %v2311
    %3392 = vst [vmem:[#allocation8 + $0x110] sm:$0xff] %v3152
    %3393 = vst [vmem:[#allocation8 + $0x118] sm:$0xff] %v3154
    %3394 = vst [vmem:[#allocation8 + $0x120] sm:$0xff] %v2313
    %3395 = vst [vmem:[#allocation8 + $0x128] sm:$0xff] %v2315
    %3396 = vst [vmem:[#allocation8 + $0x130] sm:$0xff] %v3156
    %3397 = vst [vmem:[#allocation8 + $0x138] sm:$0xff] %v3158
    %3398 = vst [vmem:[#allocation8 + $0x140] sm:$0xff] %v2319
    %3399 = vst [vmem:[#allocation8 + $0x148] sm:$0xff] %v2321
    %3400 = vst [vmem:[#allocation8 + $0x150] sm:$0xff] %v3162
    %3401 = vst [vmem:[#allocation8 + $0x158] sm:$0xff] %v3164
    %3402 = vst [vmem:[#allocation8 + $0x160] sm:$0xff] %v2323
    %3403 = vst [vmem:[#allocation8 + $0x168] sm:$0xff] %v2325
    %3404 = vst [vmem:[#allocation8 + $0x170] sm:$0xff] %v3166
    %3405 = vst [vmem:[#allocation8 + $0x178] sm:$0xff] %v3168
    %3406 = vst [vmem:[#allocation8 + $0x180] sm:$0xff] %v2329
    %3407 = vst [vmem:[#allocation8 + $0x188] sm:$0xff] %v2331
    %3408 = vst [vmem:[#allocation8 + $0x190] sm:$0xff] %v3172
    %3409 = vst [vmem:[#allocation8 + $0x198] sm:$0xff] %v3174
    %3410 = vst [vmem:[#allocation8 + $0x1a0] sm:$0xff] %v2333
    %3411 = vst [vmem:[#allocation8 + $0x1a8] sm:$0xff] %v2335
    %3412 = vst [vmem:[#allocation8 + $0x1b0] sm:$0xff] %v3176
    %3413 = vst [vmem:[#allocation8 + $0x1b8] sm:$0xff] %v3178
    %3414 = vst [vmem:[#allocation8 + $0x1c0] sm:$0xff] %v2339
    %3415 = vst [vmem:[#allocation8 + $0x1c8] sm:$0xff] %v2341
    %3416 = vst [vmem:[#allocation8 + $0x1d0] sm:$0xff] %v3182
    %3417 = vst [vmem:[#allocation8 + $0x1d8] sm:$0xff] %v3184
    %3418 = vst [vmem:[#allocation8 + $0x1e0] sm:$0xff] %v2343
    %3419 = vst [vmem:[#allocation8 + $0x1e8] sm:$0xff] %v2345
    %3420 = vst [vmem:[#allocation8 + $0x1f0] sm:$0xff] %v3186
    %3421 = vst [vmem:[#allocation8 + $0x1f8] sm:$0xff] %v3188
    %3422 = vst [vmem:[#allocation8 + $0x200] sm:$0xff] %v2349
    %3423 = vst [vmem:[#allocation8 + $0x208] sm:$0xff] %v2351
    %3424 = vst [vmem:[#allocation8 + $0x210] sm:$0xff] %v3192
    %3425 = vst [vmem:[#allocation8 + $0x218] sm:$0xff] %v3194
    %3426 = vst [vmem:[#allocation8 + $0x220] sm:$0xff] %v2353
    %3427 = vst [vmem:[#allocation8 + $0x228] sm:$0xff] %v2355
    %3428 = vst [vmem:[#allocation8 + $0x230] sm:$0xff] %v3196
    %3429 = vst [vmem:[#allocation8 + $0x238] sm:$0xff] %v3198
    %3430 = vst [vmem:[#allocation8 + $0x240] sm:$0xff] %v2359
    %3431 = vst [vmem:[#allocation8 + $0x248] sm:$0xff] %v2361
    %3432 = vst [vmem:[#allocation8 + $0x250] sm:$0xff] %v3202
    %3433 = vst [vmem:[#allocation8 + $0x258] sm:$0xff] %v3204
    %3434 = vst [vmem:[#allocation8 + $0x260] sm:$0xff] %v2363
    %3435 = vst [vmem:[#allocation8 + $0x268] sm:$0xff] %v2365
    %3436 = vst [vmem:[#allocation8 + $0x270] sm:$0xff] %v3206
    %3437 = vst [vmem:[#allocation8 + $0x278] sm:$0xff] %v3208
    %3438 = vst [vmem:[#allocation8 + $0x280] sm:$0xff] %v2369
    %3439 = vst [vmem:[#allocation8 + $0x288] sm:$0xff] %v2371
    %3440 = vst [vmem:[#allocation8 + $0x290] sm:$0xff] %v3212
    %3441 = vst [vmem:[#allocation8 + $0x298] sm:$0xff] %v3214
    %3442 = vst [vmem:[#allocation8 + $0x2a0] sm:$0xff] %v2373
    %3443 = vst [vmem:[#allocation8 + $0x2a8] sm:$0xff] %v2375
    %3444 = vst [vmem:[#allocation8 + $0x2b0] sm:$0xff] %v3216
    %3445 = vst [vmem:[#allocation8 + $0x2b8] sm:$0xff] %v3218
    %3446 = vst [vmem:[#allocation8 + $0x2c0] sm:$0xff] %v2379
    %3447 = vst [vmem:[#allocation8 + $0x2c8] sm:$0xff] %v2381
    %3448 = vst [vmem:[#allocation8 + $0x2d0] sm:$0xff] %v3222
    %3449 = vst [vmem:[#allocation8 + $0x2d8] sm:$0xff] %v3224
    %3450 = vst [vmem:[#allocation8 + $0x2e0] sm:$0xff] %v2383
    %3451 = vst [vmem:[#allocation8 + $0x2e8] sm:$0xff] %v2385
    %3452 = vst [vmem:[#allocation8 + $0x2f0] sm:$0xff] %v3226
    %3453 = vst [vmem:[#allocation8 + $0x2f8] sm:$0xff] %v3228
    %3454 = vst [vmem:[#allocation8 + $0x300] sm:$0xff] %v2389
    %3455 = vst [vmem:[#allocation8 + $0x308] sm:$0xff] %v2391
    %3456 = vst [vmem:[#allocation8 + $0x310] sm:$0xff] %v3232
    %3457 = vst [vmem:[#allocation8 + $0x318] sm:$0xff] %v3234
    %3458 = vst [vmem:[#allocation8 + $0x320] sm:$0xff] %v2393
    %3459 = vst [vmem:[#allocation8 + $0x328] sm:$0xff] %v2395
    %3460 = vst [vmem:[#allocation8 + $0x330] sm:$0xff] %v3236
    %3461 = vst [vmem:[#allocation8 + $0x338] sm:$0xff] %v3238
    %3462 = vst [vmem:[#allocation8 + $0x340] sm:$0xff] %v2399
    %3463 = vst [vmem:[#allocation8 + $0x348] sm:$0xff] %v2401
    %3464 = vst [vmem:[#allocation8 + $0x350] sm:$0xff] %v3242
    %3465 = vst [vmem:[#allocation8 + $0x358] sm:$0xff] %v3244
    %3466 = vst [vmem:[#allocation8 + $0x360] sm:$0xff] %v2403
    %3467 = vst [vmem:[#allocation8 + $0x368] sm:$0xff] %v2405
    %3468 = vst [vmem:[#allocation8 + $0x370] sm:$0xff] %v3246
    %3469 = vst [vmem:[#allocation8 + $0x378] sm:$0xff] %v3248
    %3470 = vst [vmem:[#allocation8 + $0x380] sm:$0xff] %v2409
    %3471 = vst [vmem:[#allocation8 + $0x388] sm:$0xff] %v2411
    %3472 = vst [vmem:[#allocation8 + $0x390] sm:$0xff] %v3252
    %3473 = vst [vmem:[#allocation8 + $0x398] sm:$0xff] %v3254
    %3474 = vst [vmem:[#allocation8 + $0x3a0] sm:$0xff] %v2413
    %3475 = vst [vmem:[#allocation8 + $0x3a8] sm:$0xff] %v2415
    %3476 = vst [vmem:[#allocation8 + $0x3b0] sm:$0xff] %v3256
    %3477 = vst [vmem:[#allocation8 + $0x3b8] sm:$0xff] %v3258
    %3478 = vst [vmem:[#allocation8 + $0x3c0] sm:$0xff] %v2419
    %3479 = vst [vmem:[#allocation8 + $0x3c8] sm:$0xff] %v2421
    %3480 = vst [vmem:[#allocation8 + $0x3d0] sm:$0xff] %v3262
    %3481 = vst [vmem:[#allocation8 + $0x3d8] sm:$0xff] %v3264
    %3482 = vst [vmem:[#allocation8 + $0x3e0] sm:$0xff] %v2423
    %3483 = vst [vmem:[#allocation8 + $0x3e8] sm:$0xff] %v2425
    %3484 = vst [vmem:[#allocation8 + $0x3f0] sm:$0xff] %v3266
    %3485 = vst [vmem:[#allocation8 + $0x3f8] sm:$0xff] %v3268
    %3486 = vst [vmem:[#allocation8 + $0x400] sm:$0xff] %v2429
    %3487 = vst [vmem:[#allocation8 + $0x408] sm:$0xff] %v2431
    %3488 = vst [vmem:[#allocation8 + $0x410] sm:$0xff] %v3272
    %3489 = vst [vmem:[#allocation8 + $0x418] sm:$0xff] %v3274
    %3490 = vst [vmem:[#allocation8 + $0x420] sm:$0xff] %v2433
    %3491 = vst [vmem:[#allocation8 + $0x428] sm:$0xff] %v2435
    %3492 = vst [vmem:[#allocation8 + $0x430] sm:$0xff] %v3276
    %3493 = vst [vmem:[#allocation8 + $0x438] sm:$0xff] %v3278
    %3494 = vst [vmem:[#allocation8 + $0x440] sm:$0xff] %v2439
    %3495 = vst [vmem:[#allocation8 + $0x448] sm:$0xff] %v2441
    %3496 = vst [vmem:[#allocation8 + $0x450] sm:$0xff] %v3282
    %3497 = vst [vmem:[#allocation8 + $0x458] sm:$0xff] %v3284
    %3498 = vst [vmem:[#allocation8 + $0x460] sm:$0xff] %v2443
    %3499 = vst [vmem:[#allocation8 + $0x468] sm:$0xff] %v2445
    %3500 = vst [vmem:[#allocation8 + $0x470] sm:$0xff] %v3286
    %3501 = vst [vmem:[#allocation8 + $0x478] sm:$0xff] %v3288
    %3502 = vst [vmem:[#allocation8 + $0x480] sm:$0xff] %v2449
    %3503 = vst [vmem:[#allocation8 + $0x488] sm:$0xff] %v2451
    %3504 = vst [vmem:[#allocation8 + $0x490] sm:$0xff] %v3292
    %3505 = vst [vmem:[#allocation8 + $0x498] sm:$0xff] %v3294
    %3506 = vst [vmem:[#allocation8 + $0x4a0] sm:$0xff] %v2453
    %3507 = vst [vmem:[#allocation8 + $0x4a8] sm:$0xff] %v2455
    %3508 = vst [vmem:[#allocation8 + $0x4b0] sm:$0xff] %v3296
    %3509 = vst [vmem:[#allocation8 + $0x4b8] sm:$0xff] %v3298
    %3510 = vst [vmem:[#allocation8 + $0x4c0] sm:$0xff] %v2459
    %3511 = vst [vmem:[#allocation8 + $0x4c8] sm:$0xff] %v2461
    %3512 = vst [vmem:[#allocation8 + $0x4d0] sm:$0xff] %v3302
    %3513 = vst [vmem:[#allocation8 + $0x4d8] sm:$0xff] %v3304
    %3514 = vst [vmem:[#allocation8 + $0x4e0] sm:$0xff] %v2463
    %3515 = vst [vmem:[#allocation8 + $0x4e8] sm:$0xff] %v2465
    %3516 = vst [vmem:[#allocation8 + $0x4f0] sm:$0xff] %v3306
    %3517 = vst [vmem:[#allocation8 + $0x4f8] sm:$0xff] %v3308
    %3518 = vst [vmem:[#allocation8 + $0x500] sm:$0xff] %v2469
    %3519 = vst [vmem:[#allocation8 + $0x508] sm:$0xff] %v2471
    %3520 = vst [vmem:[#allocation8 + $0x510] sm:$0xff] %v3312
    %3521 = vst [vmem:[#allocation8 + $0x518] sm:$0xff] %v3314
    %3522 = vst [vmem:[#allocation8 + $0x520] sm:$0xff] %v2473
    %3523 = vst [vmem:[#allocation8 + $0x528] sm:$0xff] %v2475
    %3524 = vst [vmem:[#allocation8 + $0x530] sm:$0xff] %v3316
    %3525 = vst [vmem:[#allocation8 + $0x538] sm:$0xff] %v3318
    %3526 = vst [vmem:[#allocation8 + $0x540] sm:$0xff] %v2479
    %3527 = vst [vmem:[#allocation8 + $0x548] sm:$0xff] %v2481
    %3528 = vst [vmem:[#allocation8 + $0x550] sm:$0xff] %v3322
    %3529 = vst [vmem:[#allocation8 + $0x558] sm:$0xff] %v3324
    %3530 = vst [vmem:[#allocation8 + $0x560] sm:$0xff] %v2483
    %3531 = vst [vmem:[#allocation8 + $0x568] sm:$0xff] %v2485
    %3532 = vst [vmem:[#allocation8 + $0x570] sm:$0xff] %v3326
    %3533 = vst [vmem:[#allocation8 + $0x578] sm:$0xff] %v3328
    %3534 = vst [vmem:[#allocation8 + $0x580] sm:$0xff] %v2489
    %3535 = vst [vmem:[#allocation8 + $0x588] sm:$0xff] %v2491
    %3536 = vst [vmem:[#allocation8 + $0x590] sm:$0xff] %v3332
    %3537 = vst [vmem:[#allocation8 + $0x598] sm:$0xff] %v3334
    %3538 = vst [vmem:[#allocation8 + $0x5a0] sm:$0xff] %v2493
    %3539 = vst [vmem:[#allocation8 + $0x5a8] sm:$0xff] %v2495
    %3540 = vst [vmem:[#allocation8 + $0x5b0] sm:$0xff] %v3336
    %3541 = vst [vmem:[#allocation8 + $0x5b8] sm:$0xff] %v3338
    %3542 = vst [vmem:[#allocation8 + $0x5c0] sm:$0xff] %v2499
    %3543 = vst [vmem:[#allocation8 + $0x5c8] sm:$0xff] %v2501
    %3544 = vst [vmem:[#allocation8 + $0x5d0] sm:$0xff] %v3342
    %3545 = vst [vmem:[#allocation8 + $0x5d8] sm:$0xff] %v3344
    %3546 = vst [vmem:[#allocation8 + $0x5e0] sm:$0xff] %v2503
    %3547 = vst [vmem:[#allocation8 + $0x5e8] sm:$0xff] %v2505
    %3548 = vst [vmem:[#allocation8 + $0x5f0] sm:$0xff] %v3346
    %3549 = vst [vmem:[#allocation8 + $0x5f8] sm:$0xff] %v3348
    %3550 = vst [vmem:[#allocation8 + $0x600] sm:$0xff] %v2509
    %3551 = vst [vmem:[#allocation8 + $0x608] sm:$0xff] %v2511
    %3552 = vst [vmem:[#allocation8 + $0x610] sm:$0xff] %v3352
    %3553 = vst [vmem:[#allocation8 + $0x618] sm:$0xff] %v3354
    // Predicated region
    $region26: #{tpu_custom_call.1} parent=1 // pred_check
      _
    $region27: #{tpu_custom_call.1} parent=1 // pred_check_branch
      %3555 = sbr.rel (0) target = $region29
    $region28: #{tpu_custom_call.1} parent=1 // pred_region
      %s3557 = ssub.s32 25088, 25088
      %3558 = vsyncadd [#allocation4], %s3557
      %s3559 = sshll.u32 [#allocation8], 4
      %s3560 = int_to_ptr.vmem [resolvable:$true] %s3559
      %3565 = dma.vmem_to_hbm [thread:$0]  %s3560, 25088, %s3, [#allocation4], 512, 512, 32
    $region29: #{tpu_custom_call.1} parent=1 // pred_fallthru
      _
    // Predicated region
    $region30: #{tpu_custom_call.1} parent=1 // pred_check
      _
    $region31: #{tpu_custom_call.1} parent=1 // pred_check_branch
      %3567 = sbr.rel (0) target = $region33
    $region32: #{tpu_custom_call.1} parent=1 // pred_region
      %3568 = dma.done [#allocation4], 25088
    $region33: #{tpu_custom_call.1} parent=1 // pred_fallthru
      _
    %3569 = vsyncpa [#allocation3], 1
    %3570 = vsyncpa [#allocation6], 1
    %3571 = vsyncpa [#allocation4], 1

</llo_original>
